<compile_context>
chip_gen: v7x
topology: tpu7x:2x2x1
jax: 0.10.0
libtpu: 0.0.40
codegen_flags: <defaults>
</compile_context>

<pallas_src>
import jax
import jax.numpy as jnp
from jax.experimental import pallas as pl
from jax.experimental.pallas import tpu as pltpu

# --------------------------------------------------------------------------
# Model dimensions (from PKAN.__init__ with feature_vec_size=64)
# --------------------------------------------------------------------------
FEAT = 64          # feature_vec_size
H1 = 128           # Linear(64, 128)
H2 = 64            # Linear(128, 64)
H3 = 64            # Linear(64, 64)  (input to KAN layer)
H4 = 32            # Linear(64, 32)
OUT = 2            # Linear(32, 2)
PAD_N = 128        # lane-dense padding for the (64->32->2) tail

# KANLinear(64, 64) hyper-parameters (efficient-KAN defaults)
GRID_SIZE = 5
SPLINE_ORDER = 3
NUM_BASIS = GRID_SIZE + SPLINE_ORDER           # 8 basis functions per input
GRID_LO, GRID_HI = -1.0, 1.0
_H = (GRID_HI - GRID_LO) / GRID_SIZE           # 0.4
# Extended uniform knot vector (compile-time floats), 12 knots
KNOTS = [GRID_LO + (j - SPLINE_ORDER) * _H
         for j in range(GRID_SIZE + 2 * SPLINE_ORDER + 1)]
KAN_K = NUM_BASIS * FEAT                       # 512
KAN_IN = FEAT + KAN_K                          # 576 (silu | basis)


def _ceil_to(a, m):
    return -(-a // m) * m


def _cdiv(a, m):
    return -(-a // m)


# --------------------------------------------------------------------------
# Generation detection (elementwise dtype + TensorCore count)
# --------------------------------------------------------------------------
def _device_kind():
    try:
        return jax.devices()[0].device_kind.lower()
    except Exception:
        return ""


def _default_elem_dtype():
    """bf16 elementwise basis math on bf16-native VPUs (v6e/v7x); f32 otherwise."""
    k = _device_kind()
    if ("v6" in k) or ("v7" in k) or ("7x" in k):
        return jnp.bfloat16
    return jnp.float32      # v5e & older: no bf16 VALU -> bf16 adds convert traffic


def _num_tensorcores():
    """Tiles are balanced across TensorCores only on dual-TC chips."""
    k = _device_kind()
    if ("v7" in k) or ("7x" in k) or ("v4" in k) or ("v5p" in k):
        return 2
    return 1                # v5e / v6e: single TensorCore


# --------------------------------------------------------------------------
# Pallas kernel: entire fc_pipeline fused, one batch tile per grid step
# --------------------------------------------------------------------------
def pkan_kernel(x_ref, cs_ref,
                w1_ref, b1_ref, w2_ref, b2_ref, w3_ref, b3_ref,
                wkan_ref, w4_ref, b4_ref, w5_ref, b5_ref,
                o_ref):
    cdt = w1_ref.dtype                 # bf16 matmul-operand dtype
    edt = cs_ref.dtype                 # elementwise dtype for the spline basis
    f32 = jnp.float32

    x = x_ref[...].astype(cdt)

    # Linear(64,128) + ReLU   (Dropout = identity at eval)
    h = jnp.dot(x, w1_ref[...], preferred_element_type=f32) + b1_ref[...]
    h = jnp.maximum(h, 0.0).astype(cdt)

    # Linear(128,64) + ReLU   (Dropout = identity at eval)
    h = jnp.dot(h, w2_ref[...], preferred_element_type=f32) + b2_ref[...]
    h = jnp.maximum(h, 0.0).astype(cdt)

    # Linear(64,64)
    z = jnp.dot(h, w3_ref[...], preferred_element_type=f32) + b3_ref[...]

    # --- KAN layer (KANLinear 64 -> 64) ---
    # SiLU: exp on EUP + approximate reciprocal on EUP -> no VALU divide.
    sig = pl.reciprocal(1.0 + jnp.exp(-z), approx=True)
    silu = (z * sig).astype(cdt)                           # [tb, 64]

    # Lane-dense cardinal cubic B-spline basis, k-major layout [tb, 512]:
    # lane k*64+i holds N_{k,3}(z_i) = B3((z_i - KNOTS[k]) / h).  B3 is the
    # cardinal cubic B-spline; with v = |z/h - center_k/h|:
    #   v <= 1 : 2/3 - v^2 + v^3/2          1 < v <= 2 : (2 - v)^3 / 6   else 0
    # ~14 elementwise ops on full 128-lane vregs, no cross-lane shifts.
    zs = z * (1.0 / _H)                                    # [tb, 64] f32
    zt = jnp.concatenate([zs] * NUM_BASIS, axis=-1).astype(edt)   # [tb, 512]
    v = jnp.abs(zt - cs_ref[...])                          # centers in units of h
    w = jnp.maximum(2.0 - v, 0.0)
    outer = (w * w) * (w * (1.0 / 6.0))
    central = (v * v) * (0.5 * v - 1.0) + 2.0 / 3.0
    basis = jnp.where(v <= 1.0, central, outer).astype(cdt)       # [tb, 512]

    # Fused base+spline matmul: single K=576 dot [silu | basis] @ [Wbase ; Wspl]
    kan_in = jnp.concatenate([silu, basis], axis=-1)       # [tb, 576]
    kan = jnp.dot(kan_in, wkan_ref[...],
                  preferred_element_type=f32).astype(cdt)  # [tb, 64]

    # Linear(64,32) + ReLU, padded to N=128 (padded columns are exactly 0)
    h = jnp.dot(kan, w4_ref[...], preferred_element_type=f32) + b4_ref[...]
    h = jnp.maximum(h, 0.0).astype(cdt)

    # Linear(32,2), padded to N=128 -> lane-dense, unmasked output stores
    o_ref[...] = (jnp.dot(h, w5_ref[...], preferred_element_type=f32)
                  + b5_ref[...]).astype(o_ref.dtype)


# --------------------------------------------------------------------------
# Parameter staging: bf16 weights, fused KAN weight, lane-dense tail padding
# --------------------------------------------------------------------------
def _stage_params(params, elem_dtype=jnp.float32):
    (w1, b1, w2, b2, w3, b3, wbase, wspline, w4, b4, w5, b5) = params
    cdt = jnp.bfloat16

    # Per-lane basis support centers, in units of h: lane k*64+i -> (k - 3.5).
    centers = jnp.arange(NUM_BASIS, dtype=jnp.float32) - (SPLINE_ORDER + 0.5)
    cs = jnp.repeat(centers, FEAT).reshape(1, KAN_K).astype(elem_dtype)

    # [NUM_BASIS, 64, 64] -> [512, 64], rows k-major / in-minor to match the
    # lane layout of the basis.  (Porting real efficient-KAN checkpoints needs
    # a transpose of the (in, basis) grouping before this reshape.)
    wspl = wspline.reshape(KAN_K, H3)
    wkan = jnp.concatenate([wbase, wspl], axis=0)          # [576, 64]

    # Pad the tail for lane density. Padded weight/bias entries are zero, so
    # relu(0) = 0 and the extra output columns are exactly 0.
    w4p = jnp.zeros((H3, PAD_N), jnp.float32).at[:, :H4].set(w4)
    b4p = jnp.zeros((1, PAD_N), jnp.float32).at[:, :H4].set(b4[0])
    w5p = jnp.zeros((PAD_N, PAD_N), jnp.float32).at[:H4, :OUT].set(w5)
    b5p = jnp.zeros((1, PAD_N), jnp.float32).at[:, :OUT].set(b5[0])

    return (cs,
            w1.astype(cdt), b1,
            w2.astype(cdt), b2,
            w3.astype(cdt), b3,
            wkan.astype(cdt),
            w4p.astype(cdt), b4p,
            w5p.astype(cdt), b5p)


# --------------------------------------------------------------------------
# Wrapper
# --------------------------------------------------------------------------
def pkan_forward(x, params, *, tile_b=1024, elem_dtype=None,
                 out_dtype=jnp.bfloat16, vmem_limit_bytes=None):
    B, F = x.shape
    assert F == FEAT
    if elem_dtype is None:
        elem_dtype = _default_elem_dtype()

    staged = _stage_params(params, elem_dtype)
    n_tc = _num_tensorcores()

    # Batch tiling: big tiles amortize per-grid-step overhead.  Single-TC
    # chips (v5e/v6e) keep one tile when the batch fits; dual-TC chips get a
    # balanced, even tile count so both cores share work under "parallel".
    tile_b = _ceil_to(max(8, min(tile_b, _ceil_to(B, 8))), 8)
    n_tiles = _cdiv(B, tile_b)
    if n_tc > 1:
        n_tiles = _ceil_to(max(n_tiles, n_tc), n_tc)
        tile_b = _ceil_to(_cdiv(B, n_tiles), 8)
        n_tiles = _cdiv(_ceil_to(B, 8), tile_b)
    b_pad = n_tiles * tile_b
    if b_pad != B:
        x = jnp.pad(x, ((0, b_pad - B), (0, 0)))   # ragged batch -> zero pad

    if vmem_limit_bytes is None:
        # Spline intermediates (~a dozen [tile_b, 512] temporaries) scale with
        # tile_b.  128 MiB physical on v5e/v6e -> 64 MiB scoped is comfortable;
        # keep <= 48 MiB per core on dual-TC parts (v7x: 64 MiB physical / TC).
        vmem_limit_bytes = (48 << 20) if n_tc > 1 else (64 << 20)

    def resident(a):
        # Whole-array block with a constant index map: stays resident in VMEM
        # across grid steps (no re-DMA).
        return pl.BlockSpec(a.shape, lambda i: (0, 0))

    out_pad = pl.pallas_call(
        pkan_kernel,
        out_shape=jax.ShapeDtypeStruct((b_pad, PAD_N), out_dtype),
        grid_spec=pltpu.PrefetchScalarGridSpec(
            num_scalar_prefetch=0,
            grid=(n_tiles,),
            in_specs=[pl.BlockSpec((tile_b, FEAT), lambda i: (i, 0))]
                     + [resident(a) for a in staged],
            out_specs=pl.BlockSpec((tile_b, PAD_N), lambda i: (i, 0)),
        ),
        compiler_params=pltpu.CompilerParams(
            dimension_semantics=("parallel",),
            vmem_limit_bytes=vmem_limit_bytes),
    )(x, *staged)

    return out_pad[:B, :OUT].astype(jnp.float32)


# --------------------------------------------------------------------------
# Pure-JAX references for correctness checks
# --------------------------------------------------------------------------
def bspline_basis_ref(z, dtype=jnp.float32):
    """Cardinal-form cubic B-spline bases: [B,64] -> [B,512] (k-major)."""
    zs = (z * (1.0 / _H)).astype(dtype)
    cs = (jnp.arange(NUM_BASIS, dtype=jnp.float32)
          - (SPLINE_ORDER + 0.5)).astype(dtype)
    v = jnp.abs(zs[:, None, :] - cs[None, :, None])        # [B, K, 64]
    w = jnp.maximum(2.0 - v, 0.0)
    outer = (w * w) * (w * (1.0 / 6.0))
    central = (v * v) * (0.5 * v - 1.0) + 2.0 / 3.0
    b = jnp.where(v <= 1.0, central, outer)
    return b.reshape(z.shape[0], KAN_K).astype(jnp.float32)


def bspline_basis_coxdeboor_ref(z):
    """Efficient-KAN style Cox-de Boor recursion (f32), k-major flatten."""
    grid = jnp.asarray(KNOTS, jnp.float32)
    x = z[:, :, None]
    b = ((x >= grid[:-1]) & (x < grid[1:])).astype(jnp.float32)   # [B,64,11]
    for d in range(1, SPLINE_ORDER + 1):
        left = (x - grid[: -(d + 1)]) / (grid[d:-1] - grid[: -(d + 1)]) * b[..., :-1]
        right = (grid[d + 1:] - x) / (grid[d + 1:] - grid[1:-d]) * b[..., 1:]
        b = left + right
    return jnp.transpose(b, (0, 2, 1)).reshape(z.shape[0], KAN_K)


def pkan_reference_f32(x, params):
    """Full-f32 reference (original module semantics)."""
    (w1, b1, w2, b2, w3, b3, wbase, wspline, w4, b4, w5, b5) = params
    h = jnp.maximum(x @ w1 + b1, 0.0)
    h = jnp.maximum(h @ w2 + b2, 0.0)
    z = h @ w3 + b3
    kan = (z * jax.nn.sigmoid(z)) @ wbase
    kan = kan + bspline_basis_ref(z) @ wspline.reshape(KAN_K, H3)
    h = jnp.maximum(kan @ w4 + b4, 0.0)
    return h @ w5 + b5


def pkan_reference_bf16(x, params, elem_dtype=jnp.float32, out_dtype=jnp.bfloat16):
    """Mirrors the kernel's dtype policy (bf16 matmul operands, f32 accum)."""
    (cs, w1, b1, w2, b2, w3, b3, wkan, w4p, b4p, w5p, b5p) = _stage_params(
        params, elem_dtype)
    del cs
    cdt = jnp.bfloat16

    def mm(a, w):
        return jnp.dot(a.astype(cdt), w, preferred_element_type=jnp.float32)

    h = jnp.maximum(mm(x, w1) + b1, 0.0)
    h = jnp.maximum(mm(h, w2) + b2, 0.0)
    z = mm(h, w3) + b3
    silu = (z * jax.nn.sigmoid(z)).astype(cdt)
    basis = bspline_basis_ref(z, elem_dtype).astype(cdt)
    kan = mm(jnp.concatenate([silu, basis], axis=-1), wkan)
    h = jnp.maximum(mm(kan, w4p) + b4p, 0.0)
    out = (mm(h, w5p) + b5p).astype(out_dtype)
    return out[:, :OUT].astype(jnp.float32)


# --------------------------------------------------------------------------
# Deterministic parameter initialization
# --------------------------------------------------------------------------
def init_params(key):
    ks = jax.random.split(key, 12)

    def lin(kw, fan_in, fan_out):
        # Store as [in, out] (pre-transposed), bias as [1, out]
        w = jax.random.uniform(kw, (fan_in, fan_out), jnp.float32,
                               -1.0, 1.0) / jnp.sqrt(float(fan_in))
        b = jnp.zeros((1, fan_out), jnp.float32)
        return w, b

    w1, b1 = lin(ks[0], FEAT, H1)
    w2, b2 = lin(ks[1], H1, H2)
    w3, b3 = lin(ks[2], H2, H3)
    w4, b4 = lin(ks[3], H3, H4)
    w5, b5 = lin(ks[4], H4, OUT)
    wbase = jax.random.uniform(ks[5], (H3, H3), jnp.float32,
                               -1.0, 1.0) / jnp.sqrt(float(H3))
    wspline = 0.1 * jax.random.normal(ks[6], (NUM_BASIS, H3, H3),
                                      jnp.float32) / jnp.sqrt(float(H3))
    return (w1, b1, w2, b2, w3, b3, wbase, wspline, w4, b4, w5, b5)


if __name__ == "__main__":
    key = jax.random.PRNGKey(0)
    kp, kx, kx2, kz = jax.random.split(key, 4)
    params = init_params(kp)

    # Sanity: cardinal closed form == efficient-KAN Cox-de Boor recursion.
    zt = 1.5 * jax.random.normal(kz, (32, FEAT), jnp.float32)
    assert jnp.allclose(bspline_basis_ref(zt), bspline_basis_coxdeboor_ref(zt),
                        atol=1e-5), "basis formulation mismatch"

    # Batch of 128 (matches the PyTorch DataLoader batch_size=128)
    B = 128
    x = jax.random.normal(kx, (B, FEAT), jnp.float32)

    out = jax.block_until_ready(pkan_forward(x, params))
    assert out.shape == (B, OUT)

    edt = _default_elem_dtype()
    ref_bf16 = pkan_reference_bf16(x, params, edt)
    ref_f32 = pkan_reference_f32(x, params)
    assert jnp.allclose(out, ref_bf16, atol=1e-2, rtol=1e-2), \
        "mismatch vs bf16-mirrored reference"
    assert jnp.allclose(out, ref_f32, atol=5e-2, rtol=5e-2), \
        "mismatch vs f32 reference"

    # Ragged-batch path (padded grid + slice)
    B2 = 100
    x2 = jax.random.normal(kx2, (B2, FEAT), jnp.float32)
    out2 = jax.block_until_ready(pkan_forward(x2, params))
    assert out2.shape == (B2, OUT)
    assert jnp.allclose(out2, pkan_reference_bf16(x2, params, edt),
                        atol=1e-2, rtol=1e-2), "ragged-batch mismatch"

    print("KERNEL_OK")
</pallas_src>

<mosaic_0001>
module attributes {stable_mosaic.version = 11 : i64} {
  func.func @pkan_kernel(%arg0: i32, %arg1: memref<128x64xf32, #tpu.memory_space<vmem>>, %arg2: memref<1x512xf32, #tpu.memory_space<vmem>>, %arg3: memref<64x128xbf16, #tpu.memory_space<vmem>>, %arg4: memref<1x128xf32, #tpu.memory_space<vmem>>, %arg5: memref<128x64xbf16, #tpu.memory_space<vmem>>, %arg6: memref<1x64xf32, #tpu.memory_space<vmem>>, %arg7: memref<64x64xbf16, #tpu.memory_space<vmem>>, %arg8: memref<1x64xf32, #tpu.memory_space<vmem>>, %arg9: memref<576x64xbf16, #tpu.memory_space<vmem>>, %arg10: memref<64x128xbf16, #tpu.memory_space<vmem>>, %arg11: memref<1x128xf32, #tpu.memory_space<vmem>>, %arg12: memref<128x128xbf16, #tpu.memory_space<vmem>>, %arg13: memref<1x128xf32, #tpu.memory_space<vmem>>, %arg14: memref<128x128xbf16, #tpu.memory_space<vmem>>) attributes {dimension_semantics = [#tpu.dimension_semantics<parallel>], iteration_bounds = array<i64: 1>, scalar_prefetch = 0 : i64, scratch_operands = 0 : i64, tpu.core_type = #tpu.core_type<tc>, window_params = [{transform_indices = @transform_0, window_bounds = array<i64: 128, 64>}, {pipeline_mode = #tpu.pipeline_mode<synchronous>, transform_indices = @transform_1, window_bounds = array<i64: 1, 512>}, {pipeline_mode = #tpu.pipeline_mode<synchronous>, transform_indices = @transform_2, window_bounds = array<i64: 64, 128>}, {pipeline_mode = #tpu.pipeline_mode<synchronous>, transform_indices = @transform_3, window_bounds = array<i64: 1, 128>}, {pipeline_mode = #tpu.pipeline_mode<synchronous>, transform_indices = @transform_4, window_bounds = array<i64: 128, 64>}, {pipeline_mode = #tpu.pipeline_mode<synchronous>, transform_indices = @transform_5, window_bounds = array<i64: 1, 64>}, {pipeline_mode = #tpu.pipeline_mode<synchronous>, transform_indices = @transform_6, window_bounds = array<i64: 64, 64>}, {pipeline_mode = #tpu.pipeline_mode<synchronous>, transform_indices = @transform_7, window_bounds = array<i64: 1, 64>}, {pipeline_mode = #tpu.pipeline_mode<synchronous>, transform_indices = @transform_8, window_bounds = array<i64: 576, 64>}, {pipeline_mode = #tpu.pipeline_mode<synchronous>, transform_indices = @transform_9, window_bounds = array<i64: 64, 128>}, {pipeline_mode = #tpu.pipeline_mode<synchronous>, transform_indices = @transform_10, window_bounds = array<i64: 1, 128>}, {pipeline_mode = #tpu.pipeline_mode<synchronous>, transform_indices = @transform_11, window_bounds = array<i64: 128, 128>}, {pipeline_mode = #tpu.pipeline_mode<synchronous>, transform_indices = @transform_12, window_bounds = array<i64: 1, 128>}, {transform_indices = @transform_13, window_bounds = array<i64: 128, 128>}]} {
    %c0 = arith.constant 0 : index
    %c0_0 = arith.constant 0 : index
    %0 = vector.load %arg1[%c0, %c0_0] : memref<128x64xf32, #tpu.memory_space<vmem>>, vector<128x64xf32>
    %1 = arith.truncf %0 : vector<128x64xf32> to vector<128x64xbf16>
    %c0_1 = arith.constant 0 : index
    %c0_2 = arith.constant 0 : index
    %2 = vector.load %arg3[%c0_1, %c0_2] : memref<64x128xbf16, #tpu.memory_space<vmem>>, vector<64x128xbf16>
    %cst = arith.constant dense<0.000000e+00> : vector<128x128xf32>
    %3 = tpu.matmul %1, %2, %cst {dimension_numbers = #tpu.dot_dimension_numbers<[1], [0], [0], [1], [0, 0, 1, 1], [], []>} : vector<128x64xbf16>, vector<64x128xbf16>, vector<128x128xf32> -> vector<128x128xf32>
    %c0_3 = arith.constant 0 : index
    %c0_4 = arith.constant 0 : index
    %4 = vector.load %arg4[%c0_3, %c0_4] : memref<1x128xf32, #tpu.memory_space<vmem>>, vector<1x128xf32>
    %5 = vector.broadcast %4 : vector<1x128xf32> to vector<128x128xf32>
    %6 = arith.addf %3, %5 : vector<128x128xf32>
    %cst_5 = arith.constant 0.000000e+00 : f32
    %7 = vector.broadcast %cst_5 : f32 to vector<128x128xf32>
    %8 = arith.maximumf %6, %7 : vector<128x128xf32>
    %9 = arith.truncf %8 : vector<128x128xf32> to vector<128x128xbf16>
    %c0_6 = arith.constant 0 : index
    %c0_7 = arith.constant 0 : index
    %10 = vector.load %arg5[%c0_6, %c0_7] : memref<128x64xbf16, #tpu.memory_space<vmem>>, vector<128x64xbf16>
    %cst_8 = arith.constant dense<0.000000e+00> : vector<128x64xf32>
    %11 = tpu.matmul %9, %10, %cst_8 {dimension_numbers = #tpu.dot_dimension_numbers<[1], [0], [0], [1], [0, 0, 1, 1], [], []>} : vector<128x128xbf16>, vector<128x64xbf16>, vector<128x64xf32> -> vector<128x64xf32>
    %c0_9 = arith.constant 0 : index
    %c0_10 = arith.constant 0 : index
    %12 = vector.load %arg6[%c0_9, %c0_10] : memref<1x64xf32, #tpu.memory_space<vmem>>, vector<1x64xf32>
    %13 = vector.broadcast %12 : vector<1x64xf32> to vector<128x64xf32>
    %14 = arith.addf %11, %13 : vector<128x64xf32>
    %cst_11 = arith.constant 0.000000e+00 : f32
    %15 = vector.broadcast %cst_11 : f32 to vector<128x64xf32>
    %16 = arith.maximumf %14, %15 : vector<128x64xf32>
    %17 = arith.truncf %16 : vector<128x64xf32> to vector<128x64xbf16>
    %c0_12 = arith.constant 0 : index
    %c0_13 = arith.constant 0 : index
    %18 = vector.load %arg7[%c0_12, %c0_13] : memref<64x64xbf16, #tpu.memory_space<vmem>>, vector<64x64xbf16>
    %cst_14 = arith.constant dense<0.000000e+00> : vector<128x64xf32>
    %19 = tpu.matmul %17, %18, %cst_14 {dimension_numbers = #tpu.dot_dimension_numbers<[1], [0], [0], [1], [0, 0, 1, 1], [], []>} : vector<128x64xbf16>, vector<64x64xbf16>, vector<128x64xf32> -> vector<128x64xf32>
    %c0_15 = arith.constant 0 : index
    %c0_16 = arith.constant 0 : index
    %20 = vector.load %arg8[%c0_15, %c0_16] : memref<1x64xf32, #tpu.memory_space<vmem>>, vector<1x64xf32>
    %21 = vector.broadcast %20 : vector<1x64xf32> to vector<128x64xf32>
    %22 = arith.addf %19, %21 : vector<128x64xf32>
    %cst_17 = arith.constant 0.000000e+00 : f32
    %23 = vector.broadcast %cst_17 : f32 to vector<128x64xf32>
    %24 = arith.subf %23, %22 : vector<128x64xf32>
    %25 = math.exp %24 : vector<128x64xf32>
    %cst_18 = arith.constant 1.000000e+00 : f32
    %26 = vector.broadcast %cst_18 : f32 to vector<128x64xf32>
    %27 = arith.addf %26, %25 : vector<128x64xf32>
    %28 = tpu.reciprocal %27 {approx = true} : vector<128x64xf32> -> vector<128x64xf32>
    %29 = arith.mulf %22, %28 : vector<128x64xf32>
    %30 = arith.truncf %29 : vector<128x64xf32> to vector<128x64xbf16>
    %cst_19 = arith.constant 2.500000e+00 : f32
    %31 = vector.broadcast %cst_19 : f32 to vector<128x64xf32>
    %32 = arith.mulf %22, %31 : vector<128x64xf32>
    %33 = tpu.concatenate %32, %32, %32, %32, %32, %32, %32, %32 in 1 : vector<128x64xf32>, vector<128x64xf32>, vector<128x64xf32>, vector<128x64xf32>, vector<128x64xf32>, vector<128x64xf32>, vector<128x64xf32>, vector<128x64xf32> -> vector<128x512xf32>
    %c0_20 = arith.constant 0 : index
    %c0_21 = arith.constant 0 : index
    %34 = vector.load %arg2[%c0_20, %c0_21] : memref<1x512xf32, #tpu.memory_space<vmem>>, vector<1x512xf32>
    %35 = vector.broadcast %34 : vector<1x512xf32> to vector<128x512xf32>
    %36 = arith.subf %33, %35 : vector<128x512xf32>
    %37 = math.absf %36 : vector<128x512xf32>
    %cst_22 = arith.constant 2.000000e+00 : f32
    %38 = vector.broadcast %cst_22 : f32 to vector<128x512xf32>
    %39 = arith.subf %38, %37 : vector<128x512xf32>
    %cst_23 = arith.constant 0.000000e+00 : f32
    %40 = vector.broadcast %cst_23 : f32 to vector<128x512xf32>
    %41 = arith.maximumf %39, %40 : vector<128x512xf32>
    %42 = arith.mulf %41, %41 : vector<128x512xf32>
    %cst_24 = arith.constant 0.166666672 : f32
    %43 = vector.broadcast %cst_24 : f32 to vector<128x512xf32>
    %44 = arith.mulf %41, %43 : vector<128x512xf32>
    %45 = arith.mulf %42, %44 : vector<128x512xf32>
    %46 = arith.mulf %37, %37 : vector<128x512xf32>
    %cst_25 = arith.constant 5.000000e-01 : f32
    %47 = vector.broadcast %cst_25 : f32 to vector<128x512xf32>
    %48 = arith.mulf %47, %37 : vector<128x512xf32>
    %cst_26 = arith.constant 1.000000e+00 : f32
    %49 = vector.broadcast %cst_26 : f32 to vector<128x512xf32>
    %50 = arith.subf %48, %49 : vector<128x512xf32>
    %51 = arith.mulf %46, %50 : vector<128x512xf32>
    %cst_27 = arith.constant 0.666666686 : f32
    %52 = vector.broadcast %cst_27 : f32 to vector<128x512xf32>
    %53 = arith.addf %51, %52 : vector<128x512xf32>
    %cst_28 = arith.constant 1.000000e+00 : f32
    %54 = vector.broadcast %cst_28 : f32 to vector<128x512xf32>
    %55 = arith.cmpf ole, %37, %54 : vector<128x512xf32>
    %56 = arith.select %55, %53, %45 : vector<128x512xi1>, vector<128x512xf32>
    %57 = arith.truncf %56 : vector<128x512xf32> to vector<128x512xbf16>
    %58 = tpu.concatenate %30, %57 in 1 : vector<128x64xbf16>, vector<128x512xbf16> -> vector<128x576xbf16>
    %c0_29 = arith.constant 0 : index
    %c0_30 = arith.constant 0 : index
    %59 = vector.load %arg9[%c0_29, %c0_30] : memref<576x64xbf16, #tpu.memory_space<vmem>>, vector<576x64xbf16>
    %cst_31 = arith.constant dense<0.000000e+00> : vector<128x64xf32>
    %60 = tpu.matmul %58, %59, %cst_31 {dimension_numbers = #tpu.dot_dimension_numbers<[1], [0], [0], [1], [0, 0, 1, 1], [], []>} : vector<128x576xbf16>, vector<576x64xbf16>, vector<128x64xf32> -> vector<128x64xf32>
    %61 = arith.truncf %60 : vector<128x64xf32> to vector<128x64xbf16>
    %c0_32 = arith.constant 0 : index
    %c0_33 = arith.constant 0 : index
    %62 = vector.load %arg10[%c0_32, %c0_33] : memref<64x128xbf16, #tpu.memory_space<vmem>>, vector<64x128xbf16>
    %cst_34 = arith.constant dense<0.000000e+00> : vector<128x128xf32>
    %63 = tpu.matmul %61, %62, %cst_34 {dimension_numbers = #tpu.dot_dimension_numbers<[1], [0], [0], [1], [0, 0, 1, 1], [], []>} : vector<128x64xbf16>, vector<64x128xbf16>, vector<128x128xf32> -> vector<128x128xf32>
    %c0_35 = arith.constant 0 : index
    %c0_36 = arith.constant 0 : index
    %64 = vector.load %arg11[%c0_35, %c0_36] : memref<1x128xf32, #tpu.memory_space<vmem>>, vector<1x128xf32>
    %65 = vector.broadcast %64 : vector<1x128xf32> to vector<128x128xf32>
    %66 = arith.addf %63, %65 : vector<128x128xf32>
    %cst_37 = arith.constant 0.000000e+00 : f32
    %67 = vector.broadcast %cst_37 : f32 to vector<128x128xf32>
    %68 = arith.maximumf %66, %67 : vector<128x128xf32>
    %69 = arith.truncf %68 : vector<128x128xf32> to vector<128x128xbf16>
    %c0_38 = arith.constant 0 : index
    %c0_39 = arith.constant 0 : index
    %70 = vector.load %arg12[%c0_38, %c0_39] : memref<128x128xbf16, #tpu.memory_space<vmem>>, vector<128x128xbf16>
    %cst_40 = arith.constant dense<0.000000e+00> : vector<128x128xf32>
    %71 = tpu.matmul %69, %70, %cst_40 {dimension_numbers = #tpu.dot_dimension_numbers<[1], [0], [0], [1], [0, 0, 1, 1], [], []>} : vector<128x128xbf16>, vector<128x128xbf16>, vector<128x128xf32> -> vector<128x128xf32>
    %c0_41 = arith.constant 0 : index
    %c0_42 = arith.constant 0 : index
    %72 = vector.load %arg13[%c0_41, %c0_42] : memref<1x128xf32, #tpu.memory_space<vmem>>, vector<1x128xf32>
    %73 = vector.broadcast %72 : vector<1x128xf32> to vector<128x128xf32>
    %74 = arith.addf %71, %73 : vector<128x128xf32>
    %75 = arith.truncf %74 : vector<128x128xf32> to vector<128x128xbf16>
    %c0_43 = arith.constant 0 : index
    %c0_44 = arith.constant 0 : index
    %76 = vector.load %arg14[%c0_43, %c0_44] : memref<128x128xbf16, #tpu.memory_space<vmem>>, vector<128x128xbf16>
    tpu.vector_store %arg14[%c0_43, %c0_44], %75 {strides = array<i32>} : memref<128x128xbf16, #tpu.memory_space<vmem>>, vector<128x128xbf16>,
    return
  }
  func.func @transform_0(%arg0: i32) -> (i32, i32) {
    %c0_i32 = arith.constant 0 : i32
    %c0_i32_0 = arith.constant 0 : i32
    return %arg0, %c0_i32 : i32, i32
  }
  func.func @transform_1(%arg0: i32) -> (i32, i32) {
    %c0_i32 = arith.constant 0 : i32
    %c0_i32_0 = arith.constant 0 : i32
    %c0_i32_1 = arith.constant 0 : i32
    return %c0_i32, %c0_i32_0 : i32, i32
  }
  func.func @transform_2(%arg0: i32) -> (i32, i32) {
    %c0_i32 = arith.constant 0 : i32
    %c0_i32_0 = arith.constant 0 : i32
    %c0_i32_1 = arith.constant 0 : i32
    return %c0_i32, %c0_i32_0 : i32, i32
  }
  func.func @transform_3(%arg0: i32) -> (i32, i32) {
    %c0_i32 = arith.constant 0 : i32
    %c0_i32_0 = arith.constant 0 : i32
    %c0_i32_1 = arith.constant 0 : i32
    return %c0_i32, %c0_i32_0 : i32, i32
  }
  func.func @transform_4(%arg0: i32) -> (i32, i32) {
    %c0_i32 = arith.constant 0 : i32
    %c0_i32_0 = arith.constant 0 : i32
    %c0_i32_1 = arith.constant 0 : i32
    return %c0_i32, %c0_i32_0 : i32, i32
  }
  func.func @transform_5(%arg0: i32) -> (i32, i32) {
    %c0_i32 = arith.constant 0 : i32
    %c0_i32_0 = arith.constant 0 : i32
    %c0_i32_1 = arith.constant 0 : i32
    return %c0_i32, %c0_i32_0 : i32, i32
  }
  func.func @transform_6(%arg0: i32) -> (i32, i32) {
    %c0_i32 = arith.constant 0 : i32
    %c0_i32_0 = arith.constant 0 : i32
    %c0_i32_1 = arith.constant 0 : i32
    return %c0_i32, %c0_i32_0 : i32, i32
  }
  func.func @transform_7(%arg0: i32) -> (i32, i32) {
    %c0_i32 = arith.constant 0 : i32
    %c0_i32_0 = arith.constant 0 : i32
    %c0_i32_1 = arith.constant 0 : i32
    return %c0_i32, %c0_i32_0 : i32, i32
  }
  func.func @transform_8(%arg0: i32) -> (i32, i32) {
    %c0_i32 = arith.constant 0 : i32
    %c0_i32_0 = arith.constant 0 : i32
    %c0_i32_1 = arith.constant 0 : i32
    return %c0_i32, %c0_i32_0 : i32, i32
  }
  func.func @transform_9(%arg0: i32) -> (i32, i32) {
    %c0_i32 = arith.constant 0 : i32
    %c0_i32_0 = arith.constant 0 : i32
    %c0_i32_1 = arith.constant 0 : i32
    return %c0_i32, %c0_i32_0 : i32, i32
  }
  func.func @transform_10(%arg0: i32) -> (i32, i32) {
    %c0_i32 = arith.constant 0 : i32
    %c0_i32_0 = arith.constant 0 : i32
    %c0_i32_1 = arith.constant 0 : i32
    return %c0_i32, %c0_i32_0 : i32, i32
  }
  func.func @transform_11(%arg0: i32) -> (i32, i32) {
    %c0_i32 = arith.constant 0 : i32
    %c0_i32_0 = arith.constant 0 : i32
    %c0_i32_1 = arith.constant 0 : i32
    return %c0_i32, %c0_i32_0 : i32, i32
  }
  func.func @transform_12(%arg0: i32) -> (i32, i32) {
    %c0_i32 = arith.constant 0 : i32
    %c0_i32_0 = arith.constant 0 : i32
    %c0_i32_1 = arith.constant 0 : i32
    return %c0_i32, %c0_i32_0 : i32, i32
  }
  func.func @transform_13(%arg0: i32) -> (i32, i32) {
    %c0_i32 = arith.constant 0 : i32
    %c0_i32_0 = arith.constant 0 : i32
    return %arg0, %c0_i32 : i32, i32
  }
}

</mosaic_0001>

<llo_original>
// kernel: tpu_custom_call.1
$region0: #{tpu_custom_call.1}
  #allocation0 [shape = 'u32[]', space=smem, size = 0x4, offset = 0x4, fixed_abs, tag = 'smem constant byte address 0x4 - core index']
  #allocation1 [shape = 'u32[144,128]{1,0:T(1,128)}', space=vmem, size = 0x12000, scoped, tag = 'internal scratch']
  %s0 = inlined_call_operand.hbm [shape: f32[128,64], index: 0, kind: input, shape index: {}]
  %s1 = inlined_call_operand.hbm [shape: f32[1,512], index: 1, kind: input, shape index: {}]
  %s2 = inlined_call_operand.hbm [shape: bf16[64,128], index: 2, kind: input, shape index: {}]
  %s3 = inlined_call_operand.hbm [shape: f32[1,128], index: 3, kind: input, shape index: {}]
  %s4 = inlined_call_operand.hbm [shape: bf16[128,64], index: 4, kind: input, shape index: {}]
  %s5 = inlined_call_operand.hbm [shape: f32[1,64], index: 5, kind: input, shape index: {}]
  %s6 = inlined_call_operand.hbm [shape: bf16[64,64], index: 6, kind: input, shape index: {}]
  %s7 = inlined_call_operand.hbm [shape: f32[1,64], index: 7, kind: input, shape index: {}]
  %s8 = inlined_call_operand.hbm [shape: bf16[576,64], index: 8, kind: input, shape index: {}]
  %s9 = inlined_call_operand.hbm [shape: bf16[64,128], index: 9, kind: input, shape index: {}]
  %s10 = inlined_call_operand.hbm [shape: f32[1,128], index: 10, kind: input, shape index: {}]
  %s11 = inlined_call_operand.hbm [shape: bf16[128,128], index: 11, kind: input, shape index: {}]
  %s12 = inlined_call_operand.hbm [shape: f32[1,128], index: 12, kind: input, shape index: {}]
  %s13 = inlined_call_operand.hbm [shape: bf16[128,128], index: 13, kind: output, shape index: {}]
  %s14 = sld [smem:[#allocation0]]
  $region114: #{tpu_custom_call.1} parent=0
    _
  %s16 = ssub.s32 1, %s14
  %s17 = scalar_select 0, %s16, %s14
  $region1: #{tpu_custom_call.1} parent=0
    #allocation2 [shape = 'u8[65536]{0}', space=vmem, size = 0x10000, scoped, tag = 'input window, operand 0, single buffered']
    #allocation3 [shape = 's32[1]{0}', space=sflag, size = 0x4, scoped, tag = 'scoped memory for tpu_custom_call.1']
    #allocation4 [shape = 's32[1]{0}', space=sflag, size = 0x4, scoped, tag = 'scoped memory for tpu_custom_call.1']
    #allocation5 [shape = 'u8[2048]{0}', space=vmem, size = 0x800, scoped, tag = 'input window, operand 1, single buffered']
    #allocation6 [shape = 's32[1]{0}', space=sflag, size = 0x4, scoped, tag = 'scoped memory for tpu_custom_call.1']
    #allocation7 [shape = 'u8[16384]{0}', space=vmem, size = 0x4000, scoped, tag = 'input window, operand 2, single buffered']
    #allocation8 [shape = 'u8[512]{0}', space=vmem, size = 0x400, scoped, tag = 'input window, operand 3, single buffered']
    #allocation9 [shape = 's32[1]{0}', space=sflag, size = 0x4, scoped, tag = 'scoped memory for tpu_custom_call.1']
    #allocation10 [shape = 'u8[32768]{0}', space=vmem, size = 0x8000, scoped, tag = 'input window, operand 4, single buffered']
    #allocation11 [shape = 'u8[512]{0}', space=vmem, size = 0x400, scoped, tag = 'input window, operand 5, single buffered']
    #allocation12 [shape = 's32[1]{0}', space=sflag, size = 0x4, scoped, tag = 'scoped memory for tpu_custom_call.1']
    #allocation13 [shape = 'u8[16384]{0}', space=vmem, size = 0x4000, scoped, tag = 'input window, operand 6, single buffered']
    #allocation14 [shape = 'u8[512]{0}', space=vmem, size = 0x400, scoped, tag = 'input window, operand 7, single buffered']
    #allocation15 [shape = 's32[1]{0}', space=sflag, size = 0x4, scoped, tag = 'scoped memory for tpu_custom_call.1']
    #allocation16 [shape = 'u8[147456]{0}', space=vmem, size = 0x24000, scoped, tag = 'input window, operand 8, single buffered']
    #allocation17 [shape = 'u8[16384]{0}', space=vmem, size = 0x4000, scoped, tag = 'input window, operand 9, single buffered']
    #allocation18 [shape = 's32[1]{0}', space=sflag, size = 0x4, scoped, tag = 'scoped memory for tpu_custom_call.1']
    #allocation19 [shape = 'u8[512]{0}', space=vmem, size = 0x400, scoped, tag = 'input window, operand 10, single buffered']
    #allocation20 [shape = 'u8[32768]{0}', space=vmem, size = 0x8000, scoped, tag = 'input window, operand 11, single buffered']
    #allocation21 [shape = 's32[1]{0}', space=sflag, size = 0x4, scoped, tag = 'scoped memory for tpu_custom_call.1']
    #allocation22 [shape = 'u8[512]{0}', space=vmem, size = 0x400, scoped, tag = 'input window, operand 12, single buffered']
    #allocation23 [shape = 'u8[32768]{0}', space=vmem, size = 0x8000, scoped, tag = 'output window, operand 0, single buffered']
    %18 = vsyncpa [#allocation3], 0
    %19 = vsyncpa [#allocation6], 0
    %20 = vsyncpa [#allocation9], 0
    %21 = vsyncpa [#allocation12], 0
    %22 = vsyncpa [#allocation15], 0
    %23 = vsyncpa [#allocation18], 0
    %24 = vsyncpa [#allocation21], 0
    %25 = vsyncpa [#allocation4], 0
    // Predicated region
    $region2: #{tpu_custom_call.1} parent=1 // pred_check
      _
    $region3: #{tpu_custom_call.1} parent=1 // pred_check_branch
      %27 = sbr.rel (0) target = $region5
    $region4: #{tpu_custom_call.1} parent=1 // pred_region
      %s29 = ssub.s32 2048, 2048
      %30 = vsyncadd [#allocation3], %s29
      %s31 = sshll.u32 [#allocation2], 4
      %s32 = int_to_ptr.vmem [resolvable:$true] %s31
      %37 = dma.hbm_to_vmem [thread:$0]  %s0, 2048, %s32, [#allocation3], 128, 128, 8
    $region5: #{tpu_custom_call.1} parent=1 // pred_fallthru
      _
    // Predicated region
    $region6: #{tpu_custom_call.1} parent=1 // pred_check
      _
    $region7: #{tpu_custom_call.1} parent=1 // pred_check_branch
      %39 = sbr.rel (0) target = $region9
    $region8: #{tpu_custom_call.1} parent=1 // pred_region
      %s41 = ssub.s32 64, 64
      %42 = vsyncadd [#allocation6], %s41
      %s44 = sshll.u32 [#allocation5], 4
      %s45 = int_to_ptr.vmem [resolvable:$true] %s44
      %47 = dma.hbm_to_vmem [thread:$0]  %s1, 64, %s45, [#allocation6]
    $region9: #{tpu_custom_call.1} parent=1 // pred_fallthru
      _
    // Predicated region
    $region10: #{tpu_custom_call.1} parent=1 // pred_check
      _
    $region11: #{tpu_custom_call.1} parent=1 // pred_check_branch
      %49 = sbr.rel (0) target = $region13
    $region12: #{tpu_custom_call.1} parent=1 // pred_region
      %s51 = ssub.s32 512, 512
      %52 = vsyncadd [#allocation6], %s51
      %s53 = sshll.u32 [#allocation7], 4
      %s54 = int_to_ptr.vmem [resolvable:$true] %s53
      %59 = dma.hbm_to_vmem [thread:$0]  %s2, 512, %s54, [#allocation6], 64, 64, 4
    $region13: #{tpu_custom_call.1} parent=1 // pred_fallthru
      _
    // Predicated region
    $region14: #{tpu_custom_call.1} parent=1 // pred_check
      _
    $region15: #{tpu_custom_call.1} parent=1 // pred_check_branch
      %61 = sbr.rel (0) target = $region17
    $region16: #{tpu_custom_call.1} parent=1 // pred_region
      %s63 = ssub.s32 16, 16
      %64 = vsyncadd [#allocation9], %s63
      %s66 = sshll.u32 [#allocation8], 4
      %s67 = int_to_ptr.vmem [resolvable:$true] %s66
      %69 = dma.hbm_to_vmem [thread:$0]  %s3, 16, %s67, [#allocation9]
    $region17: #{tpu_custom_call.1} parent=1 // pred_fallthru
      _
    // Predicated region
    $region18: #{tpu_custom_call.1} parent=1 // pred_check
      _
    $region19: #{tpu_custom_call.1} parent=1 // pred_check_branch
      %71 = sbr.rel (0) target = $region21
    $region20: #{tpu_custom_call.1} parent=1 // pred_region
      %s73 = ssub.s32 1024, 1024
      %74 = vsyncadd [#allocation9], %s73
      %s75 = sshll.u32 [#allocation10], 4
      %s76 = int_to_ptr.vmem [resolvable:$true] %s75
      %81 = dma.hbm_to_vmem [thread:$0]  %s4, 1024, %s76, [#allocation9], 64, 64, 4
    $region21: #{tpu_custom_call.1} parent=1 // pred_fallthru
      _
    // Predicated region
    $region22: #{tpu_custom_call.1} parent=1 // pred_check
      _
    $region23: #{tpu_custom_call.1} parent=1 // pred_check_branch
      %83 = sbr.rel (0) target = $region25
    $region24: #{tpu_custom_call.1} parent=1 // pred_region
      %s85 = ssub.s32 16, 16
      %86 = vsyncadd [#allocation12], %s85
      %s88 = sshll.u32 [#allocation11], 4
      %s89 = int_to_ptr.vmem [resolvable:$true] %s88
      %91 = dma.hbm_to_vmem [thread:$0]  %s5, 16, %s89, [#allocation12]
    $region25: #{tpu_custom_call.1} parent=1 // pred_fallthru
      _
    // Predicated region
    $region26: #{tpu_custom_call.1} parent=1 // pred_check
      _
    $region27: #{tpu_custom_call.1} parent=1 // pred_check_branch
      %93 = sbr.rel (0) target = $region29
    $region28: #{tpu_custom_call.1} parent=1 // pred_region
      %s95 = ssub.s32 512, 512
      %96 = vsyncadd [#allocation12], %s95
      %s97 = sshll.u32 [#allocation13], 4
      %s98 = int_to_ptr.vmem [resolvable:$true] %s97
      %103 = dma.hbm_to_vmem [thread:$0]  %s6, 512, %s98, [#allocation12], 64, 64, 4
    $region29: #{tpu_custom_call.1} parent=1 // pred_fallthru
      _
    // Predicated region
    $region30: #{tpu_custom_call.1} parent=1 // pred_check
      _
    $region31: #{tpu_custom_call.1} parent=1 // pred_check_branch
      %105 = sbr.rel (0) target = $region33
    $region32: #{tpu_custom_call.1} parent=1 // pred_region
      %s107 = ssub.s32 16, 16
      %108 = vsyncadd [#allocation15], %s107
      %s110 = sshll.u32 [#allocation14], 4
      %s111 = int_to_ptr.vmem [resolvable:$true] %s110
      %113 = dma.hbm_to_vmem [thread:$0]  %s7, 16, %s111, [#allocation15]
    $region33: #{tpu_custom_call.1} parent=1 // pred_fallthru
      _
    // Predicated region
    $region34: #{tpu_custom_call.1} parent=1 // pred_check
      _
    $region35: #{tpu_custom_call.1} parent=1 // pred_check_branch
      %115 = sbr.rel (0) target = $region37
    $region36: #{tpu_custom_call.1} parent=1 // pred_region
      %s117 = ssub.s32 4608, 4608
      %118 = vsyncadd [#allocation15], %s117
      %s119 = sshll.u32 [#allocation16], 4
      %s120 = int_to_ptr.vmem [resolvable:$true] %s119
      %125 = dma.hbm_to_vmem [thread:$0]  %s8, 4608, %s120, [#allocation15], 64, 64, 4
    $region37: #{tpu_custom_call.1} parent=1 // pred_fallthru
      _
    // Predicated region
    $region38: #{tpu_custom_call.1} parent=1 // pred_check
      _
    $region39: #{tpu_custom_call.1} parent=1 // pred_check_branch
      %127 = sbr.rel (0) target = $region41
    $region40: #{tpu_custom_call.1} parent=1 // pred_region
      %s129 = ssub.s32 512, 512
      %130 = vsyncadd [#allocation18], %s129
      %s131 = sshll.u32 [#allocation17], 4
      %s132 = int_to_ptr.vmem [resolvable:$true] %s131
      %137 = dma.hbm_to_vmem [thread:$0]  %s9, 512, %s132, [#allocation18], 64, 64, 4
    $region41: #{tpu_custom_call.1} parent=1 // pred_fallthru
      _
    // Predicated region
    $region42: #{tpu_custom_call.1} parent=1 // pred_check
      _
    $region43: #{tpu_custom_call.1} parent=1 // pred_check_branch
      %139 = sbr.rel (0) target = $region45
    $region44: #{tpu_custom_call.1} parent=1 // pred_region
      %s141 = ssub.s32 16, 16
      %142 = vsyncadd [#allocation18], %s141
      %s144 = sshll.u32 [#allocation19], 4
      %s145 = int_to_ptr.vmem [resolvable:$true] %s144
      %147 = dma.hbm_to_vmem [thread:$0]  %s10, 16, %s145, [#allocation18]
    $region45: #{tpu_custom_call.1} parent=1 // pred_fallthru
      _
    // Predicated region
    $region46: #{tpu_custom_call.1} parent=1 // pred_check
      _
    $region47: #{tpu_custom_call.1} parent=1 // pred_check_branch
      %149 = sbr.rel (0) target = $region49
    $region48: #{tpu_custom_call.1} parent=1 // pred_region
      %s151 = ssub.s32 1024, 1024
      %152 = vsyncadd [#allocation21], %s151
      %s153 = sshll.u32 [#allocation20], 4
      %s154 = int_to_ptr.vmem [resolvable:$true] %s153
      %159 = dma.hbm_to_vmem [thread:$0]  %s11, 1024, %s154, [#allocation21], 64, 64, 4
    $region49: #{tpu_custom_call.1} parent=1 // pred_fallthru
      _
    // Predicated region
    $region50: #{tpu_custom_call.1} parent=1 // pred_check
      _
    $region51: #{tpu_custom_call.1} parent=1 // pred_check_branch
      %161 = sbr.rel (0) target = $region53
    $region52: #{tpu_custom_call.1} parent=1 // pred_region
      %s163 = ssub.s32 16, 16
      %164 = vsyncadd [#allocation21], %s163
      %s166 = sshll.u32 [#allocation22], 4
      %s167 = int_to_ptr.vmem [resolvable:$true] %s166
      %169 = dma.hbm_to_vmem [thread:$0]  %s12, 16, %s167, [#allocation21]
    $region53: #{tpu_custom_call.1} parent=1 // pred_fallthru
      _
    // Predicated region
    $region54: #{tpu_custom_call.1} parent=1 // pred_check
      _
    $region55: #{tpu_custom_call.1} parent=1 // pred_check_branch
      %171 = sbr.rel (0) target = $region57
    $region56: #{tpu_custom_call.1} parent=1 // pred_region
      %172 = dma.done [#allocation3], 2048
    $region57: #{tpu_custom_call.1} parent=1 // pred_fallthru
      _
    // Predicated region
    $region58: #{tpu_custom_call.1} parent=1 // pred_check
      _
    $region59: #{tpu_custom_call.1} parent=1 // pred_check_branch
      %174 = sbr.rel (0) target = $region61
    $region60: #{tpu_custom_call.1} parent=1 // pred_region
      %175 = dma.done [#allocation6], 64
    $region61: #{tpu_custom_call.1} parent=1 // pred_fallthru
      _
    // Predicated region
    $region62: #{tpu_custom_call.1} parent=1 // pred_check
      _
    $region63: #{tpu_custom_call.1} parent=1 // pred_check_branch
      %177 = sbr.rel (0) target = $region65
    $region64: #{tpu_custom_call.1} parent=1 // pred_region
      %178 = dma.done [#allocation6], 512
    $region65: #{tpu_custom_call.1} parent=1 // pred_fallthru
      _
    // Predicated region
    $region66: #{tpu_custom_call.1} parent=1 // pred_check
      _
    $region67: #{tpu_custom_call.1} parent=1 // pred_check_branch
      %180 = sbr.rel (0) target = $region69
    $region68: #{tpu_custom_call.1} parent=1 // pred_region
      %181 = dma.done [#allocation9], 16
    $region69: #{tpu_custom_call.1} parent=1 // pred_fallthru
      _
    // Predicated region
    $region70: #{tpu_custom_call.1} parent=1 // pred_check
      _
    $region71: #{tpu_custom_call.1} parent=1 // pred_check_branch
      %183 = sbr.rel (0) target = $region73
    $region72: #{tpu_custom_call.1} parent=1 // pred_region
      %184 = dma.done [#allocation9], 1024
    $region73: #{tpu_custom_call.1} parent=1 // pred_fallthru
      _
    // Predicated region
    $region74: #{tpu_custom_call.1} parent=1 // pred_check
      _
    $region75: #{tpu_custom_call.1} parent=1 // pred_check_branch
      %186 = sbr.rel (0) target = $region77
    $region76: #{tpu_custom_call.1} parent=1 // pred_region
      %187 = dma.done [#allocation12], 16
    $region77: #{tpu_custom_call.1} parent=1 // pred_fallthru
      _
    // Predicated region
    $region78: #{tpu_custom_call.1} parent=1 // pred_check
      _
    $region79: #{tpu_custom_call.1} parent=1 // pred_check_branch
      %189 = sbr.rel (0) target = $region81
    $region80: #{tpu_custom_call.1} parent=1 // pred_region
      %190 = dma.done [#allocation12], 512
    $region81: #{tpu_custom_call.1} parent=1 // pred_fallthru
      _
    // Predicated region
    $region82: #{tpu_custom_call.1} parent=1 // pred_check
      _
    $region83: #{tpu_custom_call.1} parent=1 // pred_check_branch
      %192 = sbr.rel (0) target = $region85
    $region84: #{tpu_custom_call.1} parent=1 // pred_region
      %193 = dma.done [#allocation15], 16
    $region85: #{tpu_custom_call.1} parent=1 // pred_fallthru
      _
    // Predicated region
    $region86: #{tpu_custom_call.1} parent=1 // pred_check
      _
    $region87: #{tpu_custom_call.1} parent=1 // pred_check_branch
      %195 = sbr.rel (0) target = $region89
    $region88: #{tpu_custom_call.1} parent=1 // pred_region
      %196 = dma.done [#allocation15], 4608
    $region89: #{tpu_custom_call.1} parent=1 // pred_fallthru
      _
    // Predicated region
    $region90: #{tpu_custom_call.1} parent=1 // pred_check
      _
    $region91: #{tpu_custom_call.1} parent=1 // pred_check_branch
      %198 = sbr.rel (0) target = $region93
    $region92: #{tpu_custom_call.1} parent=1 // pred_region
      %199 = dma.done [#allocation18], 512
    $region93: #{tpu_custom_call.1} parent=1 // pred_fallthru
      _
    // Predicated region
    $region94: #{tpu_custom_call.1} parent=1 // pred_check
      _
    $region95: #{tpu_custom_call.1} parent=1 // pred_check_branch
      %201 = sbr.rel (0) target = $region97
    $region96: #{tpu_custom_call.1} parent=1 // pred_region
      %202 = dma.done [#allocation18], 16
    $region97: #{tpu_custom_call.1} parent=1 // pred_fallthru
      _
    // Predicated region
    $region98: #{tpu_custom_call.1} parent=1 // pred_check
      _
    $region99: #{tpu_custom_call.1} parent=1 // pred_check_branch
      %204 = sbr.rel (0) target = $region101
    $region100: #{tpu_custom_call.1} parent=1 // pred_region
      %205 = dma.done [#allocation21], 1024
    $region101: #{tpu_custom_call.1} parent=1 // pred_fallthru
      _
    // Predicated region
    $region102: #{tpu_custom_call.1} parent=1 // pred_check
      _
    $region103: #{tpu_custom_call.1} parent=1 // pred_check_branch
      %207 = sbr.rel (0) target = $region105
    $region104: #{tpu_custom_call.1} parent=1 // pred_region
      %208 = dma.done [#allocation21], 16
    $region105: #{tpu_custom_call.1} parent=1 // pred_fallthru
      _
    %v210 = vld [vmem:[#allocation2] sm:$0xff]
    %v211 = vld [vmem:[#allocation2 + $0x8] sm:$0xff]
    %v212 = vld [vmem:[#allocation2 + $0x10] sm:$0xff]
    %v213 = vld [vmem:[#allocation2 + $0x18] sm:$0xff]
    %v214 = vld [vmem:[#allocation2 + $0x20] sm:$0xff]
    %v215 = vld [vmem:[#allocation2 + $0x28] sm:$0xff]
    %v216 = vld [vmem:[#allocation2 + $0x30] sm:$0xff]
    %v217 = vld [vmem:[#allocation2 + $0x38] sm:$0xff]
    %v218 = vld [vmem:[#allocation2 + $0x40] sm:$0xff]
    %v219 = vld [vmem:[#allocation2 + $0x48] sm:$0xff]
    %v220 = vld [vmem:[#allocation2 + $0x50] sm:$0xff]
    %v221 = vld [vmem:[#allocation2 + $0x58] sm:$0xff]
    %v222 = vld [vmem:[#allocation2 + $0x60] sm:$0xff]
    %v223 = vld [vmem:[#allocation2 + $0x68] sm:$0xff]
    %v224 = vld [vmem:[#allocation2 + $0x70] sm:$0xff]
    %v225 = vld [vmem:[#allocation2 + $0x78] sm:$0xff]
    %v226 = vpack.c.bf16 %v211, %v210
    %v227 = vpack.c.bf16 %v213, %v212
    %v228 = vpack.c.bf16 %v215, %v214
    %v229 = vpack.c.bf16 %v217, %v216
    %v230 = vpack.c.bf16 %v219, %v218
    %v231 = vpack.c.bf16 %v221, %v220
    %v232 = vpack.c.bf16 %v223, %v222
    %v233 = vpack.c.bf16 %v225, %v224
    %v234 = vld [vmem:[#allocation7] sm:$0xf]
    %v235 = vld [vmem:[#allocation7 + $0x4] sm:$0xf]
    %v236 = vld [vmem:[#allocation7 + $0x8] sm:$0xf]
    %v237 = vld [vmem:[#allocation7 + $0xc] sm:$0xf]
    %v238 = vld [vmem:[#allocation7 + $0x10] sm:$0xf]
    %v239 = vld [vmem:[#allocation7 + $0x14] sm:$0xf]
    %v240 = vld [vmem:[#allocation7 + $0x18] sm:$0xf]
    %v241 = vld [vmem:[#allocation7 + $0x1c] sm:$0xf]
    %v242 = vld [vmem:[#allocation8] sm:$0x1]
    %v244 = vlaneseq
    %v245 = vshrl.u32 %v244, 7
    %v246 = vsub.s32 0, %v245
    %v247 = vrot.slane %v242, %v246
    %v257 = vunpack.c.l.b16 %v234
    %v258 = vunpack.c.l.b16 %v235
    %v259 = vunpack.c.l.b16 %v236
    %v260 = vunpack.c.l.b16 %v237
    %v261 = vunpack.c.l.b16 %v238
    %v262 = vunpack.c.l.b16 %v239
    %v263 = vunpack.c.l.b16 %v240
    %v264 = vunpack.c.l.b16 %v241
    %v265 = vpack.c.b16 %v258, %v257
    %v266 = vpack.c.b16 %v260, %v259
    %v267 = vpack.c.b16 %v262, %v261
    %v268 = vpack.c.b16 %v264, %v263
    %vm273 = vcmask 523264
    %v275 = vsel %vm273, %v226, 0
    %v278 = vsel %vm273, %v227, 0
    %v281 = vsel %vm273, %v228, 0
    %v284 = vsel %vm273, %v229, 0
    %v287 = vsel %vm273, %v230, 0
    %v290 = vsel %vm273, %v231, 0
    %v293 = vsel %vm273, %v232, 0
    %v296 = vsel %vm273, %v233, 0
    %298 = vmatprep.subr.bf16.mxu0 0
    %299 = vmatpush1.bf16.msra.mxu0 %v265
    %300 = vmatprep.subr.bf16.mxu0 0
    %301 = vmatpush1.bf16.msra.mxu0 %v266
    %302 = vmatprep.subr.bf16.mxu0 0
    %303 = vmatpush1.bf16.msra.mxu0 %v267
    %304 = vmatprep.subr.bf16.mxu0 0
    %305 = vmatpush1.bf16.msra.mxu0 %v268
    %306 = vmatprep.subr.bf16.mxu0 0
    %307 = vmatpush1.bf16.msra.mxu0 0
    %308 = vmatprep.subr.bf16.mxu0 0
    %309 = vmatpush1.bf16.msra.mxu0 0
    %310 = vmatprep.subr.bf16.mxu0 0
    %311 = vmatpush1.bf16.msra.mxu0 0
    %312 = vmatprep.subr.bf16.mxu0 0
    %313 = vmatpush1.bf16.msra.mxu0 0
    %314 = vmatprep.subr.bf16.mxu0 0
    %315 = vmatpush1.bf16.msra.mxu0 0
    %316 = vmatprep.subr.bf16.mxu0 0
    %317 = vmatpush1.bf16.msra.mxu0 0
    %318 = vmatprep.subr.bf16.mxu0 0
    %319 = vmatpush1.bf16.msra.mxu0 0
    %320 = vmatprep.subr.bf16.mxu0 0
    %321 = vmatpush1.bf16.msra.mxu0 0
    %322 = vmatprep.subr.bf16.mxu0 0
    %323 = vmatpush1.bf16.msra.mxu0 0
    %324 = vmatprep.subr.bf16.mxu0 0
    %325 = vmatpush1.bf16.msra.mxu0 0
    %326 = vmatprep.subr.bf16.mxu0 0
    %327 = vmatpush1.bf16.msra.mxu0 0
    %328 = vmatprep.subr.bf16.mxu0 0
    %329 = vmatpush1.bf16.msra.mxu0 0
    %330 = vmatprep.mubr.bf16.mxu0 0
    %331 = vmatmul.mubr.bf16.gmra.mrb[0].mxu0 %v275
    %v332 = vpop.f32.mrb[0].mxu0
    %v333 = vadd.f32 %v247, %v332
    %v334 = vpop.f32.mrb[0].mxu0
    %v335 = vpop.f32.mrb[0].mxu0
    %v336 = vadd.f32 %v247, %v335
    %v337 = vpop.f32.mrb[0].mxu0
    %338 = vmatprep.mubr.bf16.mxu0 0
    %339 = vmatmul.mubr.bf16.gmra.mrb[0].mxu0 %v278
    %v340 = vpop.f32.mrb[0].mxu0
    %v341 = vadd.f32 %v247, %v340
    %v342 = vpop.f32.mrb[0].mxu0
    %v343 = vpop.f32.mrb[0].mxu0
    %v344 = vadd.f32 %v247, %v343
    %v345 = vpop.f32.mrb[0].mxu0
    %346 = vmatprep.mubr.bf16.mxu0 0
    %347 = vmatmul.mubr.bf16.gmra.mrb[0].mxu0 %v281
    %v348 = vpop.f32.mrb[0].mxu0
    %v349 = vadd.f32 %v247, %v348
    %v350 = vpop.f32.mrb[0].mxu0
    %v351 = vpop.f32.mrb[0].mxu0
    %v352 = vadd.f32 %v247, %v351
    %v353 = vpop.f32.mrb[0].mxu0
    %354 = vmatprep.mubr.bf16.mxu0 0
    %355 = vmatmul.mubr.bf16.gmra.mrb[0].mxu0 %v284
    %v356 = vpop.f32.mrb[0].mxu0
    %v357 = vadd.f32 %v247, %v356
    %v358 = vpop.f32.mrb[0].mxu0
    %v359 = vpop.f32.mrb[0].mxu0
    %v360 = vadd.f32 %v247, %v359
    %v361 = vpop.f32.mrb[0].mxu0
    %362 = vmatprep.mubr.bf16.mxu0 0
    %363 = vmatmul.mubr.bf16.gmra.mrb[0].mxu0 %v287
    %v364 = vpop.f32.mrb[0].mxu0
    %v365 = vadd.f32 %v247, %v364
    %v366 = vpop.f32.mrb[0].mxu0
    %v367 = vpop.f32.mrb[0].mxu0
    %v368 = vadd.f32 %v247, %v367
    %v369 = vpop.f32.mrb[0].mxu0
    %370 = vmatprep.mubr.bf16.mxu0 0
    %371 = vmatmul.mubr.bf16.gmra.mrb[0].mxu0 %v290
    %v372 = vpop.f32.mrb[0].mxu0
    %v373 = vadd.f32 %v247, %v372
    %v374 = vpop.f32.mrb[0].mxu0
    %v375 = vpop.f32.mrb[0].mxu0
    %v376 = vadd.f32 %v247, %v375
    %v377 = vpop.f32.mrb[0].mxu0
    %378 = vmatprep.mubr.bf16.mxu0 0
    %379 = vmatmul.mubr.bf16.gmra.mrb[0].mxu0 %v293
    %v380 = vpop.f32.mrb[0].mxu0
    %v381 = vadd.f32 %v247, %v380
    %v382 = vpop.f32.mrb[0].mxu0
    %v383 = vpop.f32.mrb[0].mxu0
    %v384 = vadd.f32 %v247, %v383
    %v385 = vpop.f32.mrb[0].mxu0
    %386 = vmatprep.mubr.bf16.mxu0 0
    %387 = vmatmul.mubr.bf16.gmra.mrb[0].mxu0 %v296
    %v388 = vpop.f32.mrb[0].mxu0
    %v389 = vadd.f32 %v247, %v388
    %v390 = vpop.f32.mrb[0].mxu0
    %v391 = vpop.f32.mrb[0].mxu0
    %v392 = vadd.f32 %v247, %v391
    %v393 = vpop.f32.mrb[0].mxu0
    %394 = vdwg.mxu0
    %v395 = vmax.f32 %v333, 0.0
    %v396 = vmax.f32 %v336, 0.0
    %v397 = vmax.f32 %v341, 0.0
    %v398 = vmax.f32 %v344, 0.0
    %v399 = vmax.f32 %v349, 0.0
    %v400 = vmax.f32 %v352, 0.0
    %v401 = vmax.f32 %v357, 0.0
    %v402 = vmax.f32 %v360, 0.0
    %v403 = vmax.f32 %v365, 0.0
    %v404 = vmax.f32 %v368, 0.0
    %v405 = vmax.f32 %v373, 0.0
    %v406 = vmax.f32 %v376, 0.0
    %v407 = vmax.f32 %v381, 0.0
    %v408 = vmax.f32 %v384, 0.0
    %v409 = vmax.f32 %v389, 0.0
    %v410 = vmax.f32 %v392, 0.0
    %v411 = vpack.c.bf16 %v396, %v395
    %v412 = vpack.c.bf16 %v398, %v397
    %v413 = vpack.c.bf16 %v400, %v399
    %v414 = vpack.c.bf16 %v402, %v401
    %v415 = vpack.c.bf16 %v404, %v403
    %v416 = vpack.c.bf16 %v406, %v405
    %v417 = vpack.c.bf16 %v408, %v407
    %v418 = vpack.c.bf16 %v410, %v409
    %v419 = vld [vmem:[#allocation10] sm:$0xf]
    %v420 = vld [vmem:[#allocation10 + $0x4] sm:$0xf]
    %v421 = vld [vmem:[#allocation10 + $0x8] sm:$0xf]
    %v422 = vld [vmem:[#allocation10 + $0xc] sm:$0xf]
    %v423 = vld [vmem:[#allocation10 + $0x10] sm:$0xf]
    %v424 = vld [vmem:[#allocation10 + $0x14] sm:$0xf]
    %v425 = vld [vmem:[#allocation10 + $0x18] sm:$0xf]
    %v426 = vld [vmem:[#allocation10 + $0x1c] sm:$0xf]
    %v427 = vld [vmem:[#allocation10 + $0x20] sm:$0xf]
    %v428 = vld [vmem:[#allocation10 + $0x24] sm:$0xf]
    %v429 = vld [vmem:[#allocation10 + $0x28] sm:$0xf]
    %v430 = vld [vmem:[#allocation10 + $0x2c] sm:$0xf]
    %v431 = vld [vmem:[#allocation10 + $0x30] sm:$0xf]
    %v432 = vld [vmem:[#allocation10 + $0x34] sm:$0xf]
    %v433 = vld [vmem:[#allocation10 + $0x38] sm:$0xf]
    %v434 = vld [vmem:[#allocation10 + $0x3c] sm:$0xf]
    %v435 = vld [vmem:[#allocation11] sm:$0x1]
    %v437 = vlaneseq
    %v438 = vshrl.u32 %v437, 7
    %v439 = vsub.s32 0, %v438
    %v440 = vrot.slane %v435, %v439
    %v458 = vunpack.c.l.b16 %v419
    %v459 = vunpack.c.l.b16 %v420
    %v460 = vunpack.c.l.b16 %v421
    %v461 = vunpack.c.l.b16 %v422
    %v462 = vunpack.c.l.b16 %v423
    %v463 = vunpack.c.l.b16 %v424
    %v464 = vunpack.c.l.b16 %v425
    %v465 = vunpack.c.l.b16 %v426
    %v466 = vunpack.c.l.b16 %v427
    %v467 = vunpack.c.l.b16 %v428
    %v468 = vunpack.c.l.b16 %v429
    %v469 = vunpack.c.l.b16 %v430
    %v470 = vunpack.c.l.b16 %v431
    %v471 = vunpack.c.l.b16 %v432
    %v472 = vunpack.c.l.b16 %v433
    %v473 = vunpack.c.l.b16 %v434
    %v474 = vpack.c.b16 %v459, %v458
    %v475 = vpack.c.b16 %v461, %v460
    %v476 = vpack.c.b16 %v463, %v462
    %v477 = vpack.c.b16 %v465, %v464
    %v478 = vpack.c.b16 %v467, %v466
    %v479 = vpack.c.b16 %v469, %v468
    %v480 = vpack.c.b16 %v471, %v470
    %v481 = vpack.c.b16 %v473, %v472
    %490 = vmatprep.subr.bf16.mxu0 0
    %491 = vmatpush1.bf16.msra.mxu0 %v474
    %492 = vmatprep.subr.bf16.mxu0 0
    %493 = vmatpush1.bf16.msra.mxu0 %v475
    %494 = vmatprep.subr.bf16.mxu0 0
    %495 = vmatpush1.bf16.msra.mxu0 %v476
    %496 = vmatprep.subr.bf16.mxu0 0
    %497 = vmatpush1.bf16.msra.mxu0 %v477
    %498 = vmatprep.subr.bf16.mxu0 0
    %499 = vmatpush1.bf16.msra.mxu0 %v478
    %500 = vmatprep.subr.bf16.mxu0 0
    %501 = vmatpush1.bf16.msra.mxu0 %v479
    %502 = vmatprep.subr.bf16.mxu0 0
    %503 = vmatpush1.bf16.msra.mxu0 %v480
    %504 = vmatprep.subr.bf16.mxu0 0
    %505 = vmatpush1.bf16.msra.mxu0 %v481
    %506 = vmatprep.subr.bf16.mxu0 0
    %507 = vmatpush1.bf16.msra.mxu0 0
    %508 = vmatprep.subr.bf16.mxu0 0
    %509 = vmatpush1.bf16.msra.mxu0 0
    %510 = vmatprep.subr.bf16.mxu0 0
    %511 = vmatpush1.bf16.msra.mxu0 0
    %512 = vmatprep.subr.bf16.mxu0 0
    %513 = vmatpush1.bf16.msra.mxu0 0
    %514 = vmatprep.subr.bf16.mxu0 0
    %515 = vmatpush1.bf16.msra.mxu0 0
    %516 = vmatprep.subr.bf16.mxu0 0
    %517 = vmatpush1.bf16.msra.mxu0 0
    %518 = vmatprep.subr.bf16.mxu0 0
    %519 = vmatpush1.bf16.msra.mxu0 0
    %520 = vmatprep.subr.bf16.mxu0 0
    %521 = vmatpush1.bf16.msra.mxu0 0
    %522 = vmatprep.mubr.bf16.mxu0 0
    %523 = vmatmul.mubr.bf16.gmra.mrb[0].mxu0 %v411
    %v524 = vpop.f32.mrb[0].mxu0
    %v525 = vadd.f32 %v440, %v524
    %v526 = vpop.f32.mrb[0].mxu0
    %v527 = vpop.f32.mrb[0].mxu0
    %v528 = vadd.f32 %v440, %v527
    %v529 = vpop.f32.mrb[0].mxu0
    %530 = vmatprep.mubr.bf16.mxu0 0
    %531 = vmatmul.mubr.bf16.gmra.mrb[0].mxu0 %v412
    %v532 = vpop.f32.mrb[0].mxu0
    %v533 = vadd.f32 %v440, %v532
    %v534 = vpop.f32.mrb[0].mxu0
    %v535 = vpop.f32.mrb[0].mxu0
    %v536 = vadd.f32 %v440, %v535
    %v537 = vpop.f32.mrb[0].mxu0
    %538 = vmatprep.mubr.bf16.mxu0 0
    %539 = vmatmul.mubr.bf16.gmra.mrb[0].mxu0 %v413
    %v540 = vpop.f32.mrb[0].mxu0
    %v541 = vadd.f32 %v440, %v540
    %v542 = vpop.f32.mrb[0].mxu0
    %v543 = vpop.f32.mrb[0].mxu0
    %v544 = vadd.f32 %v440, %v543
    %v545 = vpop.f32.mrb[0].mxu0
    %546 = vmatprep.mubr.bf16.mxu0 0
    %547 = vmatmul.mubr.bf16.gmra.mrb[0].mxu0 %v414
    %v548 = vpop.f32.mrb[0].mxu0
    %v549 = vadd.f32 %v440, %v548
    %v550 = vpop.f32.mrb[0].mxu0
    %v551 = vpop.f32.mrb[0].mxu0
    %v552 = vadd.f32 %v440, %v551
    %v553 = vpop.f32.mrb[0].mxu0
    %554 = vmatprep.mubr.bf16.mxu0 0
    %555 = vmatmul.mubr.bf16.gmra.mrb[0].mxu0 %v415
    %v556 = vpop.f32.mrb[0].mxu0
    %v557 = vadd.f32 %v440, %v556
    %v558 = vpop.f32.mrb[0].mxu0
    %v559 = vpop.f32.mrb[0].mxu0
    %v560 = vadd.f32 %v440, %v559
    %v561 = vpop.f32.mrb[0].mxu0
    %562 = vmatprep.mubr.bf16.mxu0 0
    %563 = vmatmul.mubr.bf16.gmra.mrb[0].mxu0 %v416
    %v564 = vpop.f32.mrb[0].mxu0
    %v565 = vadd.f32 %v440, %v564
    %v566 = vpop.f32.mrb[0].mxu0
    %v567 = vpop.f32.mrb[0].mxu0
    %v568 = vadd.f32 %v440, %v567
    %v569 = vpop.f32.mrb[0].mxu0
    %570 = vmatprep.mubr.bf16.mxu0 0
    %571 = vmatmul.mubr.bf16.gmra.mrb[0].mxu0 %v417
    %v572 = vpop.f32.mrb[0].mxu0
    %v573 = vadd.f32 %v440, %v572
    %v574 = vpop.f32.mrb[0].mxu0
    %v575 = vpop.f32.mrb[0].mxu0
    %v576 = vadd.f32 %v440, %v575
    %v577 = vpop.f32.mrb[0].mxu0
    %578 = vmatprep.mubr.bf16.mxu0 0
    %579 = vmatmul.mubr.bf16.gmra.mrb[0].mxu0 %v418
    %v580 = vpop.f32.mrb[0].mxu0
    %v581 = vadd.f32 %v440, %v580
    %v582 = vpop.f32.mrb[0].mxu0
    %v583 = vpop.f32.mrb[0].mxu0
    %v584 = vadd.f32 %v440, %v583
    %v585 = vpop.f32.mrb[0].mxu0
    %586 = vdwg.mxu0
    %v587 = vmax.f32 %v525, 0.0
    %v588 = vmax.f32 %v528, 0.0
    %v589 = vmax.f32 %v533, 0.0
    %v590 = vmax.f32 %v536, 0.0
    %v591 = vmax.f32 %v541, 0.0
    %v592 = vmax.f32 %v544, 0.0
    %v593 = vmax.f32 %v549, 0.0
    %v594 = vmax.f32 %v552, 0.0
    %v595 = vmax.f32 %v557, 0.0
    %v596 = vmax.f32 %v560, 0.0
    %v597 = vmax.f32 %v565, 0.0
    %v598 = vmax.f32 %v568, 0.0
    %v599 = vmax.f32 %v573, 0.0
    %v600 = vmax.f32 %v576, 0.0
    %v601 = vmax.f32 %v581, 0.0
    %v602 = vmax.f32 %v584, 0.0
    %v603 = vpack.c.bf16 %v588, %v587
    %v604 = vpack.c.bf16 %v590, %v589
    %v605 = vpack.c.bf16 %v592, %v591
    %v606 = vpack.c.bf16 %v594, %v593
    %v607 = vpack.c.bf16 %v596, %v595
    %v608 = vpack.c.bf16 %v598, %v597
    %v609 = vpack.c.bf16 %v600, %v599
    %v610 = vpack.c.bf16 %v602, %v601
    %v611 = vld [vmem:[#allocation13] sm:$0xf]
    %v612 = vld [vmem:[#allocation13 + $0x4] sm:$0xf]
    %v613 = vld [vmem:[#allocation13 + $0x8] sm:$0xf]
    %v614 = vld [vmem:[#allocation13 + $0xc] sm:$0xf]
    %v615 = vld [vmem:[#allocation13 + $0x10] sm:$0xf]
    %v616 = vld [vmem:[#allocation13 + $0x14] sm:$0xf]
    %v617 = vld [vmem:[#allocation13 + $0x18] sm:$0xf]
    %v618 = vld [vmem:[#allocation13 + $0x1c] sm:$0xf]
    %v619 = vld [vmem:[#allocation14] sm:$0x1]
    %v621 = vlaneseq
    %v622 = vshrl.u32 %v621, 7
    %v623 = vsub.s32 0, %v622
    %v624 = vrot.slane %v619, %v623
    %v634 = vunpack.c.l.b16 %v611
    %v635 = vunpack.c.l.b16 %v612
    %v636 = vunpack.c.l.b16 %v613
    %v637 = vunpack.c.l.b16 %v614
    %v638 = vunpack.c.l.b16 %v615
    %v639 = vunpack.c.l.b16 %v616
    %v640 = vunpack.c.l.b16 %v617
    %v641 = vunpack.c.l.b16 %v618
    %v642 = vpack.c.b16 %v635, %v634
    %v643 = vpack.c.b16 %v637, %v636
    %v644 = vpack.c.b16 %v639, %v638
    %v645 = vpack.c.b16 %v641, %v640
    %v651 = vsel %vm273, %v603, 0
    %v654 = vsel %vm273, %v604, 0
    %v657 = vsel %vm273, %v605, 0
    %v660 = vsel %vm273, %v606, 0
    %v663 = vsel %vm273, %v607, 0
    %v666 = vsel %vm273, %v608, 0
    %v669 = vsel %vm273, %v609, 0
    %v672 = vsel %vm273, %v610, 0
    %674 = vmatprep.subr.bf16.mxu0 0
    %675 = vmatpush1.bf16.msra.mxu0 %v642
    %676 = vmatprep.subr.bf16.mxu0 0
    %677 = vmatpush1.bf16.msra.mxu0 %v643
    %678 = vmatprep.subr.bf16.mxu0 0
    %679 = vmatpush1.bf16.msra.mxu0 %v644
    %680 = vmatprep.subr.bf16.mxu0 0
    %681 = vmatpush1.bf16.msra.mxu0 %v645
    %682 = vmatprep.subr.bf16.mxu0 0
    %683 = vmatpush1.bf16.msra.mxu0 0
    %684 = vmatprep.subr.bf16.mxu0 0
    %685 = vmatpush1.bf16.msra.mxu0 0
    %686 = vmatprep.subr.bf16.mxu0 0
    %687 = vmatpush1.bf16.msra.mxu0 0
    %688 = vmatprep.subr.bf16.mxu0 0
    %689 = vmatpush1.bf16.msra.mxu0 0
    %690 = vmatprep.subr.bf16.mxu0 0
    %691 = vmatpush1.bf16.msra.mxu0 0
    %692 = vmatprep.subr.bf16.mxu0 0
    %693 = vmatpush1.bf16.msra.mxu0 0
    %694 = vmatprep.subr.bf16.mxu0 0
    %695 = vmatpush1.bf16.msra.mxu0 0
    %696 = vmatprep.subr.bf16.mxu0 0
    %697 = vmatpush1.bf16.msra.mxu0 0
    %698 = vmatprep.subr.bf16.mxu0 0
    %699 = vmatpush1.bf16.msra.mxu0 0
    %700 = vmatprep.subr.bf16.mxu0 0
    %701 = vmatpush1.bf16.msra.mxu0 0
    %702 = vmatprep.subr.bf16.mxu0 0
    %703 = vmatpush1.bf16.msra.mxu0 0
    %704 = vmatprep.subr.bf16.mxu0 0
    %705 = vmatpush1.bf16.msra.mxu0 0
    %706 = vmatprep.mubr.bf16.mxu0 0
    %707 = vmatmul.mubr.bf16.gmra.mrb[0].mxu0 %v651
    %v708 = vpop.f32.mrb[0].mxu0
    %v709 = vadd.f32 %v624, %v708
    %v710 = vpop.f32.mrb[0].mxu0
    %v711 = vpop.f32.mrb[0].mxu0
    %v712 = vadd.f32 %v624, %v711
    %v713 = vpop.f32.mrb[0].mxu0
    %714 = vmatprep.mubr.bf16.mxu0 0
    %715 = vmatmul.mubr.bf16.gmra.mrb[0].mxu0 %v654
    %v716 = vpop.f32.mrb[0].mxu0
    %v717 = vadd.f32 %v624, %v716
    %v718 = vpop.f32.mrb[0].mxu0
    %v719 = vpop.f32.mrb[0].mxu0
    %v720 = vadd.f32 %v624, %v719
    %v721 = vpop.f32.mrb[0].mxu0
    %722 = vmatprep.mubr.bf16.mxu0 0
    %723 = vmatmul.mubr.bf16.gmra.mrb[0].mxu0 %v657
    %v724 = vpop.f32.mrb[0].mxu0
    %v725 = vadd.f32 %v624, %v724
    %v726 = vpop.f32.mrb[0].mxu0
    %v727 = vpop.f32.mrb[0].mxu0
    %v728 = vadd.f32 %v624, %v727
    %v729 = vpop.f32.mrb[0].mxu0
    %730 = vmatprep.mubr.bf16.mxu0 0
    %731 = vmatmul.mubr.bf16.gmra.mrb[0].mxu0 %v660
    %v732 = vpop.f32.mrb[0].mxu0
    %v733 = vadd.f32 %v624, %v732
    %v734 = vpop.f32.mrb[0].mxu0
    %v735 = vpop.f32.mrb[0].mxu0
    %v736 = vadd.f32 %v624, %v735
    %v737 = vpop.f32.mrb[0].mxu0
    %738 = vmatprep.mubr.bf16.mxu0 0
    %739 = vmatmul.mubr.bf16.gmra.mrb[0].mxu0 %v663
    %v740 = vpop.f32.mrb[0].mxu0
    %v741 = vadd.f32 %v624, %v740
    %v742 = vpop.f32.mrb[0].mxu0
    %v743 = vpop.f32.mrb[0].mxu0
    %v744 = vadd.f32 %v624, %v743
    %v745 = vpop.f32.mrb[0].mxu0
    %746 = vmatprep.mubr.bf16.mxu0 0
    %747 = vmatmul.mubr.bf16.gmra.mrb[0].mxu0 %v666
    %v748 = vpop.f32.mrb[0].mxu0
    %v749 = vadd.f32 %v624, %v748
    %v750 = vpop.f32.mrb[0].mxu0
    %v751 = vpop.f32.mrb[0].mxu0
    %v752 = vadd.f32 %v624, %v751
    %v753 = vpop.f32.mrb[0].mxu0
    %754 = vmatprep.mubr.bf16.mxu0 0
    %755 = vmatmul.mubr.bf16.gmra.mrb[0].mxu0 %v669
    %v756 = vpop.f32.mrb[0].mxu0
    %v757 = vadd.f32 %v624, %v756
    %v758 = vpop.f32.mrb[0].mxu0
    %v759 = vpop.f32.mrb[0].mxu0
    %v760 = vadd.f32 %v624, %v759
    %v761 = vpop.f32.mrb[0].mxu0
    %762 = vmatprep.mubr.bf16.mxu0 0
    %763 = vmatmul.mubr.bf16.gmra.mrb[0].mxu0 %v672
    %v764 = vpop.f32.mrb[0].mxu0
    %v765 = vadd.f32 %v624, %v764
    %v766 = vpop.f32.mrb[0].mxu0
    %v767 = vpop.f32.mrb[0].mxu0
    %v768 = vadd.f32 %v624, %v767
    %v769 = vpop.f32.mrb[0].mxu0
    %770 = vdwg.mxu0
    %v771 = vsub.f32 0.0, %v709
    %v772 = vsub.f32 0.0, %v712
    %v773 = vsub.f32 0.0, %v717
    %v774 = vsub.f32 0.0, %v720
    %v775 = vsub.f32 0.0, %v725
    %v776 = vsub.f32 0.0, %v728
    %v777 = vsub.f32 0.0, %v733
    %v778 = vsub.f32 0.0, %v736
    %v779 = vsub.f32 0.0, %v741
    %v780 = vsub.f32 0.0, %v744
    %v781 = vsub.f32 0.0, %v749
    %v782 = vsub.f32 0.0, %v752
    %v783 = vsub.f32 0.0, %v757
    %v784 = vsub.f32 0.0, %v760
    %v785 = vsub.f32 0.0, %v765
    %v786 = vsub.f32 0.0, %v768
    %v787 = vmul.f32 %v771, 1.442695
    %v788 = vpow.pop %v787
    %v789 = vmul.f32 %v772, 1.442695
    %v790 = vpow.pop %v789
    %v791 = vmul.f32 %v773, 1.442695
    %v792 = vpow.pop %v791
    %v793 = vmul.f32 %v774, 1.442695
    %v794 = vpow.pop %v793
    %v795 = vmul.f32 %v775, 1.442695
    %v796 = vpow.pop %v795
    %v797 = vmul.f32 %v776, 1.442695
    %v798 = vpow.pop %v797
    %v799 = vmul.f32 %v777, 1.442695
    %v800 = vpow.pop %v799
    %v801 = vmul.f32 %v778, 1.442695
    %v802 = vpow.pop %v801
    %v803 = vmul.f32 %v779, 1.442695
    %v804 = vpow.pop %v803
    %v805 = vmul.f32 %v780, 1.442695
    %v806 = vpow.pop %v805
    %v807 = vmul.f32 %v781, 1.442695
    %v808 = vpow.pop %v807
    %v809 = vmul.f32 %v782, 1.442695
    %v810 = vpow.pop %v809
    %v811 = vmul.f32 %v783, 1.442695
    %v812 = vpow.pop %v811
    %v813 = vmul.f32 %v784, 1.442695
    %v814 = vpow.pop %v813
    %v815 = vmul.f32 %v785, 1.442695
    %v816 = vpow.pop %v815
    %v817 = vmul.f32 %v786, 1.442695
    %v818 = vpow.pop %v817
    %v819 = vadd.f32 %v788, 1.0
    %v820 = vadd.f32 %v790, 1.0
    %v821 = vadd.f32 %v792, 1.0
    %v822 = vadd.f32 %v794, 1.0
    %v823 = vadd.f32 %v796, 1.0
    %v824 = vadd.f32 %v798, 1.0
    %v825 = vadd.f32 %v800, 1.0
    %v826 = vadd.f32 %v802, 1.0
    %v827 = vadd.f32 %v804, 1.0
    %v828 = vadd.f32 %v806, 1.0
    %v829 = vadd.f32 %v808, 1.0
    %v830 = vadd.f32 %v810, 1.0
    %v831 = vadd.f32 %v812, 1.0
    %v832 = vadd.f32 %v814, 1.0
    %v833 = vadd.f32 %v816, 1.0
    %v834 = vadd.f32 %v818, 1.0
    %v835 = vrcp.pop %v819
    %v836 = vrcp.pop %v820
    %v837 = vrcp.pop %v821
    %v838 = vrcp.pop %v822
    %v839 = vrcp.pop %v823
    %v840 = vrcp.pop %v824
    %v841 = vrcp.pop %v825
    %v842 = vrcp.pop %v826
    %v843 = vrcp.pop %v827
    %v844 = vrcp.pop %v828
    %v845 = vrcp.pop %v829
    %v846 = vrcp.pop %v830
    %v847 = vrcp.pop %v831
    %v848 = vrcp.pop %v832
    %v849 = vrcp.pop %v833
    %v850 = vrcp.pop %v834
    %v851 = vmul.f32 %v709, %v835
    %v852 = vmul.f32 %v712, %v836
    %v853 = vmul.f32 %v717, %v837
    %v854 = vmul.f32 %v720, %v838
    %v855 = vmul.f32 %v725, %v839
    %v856 = vmul.f32 %v728, %v840
    %v857 = vmul.f32 %v733, %v841
    %v858 = vmul.f32 %v736, %v842
    %v859 = vmul.f32 %v741, %v843
    %v860 = vmul.f32 %v744, %v844
    %v861 = vmul.f32 %v749, %v845
    %v862 = vmul.f32 %v752, %v846
    %v863 = vmul.f32 %v757, %v847
    %v864 = vmul.f32 %v760, %v848
    %v865 = vmul.f32 %v765, %v849
    %v866 = vmul.f32 %v768, %v850
    %v867 = vpack.c.bf16 %v852, %v851
    %v868 = vpack.c.bf16 %v854, %v853
    %v869 = vpack.c.bf16 %v856, %v855
    %v870 = vpack.c.bf16 %v858, %v857
    %v871 = vpack.c.bf16 %v860, %v859
    %v872 = vpack.c.bf16 %v862, %v861
    %v873 = vpack.c.bf16 %v864, %v863
    %v874 = vpack.c.bf16 %v866, %v865
    %v875 = vmul.f32 %v709, 2.5
    %v876 = vmul.f32 %v712, 2.5
    %v877 = vmul.f32 %v717, 2.5
    %v878 = vmul.f32 %v720, 2.5
    %v879 = vmul.f32 %v725, 2.5
    %v880 = vmul.f32 %v728, 2.5
    %v881 = vmul.f32 %v733, 2.5
    %v882 = vmul.f32 %v736, 2.5
    %v883 = vmul.f32 %v741, 2.5
    %v884 = vmul.f32 %v744, 2.5
    %v885 = vmul.f32 %v749, 2.5
    %v886 = vmul.f32 %v752, 2.5
    %v887 = vmul.f32 %v757, 2.5
    %v888 = vmul.f32 %v760, 2.5
    %v889 = vmul.f32 %v765, 2.5
    %v890 = vmul.f32 %v768, 2.5
    %907 = vrot.lane.b32.xlu0 %v875, 64
    %v908 = vpop.permute.xlu0 %907
    %909 = vrot.lane.b32.xlu0 %v876, 64
    %v910 = vpop.permute.xlu0 %909
    %911 = vrot.lane.b32.xlu0 %v877, 64
    %v912 = vpop.permute.xlu0 %911
    %913 = vrot.lane.b32.xlu0 %v878, 64
    %v914 = vpop.permute.xlu0 %913
    %915 = vrot.lane.b32.xlu0 %v879, 64
    %v916 = vpop.permute.xlu0 %915
    %917 = vrot.lane.b32.xlu0 %v880, 64
    %v918 = vpop.permute.xlu0 %917
    %919 = vrot.lane.b32.xlu0 %v881, 64
    %v920 = vpop.permute.xlu0 %919
    %921 = vrot.lane.b32.xlu0 %v882, 64
    %v922 = vpop.permute.xlu0 %921
    %923 = vrot.lane.b32.xlu0 %v883, 64
    %v924 = vpop.permute.xlu0 %923
    %925 = vrot.lane.b32.xlu0 %v884, 64
    %v926 = vpop.permute.xlu0 %925
    %927 = vrot.lane.b32.xlu0 %v885, 64
    %v928 = vpop.permute.xlu0 %927
    %929 = vrot.lane.b32.xlu0 %v886, 64
    %v930 = vpop.permute.xlu0 %929
    %931 = vrot.lane.b32.xlu0 %v887, 64
    %v932 = vpop.permute.xlu0 %931
    %933 = vrot.lane.b32.xlu0 %v888, 64
    %v934 = vpop.permute.xlu0 %933
    %935 = vrot.lane.b32.xlu0 %v889, 64
    %v936 = vpop.permute.xlu0 %935
    %937 = vrot.lane.b32.xlu0 %v890, 64
    %v938 = vpop.permute.xlu0 %937
    %v955 = vsel %vm273, %v875, %v908
    %v956 = vsel %vm273, %v876, %v910
    %v957 = vsel %vm273, %v877, %v912
    %v958 = vsel %vm273, %v878, %v914
    %v959 = vsel %vm273, %v879, %v916
    %v960 = vsel %vm273, %v880, %v918
    %v961 = vsel %vm273, %v881, %v920
    %v962 = vsel %vm273, %v882, %v922
    %v963 = vsel %vm273, %v883, %v924
    %v964 = vsel %vm273, %v884, %v926
    %v965 = vsel %vm273, %v885, %v928
    %v966 = vsel %vm273, %v886, %v930
    %v967 = vsel %vm273, %v887, %v932
    %v968 = vsel %vm273, %v888, %v934
    %v969 = vsel %vm273, %v889, %v936
    %v970 = vsel %vm273, %v890, %v938
    %v971 = vld [vmem:[#allocation5] sm:$0xf]
    %v973 = vlaneseq
    %v974 = vshrl.u32 %v973, 7
    %v975 = vsub.s32 0, %v974
    %v976 = vrot.slane %v971, %v975
    %v977 = vlaneseq
    %v978 = vshrl.u32 %v977, 7
    %v979 = vsub.s32 1, %v978
    %v980 = vrot.slane %v971, %v979
    %v981 = vlaneseq
    %v982 = vshrl.u32 %v981, 7
    %v983 = vsub.s32 2, %v982
    %v984 = vrot.slane %v971, %v983
    %v985 = vlaneseq
    %v986 = vshrl.u32 %v985, 7
    %v987 = vsub.s32 3, %v986
    %v988 = vrot.slane %v971, %v987
    %v993 = vsub.f32 %v955, %v976
    %v994 = vsub.f32 %v955, %v980
    %v995 = vsub.f32 %v955, %v984
    %v996 = vsub.f32 %v955, %v988
    %v997 = vsub.f32 %v956, %v976
    %v998 = vsub.f32 %v956, %v980
    %v999 = vsub.f32 %v956, %v984
    %v1000 = vsub.f32 %v956, %v988
    %v1001 = vsub.f32 %v957, %v976
    %v1002 = vsub.f32 %v957, %v980
    %v1003 = vsub.f32 %v957, %v984
    %v1004 = vsub.f32 %v957, %v988
    %v1005 = vsub.f32 %v958, %v976
    %v1006 = vsub.f32 %v958, %v980
    %v1007 = vsub.f32 %v958, %v984
    %v1008 = vsub.f32 %v958, %v988
    %v1009 = vsub.f32 %v959, %v976
    %v1010 = vsub.f32 %v959, %v980
    %v1011 = vsub.f32 %v959, %v984
    %v1012 = vsub.f32 %v959, %v988
    %v1013 = vsub.f32 %v960, %v976
    %v1014 = vsub.f32 %v960, %v980
    %v1015 = vsub.f32 %v960, %v984
    %v1016 = vsub.f32 %v960, %v988
    %v1017 = vsub.f32 %v961, %v976
    %v1018 = vsub.f32 %v961, %v980
    %v1019 = vsub.f32 %v961, %v984
    %v1020 = vsub.f32 %v961, %v988
    %v1021 = vsub.f32 %v962, %v976
    %v1022 = vsub.f32 %v962, %v980
    %v1023 = vsub.f32 %v962, %v984
    %v1024 = vsub.f32 %v962, %v988
    %v1025 = vsub.f32 %v963, %v976
    %v1026 = vsub.f32 %v963, %v980
    %v1027 = vsub.f32 %v963, %v984
    %v1028 = vsub.f32 %v963, %v988
    %v1029 = vsub.f32 %v964, %v976
    %v1030 = vsub.f32 %v964, %v980
    %v1031 = vsub.f32 %v964, %v984
    %v1032 = vsub.f32 %v964, %v988
    %v1033 = vsub.f32 %v965, %v976
    %v1034 = vsub.f32 %v965, %v980
    %v1035 = vsub.f32 %v965, %v984
    %v1036 = vsub.f32 %v965, %v988
    %v1037 = vsub.f32 %v966, %v976
    %v1038 = vsub.f32 %v966, %v980
    %v1039 = vsub.f32 %v966, %v984
    %v1040 = vsub.f32 %v966, %v988
    %v1041 = vsub.f32 %v967, %v976
    %v1042 = vsub.f32 %v967, %v980
    %v1043 = vsub.f32 %v967, %v984
    %v1044 = vsub.f32 %v967, %v988
    %v1045 = vsub.f32 %v968, %v976
    %v1046 = vsub.f32 %v968, %v980
    %v1047 = vsub.f32 %v968, %v984
    %v1048 = vsub.f32 %v968, %v988
    %v1049 = vsub.f32 %v969, %v976
    %v1050 = vsub.f32 %v969, %v980
    %v1051 = vsub.f32 %v969, %v984
    %v1052 = vsub.f32 %v969, %v988
    %v1053 = vsub.f32 %v970, %v976
    %v1054 = vsub.f32 %v970, %v980
    %v1055 = vsub.f32 %v970, %v984
    %v1056 = vsub.f32 %v970, %v988
    %v1057 = vand.u32 2147483647, %v993
    %v1058 = vand.u32 2147483647, %v994
    %v1059 = vand.u32 2147483647, %v995
    %v1060 = vand.u32 2147483647, %v996
    %v1061 = vand.u32 2147483647, %v997
    %v1062 = vand.u32 2147483647, %v998
    %v1063 = vand.u32 2147483647, %v999
    %v1064 = vand.u32 2147483647, %v1000
    %v1065 = vand.u32 2147483647, %v1001
    %v1066 = vand.u32 2147483647, %v1002
    %v1067 = vand.u32 2147483647, %v1003
    %v1068 = vand.u32 2147483647, %v1004
    %v1069 = vand.u32 2147483647, %v1005
    %v1070 = vand.u32 2147483647, %v1006
    %v1071 = vand.u32 2147483647, %v1007
    %v1072 = vand.u32 2147483647, %v1008
    %v1073 = vand.u32 2147483647, %v1009
    %v1074 = vand.u32 2147483647, %v1010
    %v1075 = vand.u32 2147483647, %v1011
    %v1076 = vand.u32 2147483647, %v1012
    %v1077 = vand.u32 2147483647, %v1013
    %v1078 = vand.u32 2147483647, %v1014
    %v1079 = vand.u32 2147483647, %v1015
    %v1080 = vand.u32 2147483647, %v1016
    %v1081 = vand.u32 2147483647, %v1017
    %v1082 = vand.u32 2147483647, %v1018
    %v1083 = vand.u32 2147483647, %v1019
    %v1084 = vand.u32 2147483647, %v1020
    %v1085 = vand.u32 2147483647, %v1021
    %v1086 = vand.u32 2147483647, %v1022
    %v1087 = vand.u32 2147483647, %v1023
    %v1088 = vand.u32 2147483647, %v1024
    %v1089 = vand.u32 2147483647, %v1025
    %v1090 = vand.u32 2147483647, %v1026
    %v1091 = vand.u32 2147483647, %v1027
    %v1092 = vand.u32 2147483647, %v1028
    %v1093 = vand.u32 2147483647, %v1029
    %v1094 = vand.u32 2147483647, %v1030
    %v1095 = vand.u32 2147483647, %v1031
    %v1096 = vand.u32 2147483647, %v1032
    %v1097 = vand.u32 2147483647, %v1033
    %v1098 = vand.u32 2147483647, %v1034
    %v1099 = vand.u32 2147483647, %v1035
    %v1100 = vand.u32 2147483647, %v1036
    %v1101 = vand.u32 2147483647, %v1037
    %v1102 = vand.u32 2147483647, %v1038
    %v1103 = vand.u32 2147483647, %v1039
    %v1104 = vand.u32 2147483647, %v1040
    %v1105 = vand.u32 2147483647, %v1041
    %v1106 = vand.u32 2147483647, %v1042
    %v1107 = vand.u32 2147483647, %v1043
    %v1108 = vand.u32 2147483647, %v1044
    %v1109 = vand.u32 2147483647, %v1045
    %v1110 = vand.u32 2147483647, %v1046
    %v1111 = vand.u32 2147483647, %v1047
    %v1112 = vand.u32 2147483647, %v1048
    %v1113 = vand.u32 2147483647, %v1049
    %v1114 = vand.u32 2147483647, %v1050
    %v1115 = vand.u32 2147483647, %v1051
    %v1116 = vand.u32 2147483647, %v1052
    %v1117 = vand.u32 2147483647, %v1053
    %v1118 = vand.u32 2147483647, %v1054
    %v1119 = vand.u32 2147483647, %v1055
    %v1120 = vand.u32 2147483647, %v1056
    %v1121 = vsub.f32 2.0, %v1057
    %v1122 = vsub.f32 2.0, %v1058
    %v1123 = vsub.f32 2.0, %v1059
    %v1124 = vsub.f32 2.0, %v1060
    %v1125 = vsub.f32 2.0, %v1061
    %v1126 = vsub.f32 2.0, %v1062
    %v1127 = vsub.f32 2.0, %v1063
    %v1128 = vsub.f32 2.0, %v1064
    %v1129 = vsub.f32 2.0, %v1065
    %v1130 = vsub.f32 2.0, %v1066
    %v1131 = vsub.f32 2.0, %v1067
    %v1132 = vsub.f32 2.0, %v1068
    %v1133 = vsub.f32 2.0, %v1069
    %v1134 = vsub.f32 2.0, %v1070
    %v1135 = vsub.f32 2.0, %v1071
    %v1136 = vsub.f32 2.0, %v1072
    %v1137 = vsub.f32 2.0, %v1073
    %v1138 = vsub.f32 2.0, %v1074
    %v1139 = vsub.f32 2.0, %v1075
    %v1140 = vsub.f32 2.0, %v1076
    %v1141 = vsub.f32 2.0, %v1077
    %v1142 = vsub.f32 2.0, %v1078
    %v1143 = vsub.f32 2.0, %v1079
    %v1144 = vsub.f32 2.0, %v1080
    %v1145 = vsub.f32 2.0, %v1081
    %v1146 = vsub.f32 2.0, %v1082
    %v1147 = vsub.f32 2.0, %v1083
    %v1148 = vsub.f32 2.0, %v1084
    %v1149 = vsub.f32 2.0, %v1085
    %v1150 = vsub.f32 2.0, %v1086
    %v1151 = vsub.f32 2.0, %v1087
    %v1152 = vsub.f32 2.0, %v1088
    %v1153 = vsub.f32 2.0, %v1089
    %v1154 = vsub.f32 2.0, %v1090
    %v1155 = vsub.f32 2.0, %v1091
    %v1156 = vsub.f32 2.0, %v1092
    %v1157 = vsub.f32 2.0, %v1093
    %v1158 = vsub.f32 2.0, %v1094
    %v1159 = vsub.f32 2.0, %v1095
    %v1160 = vsub.f32 2.0, %v1096
    %v1161 = vsub.f32 2.0, %v1097
    %v1162 = vsub.f32 2.0, %v1098
    %v1163 = vsub.f32 2.0, %v1099
    %v1164 = vsub.f32 2.0, %v1100
    %v1165 = vsub.f32 2.0, %v1101
    %v1166 = vsub.f32 2.0, %v1102
    %v1167 = vsub.f32 2.0, %v1103
    %v1168 = vsub.f32 2.0, %v1104
    %v1169 = vsub.f32 2.0, %v1105
    %v1170 = vsub.f32 2.0, %v1106
    %v1171 = vsub.f32 2.0, %v1107
    %v1172 = vsub.f32 2.0, %v1108
    %v1173 = vsub.f32 2.0, %v1109
    %v1174 = vsub.f32 2.0, %v1110
    %v1175 = vsub.f32 2.0, %v1111
    %v1176 = vsub.f32 2.0, %v1112
    %v1177 = vsub.f32 2.0, %v1113
    %v1178 = vsub.f32 2.0, %v1114
    %v1179 = vsub.f32 2.0, %v1115
    %v1180 = vsub.f32 2.0, %v1116
    %v1181 = vsub.f32 2.0, %v1117
    %v1182 = vsub.f32 2.0, %v1118
    %v1183 = vsub.f32 2.0, %v1119
    %v1184 = vsub.f32 2.0, %v1120
    %v1185 = vmax.f32 %v1121, 0.0
    %v1186 = vmax.f32 %v1122, 0.0
    %v1187 = vmax.f32 %v1123, 0.0
    %v1188 = vmax.f32 %v1124, 0.0
    %v1189 = vmax.f32 %v1125, 0.0
    %v1190 = vmax.f32 %v1126, 0.0
    %v1191 = vmax.f32 %v1127, 0.0
    %v1192 = vmax.f32 %v1128, 0.0
    %v1193 = vmax.f32 %v1129, 0.0
    %v1194 = vmax.f32 %v1130, 0.0
    %v1195 = vmax.f32 %v1131, 0.0
    %v1196 = vmax.f32 %v1132, 0.0
    %v1197 = vmax.f32 %v1133, 0.0
    %v1198 = vmax.f32 %v1134, 0.0
    %v1199 = vmax.f32 %v1135, 0.0
    %v1200 = vmax.f32 %v1136, 0.0
    %v1201 = vmax.f32 %v1137, 0.0
    %v1202 = vmax.f32 %v1138, 0.0
    %v1203 = vmax.f32 %v1139, 0.0
    %v1204 = vmax.f32 %v1140, 0.0
    %v1205 = vmax.f32 %v1141, 0.0
    %v1206 = vmax.f32 %v1142, 0.0
    %v1207 = vmax.f32 %v1143, 0.0
    %v1208 = vmax.f32 %v1144, 0.0
    %v1209 = vmax.f32 %v1145, 0.0
    %v1210 = vmax.f32 %v1146, 0.0
    %v1211 = vmax.f32 %v1147, 0.0
    %v1212 = vmax.f32 %v1148, 0.0
    %v1213 = vmax.f32 %v1149, 0.0
    %v1214 = vmax.f32 %v1150, 0.0
    %v1215 = vmax.f32 %v1151, 0.0
    %v1216 = vmax.f32 %v1152, 0.0
    %v1217 = vmax.f32 %v1153, 0.0
    %v1218 = vmax.f32 %v1154, 0.0
    %v1219 = vmax.f32 %v1155, 0.0
    %v1220 = vmax.f32 %v1156, 0.0
    %v1221 = vmax.f32 %v1157, 0.0
    %v1222 = vmax.f32 %v1158, 0.0
    %v1223 = vmax.f32 %v1159, 0.0
    %v1224 = vmax.f32 %v1160, 0.0
    %v1225 = vmax.f32 %v1161, 0.0
    %v1226 = vmax.f32 %v1162, 0.0
    %v1227 = vmax.f32 %v1163, 0.0
    %v1228 = vmax.f32 %v1164, 0.0
    %v1229 = vmax.f32 %v1165, 0.0
    %v1230 = vmax.f32 %v1166, 0.0
    %v1231 = vmax.f32 %v1167, 0.0
    %v1232 = vmax.f32 %v1168, 0.0
    %v1233 = vmax.f32 %v1169, 0.0
    %v1234 = vmax.f32 %v1170, 0.0
    %v1235 = vmax.f32 %v1171, 0.0
    %v1236 = vmax.f32 %v1172, 0.0
    %v1237 = vmax.f32 %v1173, 0.0
    %v1238 = vmax.f32 %v1174, 0.0
    %v1239 = vmax.f32 %v1175, 0.0
    %v1240 = vmax.f32 %v1176, 0.0
    %v1241 = vmax.f32 %v1177, 0.0
    %v1242 = vmax.f32 %v1178, 0.0
    %v1243 = vmax.f32 %v1179, 0.0
    %v1244 = vmax.f32 %v1180, 0.0
    %v1245 = vmax.f32 %v1181, 0.0
    %v1246 = vmax.f32 %v1182, 0.0
    %v1247 = vmax.f32 %v1183, 0.0
    %v1248 = vmax.f32 %v1184, 0.0
    %v1249 = vmul.f32 %v1185, %v1185
    %v1250 = vmul.f32 %v1186, %v1186
    %v1251 = vmul.f32 %v1187, %v1187
    %v1252 = vmul.f32 %v1188, %v1188
    %v1253 = vmul.f32 %v1189, %v1189
    %v1254 = vmul.f32 %v1190, %v1190
    %v1255 = vmul.f32 %v1191, %v1191
    %v1256 = vmul.f32 %v1192, %v1192
    %v1257 = vmul.f32 %v1193, %v1193
    %v1258 = vmul.f32 %v1194, %v1194
    %v1259 = vmul.f32 %v1195, %v1195
    %v1260 = vmul.f32 %v1196, %v1196
    %v1261 = vmul.f32 %v1197, %v1197
    %v1262 = vmul.f32 %v1198, %v1198
    %v1263 = vmul.f32 %v1199, %v1199
    %v1264 = vmul.f32 %v1200, %v1200
    %v1265 = vmul.f32 %v1201, %v1201
    %v1266 = vmul.f32 %v1202, %v1202
    %v1267 = vmul.f32 %v1203, %v1203
    %v1268 = vmul.f32 %v1204, %v1204
    %v1269 = vmul.f32 %v1205, %v1205
    %v1270 = vmul.f32 %v1206, %v1206
    %v1271 = vmul.f32 %v1207, %v1207
    %v1272 = vmul.f32 %v1208, %v1208
    %v1273 = vmul.f32 %v1209, %v1209
    %v1274 = vmul.f32 %v1210, %v1210
    %v1275 = vmul.f32 %v1211, %v1211
    %v1276 = vmul.f32 %v1212, %v1212
    %v1277 = vmul.f32 %v1213, %v1213
    %v1278 = vmul.f32 %v1214, %v1214
    %v1279 = vmul.f32 %v1215, %v1215
    %v1280 = vmul.f32 %v1216, %v1216
    %v1281 = vmul.f32 %v1217, %v1217
    %v1282 = vmul.f32 %v1218, %v1218
    %v1283 = vmul.f32 %v1219, %v1219
    %v1284 = vmul.f32 %v1220, %v1220
    %v1285 = vmul.f32 %v1221, %v1221
    %v1286 = vmul.f32 %v1222, %v1222
    %v1287 = vmul.f32 %v1223, %v1223
    %v1288 = vmul.f32 %v1224, %v1224
    %v1289 = vmul.f32 %v1225, %v1225
    %v1290 = vmul.f32 %v1226, %v1226
    %v1291 = vmul.f32 %v1227, %v1227
    %v1292 = vmul.f32 %v1228, %v1228
    %v1293 = vmul.f32 %v1229, %v1229
    %v1294 = vmul.f32 %v1230, %v1230
    %v1295 = vmul.f32 %v1231, %v1231
    %v1296 = vmul.f32 %v1232, %v1232
    %v1297 = vmul.f32 %v1233, %v1233
    %v1298 = vmul.f32 %v1234, %v1234
    %v1299 = vmul.f32 %v1235, %v1235
    %v1300 = vmul.f32 %v1236, %v1236
    %v1301 = vmul.f32 %v1237, %v1237
    %v1302 = vmul.f32 %v1238, %v1238
    %v1303 = vmul.f32 %v1239, %v1239
    %v1304 = vmul.f32 %v1240, %v1240
    %v1305 = vmul.f32 %v1241, %v1241
    %v1306 = vmul.f32 %v1242, %v1242
    %v1307 = vmul.f32 %v1243, %v1243
    %v1308 = vmul.f32 %v1244, %v1244
    %v1309 = vmul.f32 %v1245, %v1245
    %v1310 = vmul.f32 %v1246, %v1246
    %v1311 = vmul.f32 %v1247, %v1247
    %v1312 = vmul.f32 %v1248, %v1248
    %v1313 = vmul.f32 %v1185, 0.16666667
    %v1314 = vmul.f32 %v1186, 0.16666667
    %v1315 = vmul.f32 %v1187, 0.16666667
    %v1316 = vmul.f32 %v1188, 0.16666667
    %v1317 = vmul.f32 %v1189, 0.16666667
    %v1318 = vmul.f32 %v1190, 0.16666667
    %v1319 = vmul.f32 %v1191, 0.16666667
    %v1320 = vmul.f32 %v1192, 0.16666667
    %v1321 = vmul.f32 %v1193, 0.16666667
    %v1322 = vmul.f32 %v1194, 0.16666667
    %v1323 = vmul.f32 %v1195, 0.16666667
    %v1324 = vmul.f32 %v1196, 0.16666667
    %v1325 = vmul.f32 %v1197, 0.16666667
    %v1326 = vmul.f32 %v1198, 0.16666667
    %v1327 = vmul.f32 %v1199, 0.16666667
    %v1328 = vmul.f32 %v1200, 0.16666667
    %v1329 = vmul.f32 %v1201, 0.16666667
    %v1330 = vmul.f32 %v1202, 0.16666667
    %v1331 = vmul.f32 %v1203, 0.16666667
    %v1332 = vmul.f32 %v1204, 0.16666667
    %v1333 = vmul.f32 %v1205, 0.16666667
    %v1334 = vmul.f32 %v1206, 0.16666667
    %v1335 = vmul.f32 %v1207, 0.16666667
    %v1336 = vmul.f32 %v1208, 0.16666667
    %v1337 = vmul.f32 %v1209, 0.16666667
    %v1338 = vmul.f32 %v1210, 0.16666667
    %v1339 = vmul.f32 %v1211, 0.16666667
    %v1340 = vmul.f32 %v1212, 0.16666667
    %v1341 = vmul.f32 %v1213, 0.16666667
    %v1342 = vmul.f32 %v1214, 0.16666667
    %v1343 = vmul.f32 %v1215, 0.16666667
    %v1344 = vmul.f32 %v1216, 0.16666667
    %v1345 = vmul.f32 %v1217, 0.16666667
    %v1346 = vmul.f32 %v1218, 0.16666667
    %v1347 = vmul.f32 %v1219, 0.16666667
    %v1348 = vmul.f32 %v1220, 0.16666667
    %v1349 = vmul.f32 %v1221, 0.16666667
    %v1350 = vmul.f32 %v1222, 0.16666667
    %v1351 = vmul.f32 %v1223, 0.16666667
    %v1352 = vmul.f32 %v1224, 0.16666667
    %v1353 = vmul.f32 %v1225, 0.16666667
    %v1354 = vmul.f32 %v1226, 0.16666667
    %v1355 = vmul.f32 %v1227, 0.16666667
    %v1356 = vmul.f32 %v1228, 0.16666667
    %v1357 = vmul.f32 %v1229, 0.16666667
    %v1358 = vmul.f32 %v1230, 0.16666667
    %v1359 = vmul.f32 %v1231, 0.16666667
    %v1360 = vmul.f32 %v1232, 0.16666667
    %v1361 = vmul.f32 %v1233, 0.16666667
    %v1362 = vmul.f32 %v1234, 0.16666667
    %v1363 = vmul.f32 %v1235, 0.16666667
    %v1364 = vmul.f32 %v1236, 0.16666667
    %v1365 = vmul.f32 %v1237, 0.16666667
    %v1366 = vmul.f32 %v1238, 0.16666667
    %v1367 = vmul.f32 %v1239, 0.16666667
    %v1368 = vmul.f32 %v1240, 0.16666667
    %v1369 = vmul.f32 %v1241, 0.16666667
    %v1370 = vmul.f32 %v1242, 0.16666667
    %v1371 = vmul.f32 %v1243, 0.16666667
    %v1372 = vmul.f32 %v1244, 0.16666667
    %v1373 = vmul.f32 %v1245, 0.16666667
    %v1374 = vmul.f32 %v1246, 0.16666667
    %v1375 = vmul.f32 %v1247, 0.16666667
    %v1376 = vmul.f32 %v1248, 0.16666667
    %v1377 = vmul.f32 %v1249, %v1313
    %v1378 = vmul.f32 %v1250, %v1314
    %v1379 = vmul.f32 %v1251, %v1315
    %v1380 = vmul.f32 %v1252, %v1316
    %v1381 = vmul.f32 %v1253, %v1317
    %v1382 = vmul.f32 %v1254, %v1318
    %v1383 = vmul.f32 %v1255, %v1319
    %v1384 = vmul.f32 %v1256, %v1320
    %v1385 = vmul.f32 %v1257, %v1321
    %v1386 = vmul.f32 %v1258, %v1322
    %v1387 = vmul.f32 %v1259, %v1323
    %v1388 = vmul.f32 %v1260, %v1324
    %v1389 = vmul.f32 %v1261, %v1325
    %v1390 = vmul.f32 %v1262, %v1326
    %v1391 = vmul.f32 %v1263, %v1327
    %v1392 = vmul.f32 %v1264, %v1328
    %v1393 = vmul.f32 %v1265, %v1329
    %v1394 = vmul.f32 %v1266, %v1330
    %v1395 = vmul.f32 %v1267, %v1331
    %v1396 = vmul.f32 %v1268, %v1332
    %v1397 = vmul.f32 %v1269, %v1333
    %v1398 = vmul.f32 %v1270, %v1334
    %v1399 = vmul.f32 %v1271, %v1335
    %v1400 = vmul.f32 %v1272, %v1336
    %v1401 = vmul.f32 %v1273, %v1337
    %v1402 = vmul.f32 %v1274, %v1338
    %v1403 = vmul.f32 %v1275, %v1339
    %v1404 = vmul.f32 %v1276, %v1340
    %v1405 = vmul.f32 %v1277, %v1341
    %v1406 = vmul.f32 %v1278, %v1342
    %v1407 = vmul.f32 %v1279, %v1343
    %v1408 = vmul.f32 %v1280, %v1344
    %v1409 = vmul.f32 %v1281, %v1345
    %v1410 = vmul.f32 %v1282, %v1346
    %v1411 = vmul.f32 %v1283, %v1347
    %v1412 = vmul.f32 %v1284, %v1348
    %v1413 = vmul.f32 %v1285, %v1349
    %v1414 = vmul.f32 %v1286, %v1350
    %v1415 = vmul.f32 %v1287, %v1351
    %v1416 = vmul.f32 %v1288, %v1352
    %v1417 = vmul.f32 %v1289, %v1353
    %v1418 = vmul.f32 %v1290, %v1354
    %v1419 = vmul.f32 %v1291, %v1355
    %v1420 = vmul.f32 %v1292, %v1356
    %v1421 = vmul.f32 %v1293, %v1357
    %v1422 = vmul.f32 %v1294, %v1358
    %v1423 = vmul.f32 %v1295, %v1359
    %v1424 = vmul.f32 %v1296, %v1360
    %v1425 = vmul.f32 %v1297, %v1361
    %v1426 = vmul.f32 %v1298, %v1362
    %v1427 = vmul.f32 %v1299, %v1363
    %v1428 = vmul.f32 %v1300, %v1364
    %v1429 = vmul.f32 %v1301, %v1365
    %v1430 = vmul.f32 %v1302, %v1366
    %v1431 = vmul.f32 %v1303, %v1367
    %v1432 = vmul.f32 %v1304, %v1368
    %v1433 = vmul.f32 %v1305, %v1369
    %v1434 = vmul.f32 %v1306, %v1370
    %v1435 = vmul.f32 %v1307, %v1371
    %v1436 = vmul.f32 %v1308, %v1372
    %v1437 = vmul.f32 %v1309, %v1373
    %v1438 = vmul.f32 %v1310, %v1374
    %v1439 = vmul.f32 %v1311, %v1375
    %v1440 = vmul.f32 %v1312, %v1376
    %v1441 = vmul.f32 %v1057, %v1057
    %v1442 = vmul.f32 %v1058, %v1058
    %v1443 = vmul.f32 %v1059, %v1059
    %v1444 = vmul.f32 %v1060, %v1060
    %v1445 = vmul.f32 %v1061, %v1061
    %v1446 = vmul.f32 %v1062, %v1062
    %v1447 = vmul.f32 %v1063, %v1063
    %v1448 = vmul.f32 %v1064, %v1064
    %v1449 = vmul.f32 %v1065, %v1065
    %v1450 = vmul.f32 %v1066, %v1066
    %v1451 = vmul.f32 %v1067, %v1067
    %v1452 = vmul.f32 %v1068, %v1068
    %v1453 = vmul.f32 %v1069, %v1069
    %v1454 = vmul.f32 %v1070, %v1070
    %v1455 = vmul.f32 %v1071, %v1071
    %v1456 = vmul.f32 %v1072, %v1072
    %v1457 = vmul.f32 %v1073, %v1073
    %v1458 = vmul.f32 %v1074, %v1074
    %v1459 = vmul.f32 %v1075, %v1075
    %v1460 = vmul.f32 %v1076, %v1076
    %v1461 = vmul.f32 %v1077, %v1077
    %v1462 = vmul.f32 %v1078, %v1078
    %v1463 = vmul.f32 %v1079, %v1079
    %v1464 = vmul.f32 %v1080, %v1080
    %v1465 = vmul.f32 %v1081, %v1081
    %v1466 = vmul.f32 %v1082, %v1082
    %v1467 = vmul.f32 %v1083, %v1083
    %v1468 = vmul.f32 %v1084, %v1084
    %v1469 = vmul.f32 %v1085, %v1085
    %v1470 = vmul.f32 %v1086, %v1086
    %v1471 = vmul.f32 %v1087, %v1087
    %v1472 = vmul.f32 %v1088, %v1088
    %v1473 = vmul.f32 %v1089, %v1089
    %v1474 = vmul.f32 %v1090, %v1090
    %v1475 = vmul.f32 %v1091, %v1091
    %v1476 = vmul.f32 %v1092, %v1092
    %v1477 = vmul.f32 %v1093, %v1093
    %v1478 = vmul.f32 %v1094, %v1094
    %v1479 = vmul.f32 %v1095, %v1095
    %v1480 = vmul.f32 %v1096, %v1096
    %v1481 = vmul.f32 %v1097, %v1097
    %v1482 = vmul.f32 %v1098, %v1098
    %v1483 = vmul.f32 %v1099, %v1099
    %v1484 = vmul.f32 %v1100, %v1100
    %v1485 = vmul.f32 %v1101, %v1101
    %v1486 = vmul.f32 %v1102, %v1102
    %v1487 = vmul.f32 %v1103, %v1103
    %v1488 = vmul.f32 %v1104, %v1104
    %v1489 = vmul.f32 %v1105, %v1105
    %v1490 = vmul.f32 %v1106, %v1106
    %v1491 = vmul.f32 %v1107, %v1107
    %v1492 = vmul.f32 %v1108, %v1108
    %v1493 = vmul.f32 %v1109, %v1109
    %v1494 = vmul.f32 %v1110, %v1110
    %v1495 = vmul.f32 %v1111, %v1111
    %v1496 = vmul.f32 %v1112, %v1112
    %v1497 = vmul.f32 %v1113, %v1113
    %v1498 = vmul.f32 %v1114, %v1114
    %v1499 = vmul.f32 %v1115, %v1115
    %v1500 = vmul.f32 %v1116, %v1116
    %v1501 = vmul.f32 %v1117, %v1117
    %v1502 = vmul.f32 %v1118, %v1118
    %v1503 = vmul.f32 %v1119, %v1119
    %v1504 = vmul.f32 %v1120, %v1120
    %v1505 = vmul.f32 %v1057, 0.5
    %v1506 = vmul.f32 %v1058, 0.5
    %v1507 = vmul.f32 %v1059, 0.5
    %v1508 = vmul.f32 %v1060, 0.5
    %v1509 = vmul.f32 %v1061, 0.5
    %v1510 = vmul.f32 %v1062, 0.5
    %v1511 = vmul.f32 %v1063, 0.5
    %v1512 = vmul.f32 %v1064, 0.5
    %v1513 = vmul.f32 %v1065, 0.5
    %v1514 = vmul.f32 %v1066, 0.5
    %v1515 = vmul.f32 %v1067, 0.5
    %v1516 = vmul.f32 %v1068, 0.5
    %v1517 = vmul.f32 %v1069, 0.5
    %v1518 = vmul.f32 %v1070, 0.5
    %v1519 = vmul.f32 %v1071, 0.5
    %v1520 = vmul.f32 %v1072, 0.5
    %v1521 = vmul.f32 %v1073, 0.5
    %v1522 = vmul.f32 %v1074, 0.5
    %v1523 = vmul.f32 %v1075, 0.5
    %v1524 = vmul.f32 %v1076, 0.5
    %v1525 = vmul.f32 %v1077, 0.5
    %v1526 = vmul.f32 %v1078, 0.5
    %v1527 = vmul.f32 %v1079, 0.5
    %v1528 = vmul.f32 %v1080, 0.5
    %v1529 = vmul.f32 %v1081, 0.5
    %v1530 = vmul.f32 %v1082, 0.5
    %v1531 = vmul.f32 %v1083, 0.5
    %v1532 = vmul.f32 %v1084, 0.5
    %v1533 = vmul.f32 %v1085, 0.5
    %v1534 = vmul.f32 %v1086, 0.5
    %v1535 = vmul.f32 %v1087, 0.5
    %v1536 = vmul.f32 %v1088, 0.5
    %v1537 = vmul.f32 %v1089, 0.5
    %v1538 = vmul.f32 %v1090, 0.5
    %v1539 = vmul.f32 %v1091, 0.5
    %v1540 = vmul.f32 %v1092, 0.5
    %v1541 = vmul.f32 %v1093, 0.5
    %v1542 = vmul.f32 %v1094, 0.5
    %v1543 = vmul.f32 %v1095, 0.5
    %v1544 = vmul.f32 %v1096, 0.5
    %v1545 = vmul.f32 %v1097, 0.5
    %v1546 = vmul.f32 %v1098, 0.5
    %v1547 = vmul.f32 %v1099, 0.5
    %v1548 = vmul.f32 %v1100, 0.5
    %v1549 = vmul.f32 %v1101, 0.5
    %v1550 = vmul.f32 %v1102, 0.5
    %v1551 = vmul.f32 %v1103, 0.5
    %v1552 = vmul.f32 %v1104, 0.5
    %v1553 = vmul.f32 %v1105, 0.5
    %v1554 = vmul.f32 %v1106, 0.5
    %v1555 = vmul.f32 %v1107, 0.5
    %v1556 = vmul.f32 %v1108, 0.5
    %v1557 = vmul.f32 %v1109, 0.5
    %v1558 = vmul.f32 %v1110, 0.5
    %v1559 = vmul.f32 %v1111, 0.5
    %v1560 = vmul.f32 %v1112, 0.5
    %v1561 = vmul.f32 %v1113, 0.5
    %v1562 = vmul.f32 %v1114, 0.5
    %v1563 = vmul.f32 %v1115, 0.5
    %v1564 = vmul.f32 %v1116, 0.5
    %v1565 = vmul.f32 %v1117, 0.5
    %v1566 = vmul.f32 %v1118, 0.5
    %v1567 = vmul.f32 %v1119, 0.5
    %v1568 = vmul.f32 %v1120, 0.5
    %v1569 = vsub.f32 %v1505, 1.0
    %v1570 = vsub.f32 %v1506, 1.0
    %v1571 = vsub.f32 %v1507, 1.0
    %v1572 = vsub.f32 %v1508, 1.0
    %v1573 = vsub.f32 %v1509, 1.0
    %v1574 = vsub.f32 %v1510, 1.0
    %v1575 = vsub.f32 %v1511, 1.0
    %v1576 = vsub.f32 %v1512, 1.0
    %v1577 = vsub.f32 %v1513, 1.0
    %v1578 = vsub.f32 %v1514, 1.0
    %v1579 = vsub.f32 %v1515, 1.0
    %v1580 = vsub.f32 %v1516, 1.0
    %v1581 = vsub.f32 %v1517, 1.0
    %v1582 = vsub.f32 %v1518, 1.0
    %v1583 = vsub.f32 %v1519, 1.0
    %v1584 = vsub.f32 %v1520, 1.0
    %v1585 = vsub.f32 %v1521, 1.0
    %v1586 = vsub.f32 %v1522, 1.0
    %v1587 = vsub.f32 %v1523, 1.0
    %v1588 = vsub.f32 %v1524, 1.0
    %v1589 = vsub.f32 %v1525, 1.0
    %v1590 = vsub.f32 %v1526, 1.0
    %v1591 = vsub.f32 %v1527, 1.0
    %v1592 = vsub.f32 %v1528, 1.0
    %v1593 = vsub.f32 %v1529, 1.0
    %v1594 = vsub.f32 %v1530, 1.0
    %v1595 = vsub.f32 %v1531, 1.0
    %v1596 = vsub.f32 %v1532, 1.0
    %v1597 = vsub.f32 %v1533, 1.0
    %v1598 = vsub.f32 %v1534, 1.0
    %v1599 = vsub.f32 %v1535, 1.0
    %v1600 = vsub.f32 %v1536, 1.0
    %v1601 = vsub.f32 %v1537, 1.0
    %v1602 = vsub.f32 %v1538, 1.0
    %v1603 = vsub.f32 %v1539, 1.0
    %v1604 = vsub.f32 %v1540, 1.0
    %v1605 = vsub.f32 %v1541, 1.0
    %v1606 = vsub.f32 %v1542, 1.0
    %v1607 = vsub.f32 %v1543, 1.0
    %v1608 = vsub.f32 %v1544, 1.0
    %v1609 = vsub.f32 %v1545, 1.0
    %v1610 = vsub.f32 %v1546, 1.0
    %v1611 = vsub.f32 %v1547, 1.0
    %v1612 = vsub.f32 %v1548, 1.0
    %v1613 = vsub.f32 %v1549, 1.0
    %v1614 = vsub.f32 %v1550, 1.0
    %v1615 = vsub.f32 %v1551, 1.0
    %v1616 = vsub.f32 %v1552, 1.0
    %v1617 = vsub.f32 %v1553, 1.0
    %v1618 = vsub.f32 %v1554, 1.0
    %v1619 = vsub.f32 %v1555, 1.0
    %v1620 = vsub.f32 %v1556, 1.0
    %v1621 = vsub.f32 %v1557, 1.0
    %v1622 = vsub.f32 %v1558, 1.0
    %v1623 = vsub.f32 %v1559, 1.0
    %v1624 = vsub.f32 %v1560, 1.0
    %v1625 = vsub.f32 %v1561, 1.0
    %v1626 = vsub.f32 %v1562, 1.0
    %v1627 = vsub.f32 %v1563, 1.0
    %v1628 = vsub.f32 %v1564, 1.0
    %v1629 = vsub.f32 %v1565, 1.0
    %v1630 = vsub.f32 %v1566, 1.0
    %v1631 = vsub.f32 %v1567, 1.0
    %v1632 = vsub.f32 %v1568, 1.0
    %v1633 = vmul.f32 %v1441, %v1569
    %v1634 = vmul.f32 %v1442, %v1570
    %v1635 = vmul.f32 %v1443, %v1571
    %v1636 = vmul.f32 %v1444, %v1572
    %v1637 = vmul.f32 %v1445, %v1573
    %v1638 = vmul.f32 %v1446, %v1574
    %v1639 = vmul.f32 %v1447, %v1575
    %v1640 = vmul.f32 %v1448, %v1576
    %v1641 = vmul.f32 %v1449, %v1577
    %v1642 = vmul.f32 %v1450, %v1578
    %v1643 = vmul.f32 %v1451, %v1579
    %v1644 = vmul.f32 %v1452, %v1580
    %v1645 = vmul.f32 %v1453, %v1581
    %v1646 = vmul.f32 %v1454, %v1582
    %v1647 = vmul.f32 %v1455, %v1583
    %v1648 = vmul.f32 %v1456, %v1584
    %v1649 = vmul.f32 %v1457, %v1585
    %v1650 = vmul.f32 %v1458, %v1586
    %v1651 = vmul.f32 %v1459, %v1587
    %v1652 = vmul.f32 %v1460, %v1588
    %v1653 = vmul.f32 %v1461, %v1589
    %v1654 = vmul.f32 %v1462, %v1590
    %v1655 = vmul.f32 %v1463, %v1591
    %v1656 = vmul.f32 %v1464, %v1592
    %v1657 = vmul.f32 %v1465, %v1593
    %v1658 = vmul.f32 %v1466, %v1594
    %v1659 = vmul.f32 %v1467, %v1595
    %v1660 = vmul.f32 %v1468, %v1596
    %v1661 = vmul.f32 %v1469, %v1597
    %v1662 = vmul.f32 %v1470, %v1598
    %v1663 = vmul.f32 %v1471, %v1599
    %v1664 = vmul.f32 %v1472, %v1600
    %v1665 = vmul.f32 %v1473, %v1601
    %v1666 = vmul.f32 %v1474, %v1602
    %v1667 = vmul.f32 %v1475, %v1603
    %v1668 = vmul.f32 %v1476, %v1604
    %v1669 = vmul.f32 %v1477, %v1605
    %v1670 = vmul.f32 %v1478, %v1606
    %v1671 = vmul.f32 %v1479, %v1607
    %v1672 = vmul.f32 %v1480, %v1608
    %v1673 = vmul.f32 %v1481, %v1609
    %v1674 = vmul.f32 %v1482, %v1610
    %v1675 = vmul.f32 %v1483, %v1611
    %v1676 = vmul.f32 %v1484, %v1612
    %v1677 = vmul.f32 %v1485, %v1613
    %v1678 = vmul.f32 %v1486, %v1614
    %v1679 = vmul.f32 %v1487, %v1615
    %v1680 = vmul.f32 %v1488, %v1616
    %v1681 = vmul.f32 %v1489, %v1617
    %v1682 = vmul.f32 %v1490, %v1618
    %v1683 = vmul.f32 %v1491, %v1619
    %v1684 = vmul.f32 %v1492, %v1620
    %v1685 = vmul.f32 %v1493, %v1621
    %v1686 = vmul.f32 %v1494, %v1622
    %v1687 = vmul.f32 %v1495, %v1623
    %v1688 = vmul.f32 %v1496, %v1624
    %v1689 = vmul.f32 %v1497, %v1625
    %v1690 = vmul.f32 %v1498, %v1626
    %v1691 = vmul.f32 %v1499, %v1627
    %v1692 = vmul.f32 %v1500, %v1628
    %v1693 = vmul.f32 %v1501, %v1629
    %v1694 = vmul.f32 %v1502, %v1630
    %v1695 = vmul.f32 %v1503, %v1631
    %v1696 = vmul.f32 %v1504, %v1632
    %v1697 = vadd.f32 %v1633, 0.6666667
    %v1698 = vadd.f32 %v1634, 0.6666667
    %v1699 = vadd.f32 %v1635, 0.6666667
    %v1700 = vadd.f32 %v1636, 0.6666667
    %v1701 = vadd.f32 %v1637, 0.6666667
    %v1702 = vadd.f32 %v1638, 0.6666667
    %v1703 = vadd.f32 %v1639, 0.6666667
    %v1704 = vadd.f32 %v1640, 0.6666667
    %v1705 = vadd.f32 %v1641, 0.6666667
    %v1706 = vadd.f32 %v1642, 0.6666667
    %v1707 = vadd.f32 %v1643, 0.6666667
    %v1708 = vadd.f32 %v1644, 0.6666667
    %v1709 = vadd.f32 %v1645, 0.6666667
    %v1710 = vadd.f32 %v1646, 0.6666667
    %v1711 = vadd.f32 %v1647, 0.6666667
    %v1712 = vadd.f32 %v1648, 0.6666667
    %v1713 = vadd.f32 %v1649, 0.6666667
    %v1714 = vadd.f32 %v1650, 0.6666667
    %v1715 = vadd.f32 %v1651, 0.6666667
    %v1716 = vadd.f32 %v1652, 0.6666667
    %v1717 = vadd.f32 %v1653, 0.6666667
    %v1718 = vadd.f32 %v1654, 0.6666667
    %v1719 = vadd.f32 %v1655, 0.6666667
    %v1720 = vadd.f32 %v1656, 0.6666667
    %v1721 = vadd.f32 %v1657, 0.6666667
    %v1722 = vadd.f32 %v1658, 0.6666667
    %v1723 = vadd.f32 %v1659, 0.6666667
    %v1724 = vadd.f32 %v1660, 0.6666667
    %v1725 = vadd.f32 %v1661, 0.6666667
    %v1726 = vadd.f32 %v1662, 0.6666667
    %v1727 = vadd.f32 %v1663, 0.6666667
    %v1728 = vadd.f32 %v1664, 0.6666667
    %v1729 = vadd.f32 %v1665, 0.6666667
    %v1730 = vadd.f32 %v1666, 0.6666667
    %v1731 = vadd.f32 %v1667, 0.6666667
    %v1732 = vadd.f32 %v1668, 0.6666667
    %v1733 = vadd.f32 %v1669, 0.6666667
    %v1734 = vadd.f32 %v1670, 0.6666667
    %v1735 = vadd.f32 %v1671, 0.6666667
    %v1736 = vadd.f32 %v1672, 0.6666667
    %v1737 = vadd.f32 %v1673, 0.6666667
    %v1738 = vadd.f32 %v1674, 0.6666667
    %v1739 = vadd.f32 %v1675, 0.6666667
    %v1740 = vadd.f32 %v1676, 0.6666667
    %v1741 = vadd.f32 %v1677, 0.6666667
    %v1742 = vadd.f32 %v1678, 0.6666667
    %v1743 = vadd.f32 %v1679, 0.6666667
    %v1744 = vadd.f32 %v1680, 0.6666667
    %v1745 = vadd.f32 %v1681, 0.6666667
    %v1746 = vadd.f32 %v1682, 0.6666667
    %v1747 = vadd.f32 %v1683, 0.6666667
    %v1748 = vadd.f32 %v1684, 0.6666667
    %v1749 = vadd.f32 %v1685, 0.6666667
    %v1750 = vadd.f32 %v1686, 0.6666667
    %v1751 = vadd.f32 %v1687, 0.6666667
    %v1752 = vadd.f32 %v1688, 0.6666667
    %v1753 = vadd.f32 %v1689, 0.6666667
    %v1754 = vadd.f32 %v1690, 0.6666667
    %v1755 = vadd.f32 %v1691, 0.6666667
    %v1756 = vadd.f32 %v1692, 0.6666667
    %v1757 = vadd.f32 %v1693, 0.6666667
    %v1758 = vadd.f32 %v1694, 0.6666667
    %v1759 = vadd.f32 %v1695, 0.6666667
    %v1760 = vadd.f32 %v1696, 0.6666667
    %vm1761 = vcmp.le.f32.partialorder %v1057, 1.0
    %vm1762 = vcmp.le.f32.partialorder %v1058, 1.0
    %vm1763 = vcmp.le.f32.partialorder %v1059, 1.0
    %vm1764 = vcmp.le.f32.partialorder %v1060, 1.0
    %vm1765 = vcmp.le.f32.partialorder %v1061, 1.0
    %vm1766 = vcmp.le.f32.partialorder %v1062, 1.0
    %vm1767 = vcmp.le.f32.partialorder %v1063, 1.0
    %vm1768 = vcmp.le.f32.partialorder %v1064, 1.0
    %vm1769 = vcmp.le.f32.partialorder %v1065, 1.0
    %vm1770 = vcmp.le.f32.partialorder %v1066, 1.0
    %vm1771 = vcmp.le.f32.partialorder %v1067, 1.0
    %vm1772 = vcmp.le.f32.partialorder %v1068, 1.0
    %vm1773 = vcmp.le.f32.partialorder %v1069, 1.0
    %vm1774 = vcmp.le.f32.partialorder %v1070, 1.0
    %vm1775 = vcmp.le.f32.partialorder %v1071, 1.0
    %vm1776 = vcmp.le.f32.partialorder %v1072, 1.0
    %vm1777 = vcmp.le.f32.partialorder %v1073, 1.0
    %vm1778 = vcmp.le.f32.partialorder %v1074, 1.0
    %vm1779 = vcmp.le.f32.partialorder %v1075, 1.0
    %vm1780 = vcmp.le.f32.partialorder %v1076, 1.0
    %vm1781 = vcmp.le.f32.partialorder %v1077, 1.0
    %vm1782 = vcmp.le.f32.partialorder %v1078, 1.0
    %vm1783 = vcmp.le.f32.partialorder %v1079, 1.0
    %vm1784 = vcmp.le.f32.partialorder %v1080, 1.0
    %vm1785 = vcmp.le.f32.partialorder %v1081, 1.0
    %vm1786 = vcmp.le.f32.partialorder %v1082, 1.0
    %vm1787 = vcmp.le.f32.partialorder %v1083, 1.0
    %vm1788 = vcmp.le.f32.partialorder %v1084, 1.0
    %vm1789 = vcmp.le.f32.partialorder %v1085, 1.0
    %vm1790 = vcmp.le.f32.partialorder %v1086, 1.0
    %vm1791 = vcmp.le.f32.partialorder %v1087, 1.0
    %vm1792 = vcmp.le.f32.partialorder %v1088, 1.0
    %vm1793 = vcmp.le.f32.partialorder %v1089, 1.0
    %vm1794 = vcmp.le.f32.partialorder %v1090, 1.0
    %vm1795 = vcmp.le.f32.partialorder %v1091, 1.0
    %vm1796 = vcmp.le.f32.partialorder %v1092, 1.0
    %vm1797 = vcmp.le.f32.partialorder %v1093, 1.0
    %vm1798 = vcmp.le.f32.partialorder %v1094, 1.0
    %vm1799 = vcmp.le.f32.partialorder %v1095, 1.0
    %vm1800 = vcmp.le.f32.partialorder %v1096, 1.0
    %vm1801 = vcmp.le.f32.partialorder %v1097, 1.0
    %vm1802 = vcmp.le.f32.partialorder %v1098, 1.0
    %vm1803 = vcmp.le.f32.partialorder %v1099, 1.0
    %vm1804 = vcmp.le.f32.partialorder %v1100, 1.0
    %vm1805 = vcmp.le.f32.partialorder %v1101, 1.0
    %vm1806 = vcmp.le.f32.partialorder %v1102, 1.0
    %vm1807 = vcmp.le.f32.partialorder %v1103, 1.0
    %vm1808 = vcmp.le.f32.partialorder %v1104, 1.0
    %vm1809 = vcmp.le.f32.partialorder %v1105, 1.0
    %vm1810 = vcmp.le.f32.partialorder %v1106, 1.0
    %vm1811 = vcmp.le.f32.partialorder %v1107, 1.0
    %vm1812 = vcmp.le.f32.partialorder %v1108, 1.0
    %vm1813 = vcmp.le.f32.partialorder %v1109, 1.0
    %vm1814 = vcmp.le.f32.partialorder %v1110, 1.0
    %vm1815 = vcmp.le.f32.partialorder %v1111, 1.0
    %vm1816 = vcmp.le.f32.partialorder %v1112, 1.0
    %vm1817 = vcmp.le.f32.partialorder %v1113, 1.0
    %vm1818 = vcmp.le.f32.partialorder %v1114, 1.0
    %vm1819 = vcmp.le.f32.partialorder %v1115, 1.0
    %vm1820 = vcmp.le.f32.partialorder %v1116, 1.0
    %vm1821 = vcmp.le.f32.partialorder %v1117, 1.0
    %vm1822 = vcmp.le.f32.partialorder %v1118, 1.0
    %vm1823 = vcmp.le.f32.partialorder %v1119, 1.0
    %vm1824 = vcmp.le.f32.partialorder %v1120, 1.0
    %v1825 = vsel %vm1761, %v1697, %v1377
    %v1826 = vsel %vm1762, %v1698, %v1378
    %v1827 = vsel %vm1763, %v1699, %v1379
    %v1828 = vsel %vm1764, %v1700, %v1380
    %v1829 = vsel %vm1765, %v1701, %v1381
    %v1830 = vsel %vm1766, %v1702, %v1382
    %v1831 = vsel %vm1767, %v1703, %v1383
    %v1832 = vsel %vm1768, %v1704, %v1384
    %v1833 = vsel %vm1769, %v1705, %v1385
    %v1834 = vsel %vm1770, %v1706, %v1386
    %v1835 = vsel %vm1771, %v1707, %v1387
    %v1836 = vsel %vm1772, %v1708, %v1388
    %v1837 = vsel %vm1773, %v1709, %v1389
    %v1838 = vsel %vm1774, %v1710, %v1390
    %v1839 = vsel %vm1775, %v1711, %v1391
    %v1840 = vsel %vm1776, %v1712, %v1392
    %v1841 = vsel %vm1777, %v1713, %v1393
    %v1842 = vsel %vm1778, %v1714, %v1394
    %v1843 = vsel %vm1779, %v1715, %v1395
    %v1844 = vsel %vm1780, %v1716, %v1396
    %v1845 = vsel %vm1781, %v1717, %v1397
    %v1846 = vsel %vm1782, %v1718, %v1398
    %v1847 = vsel %vm1783, %v1719, %v1399
    %v1848 = vsel %vm1784, %v1720, %v1400
    %v1849 = vsel %vm1785, %v1721, %v1401
    %v1850 = vsel %vm1786, %v1722, %v1402
    %v1851 = vsel %vm1787, %v1723, %v1403
    %v1852 = vsel %vm1788, %v1724, %v1404
    %v1853 = vsel %vm1789, %v1725, %v1405
    %v1854 = vsel %vm1790, %v1726, %v1406
    %v1855 = vsel %vm1791, %v1727, %v1407
    %v1856 = vsel %vm1792, %v1728, %v1408
    %v1857 = vsel %vm1793, %v1729, %v1409
    %v1858 = vsel %vm1794, %v1730, %v1410
    %v1859 = vsel %vm1795, %v1731, %v1411
    %v1860 = vsel %vm1796, %v1732, %v1412
    %v1861 = vsel %vm1797, %v1733, %v1413
    %v1862 = vsel %vm1798, %v1734, %v1414
    %v1863 = vsel %vm1799, %v1735, %v1415
    %v1864 = vsel %vm1800, %v1736, %v1416
    %v1865 = vsel %vm1801, %v1737, %v1417
    %v1866 = vsel %vm1802, %v1738, %v1418
    %v1867 = vsel %vm1803, %v1739, %v1419
    %v1868 = vsel %vm1804, %v1740, %v1420
    %v1869 = vsel %vm1805, %v1741, %v1421
    %v1870 = vsel %vm1806, %v1742, %v1422
    %v1871 = vsel %vm1807, %v1743, %v1423
    %v1872 = vsel %vm1808, %v1744, %v1424
    %v1873 = vsel %vm1809, %v1745, %v1425
    %v1874 = vsel %vm1810, %v1746, %v1426
    %v1875 = vsel %vm1811, %v1747, %v1427
    %v1876 = vsel %vm1812, %v1748, %v1428
    %v1877 = vsel %vm1813, %v1749, %v1429
    %v1878 = vsel %vm1814, %v1750, %v1430
    %v1879 = vsel %vm1815, %v1751, %v1431
    %v1880 = vsel %vm1816, %v1752, %v1432
    %v1881 = vsel %vm1817, %v1753, %v1433
    %v1882 = vsel %vm1818, %v1754, %v1434
    %v1883 = vsel %vm1819, %v1755, %v1435
    %v1884 = vsel %vm1820, %v1756, %v1436
    %v1885 = vsel %vm1821, %v1757, %v1437
    %v1886 = vsel %vm1822, %v1758, %v1438
    %v1887 = vsel %vm1823, %v1759, %v1439
    %v1888 = vsel %vm1824, %v1760, %v1440
    %v1889 = vpack.c.bf16 %v1829, %v1825
    %v1890 = vpack.c.bf16 %v1830, %v1826
    %v1891 = vpack.c.bf16 %v1831, %v1827
    %v1892 = vpack.c.bf16 %v1832, %v1828
    %v1893 = vpack.c.bf16 %v1837, %v1833
    %v1894 = vpack.c.bf16 %v1838, %v1834
    %v1895 = vpack.c.bf16 %v1839, %v1835
    %v1896 = vpack.c.bf16 %v1840, %v1836
    %v1897 = vpack.c.bf16 %v1845, %v1841
    %v1898 = vpack.c.bf16 %v1846, %v1842
    %v1899 = vpack.c.bf16 %v1847, %v1843
    %v1900 = vpack.c.bf16 %v1848, %v1844
    %v1901 = vpack.c.bf16 %v1853, %v1849
    %v1902 = vpack.c.bf16 %v1854, %v1850
    %v1903 = vpack.c.bf16 %v1855, %v1851
    %v1904 = vpack.c.bf16 %v1856, %v1852
    %v1905 = vpack.c.bf16 %v1861, %v1857
    %v1906 = vpack.c.bf16 %v1862, %v1858
    %v1907 = vpack.c.bf16 %v1863, %v1859
    %v1908 = vpack.c.bf16 %v1864, %v1860
    %v1909 = vpack.c.bf16 %v1869, %v1865
    %v1910 = vpack.c.bf16 %v1870, %v1866
    %v1911 = vpack.c.bf16 %v1871, %v1867
    %v1912 = vpack.c.bf16 %v1872, %v1868
    %v1913 = vpack.c.bf16 %v1877, %v1873
    %v1914 = vpack.c.bf16 %v1878, %v1874
    %v1915 = vpack.c.bf16 %v1879, %v1875
    %v1916 = vpack.c.bf16 %v1880, %v1876
    %v1917 = vpack.c.bf16 %v1885, %v1881
    %v1918 = vpack.c.bf16 %v1886, %v1882
    %v1919 = vpack.c.bf16 %v1887, %v1883
    %v1920 = vpack.c.bf16 %v1888, %v1884
    %1953 = vrot.lane.b32.xlu0 %v1889, 64
    %v1954 = vpop.permute.xlu0 %1953
    %1955 = vrot.lane.b32.xlu0 %v1890, 64
    %v1956 = vpop.permute.xlu0 %1955
    %1957 = vrot.lane.b32.xlu0 %v1891, 64
    %v1958 = vpop.permute.xlu0 %1957
    %1959 = vrot.lane.b32.xlu0 %v1892, 64
    %v1960 = vpop.permute.xlu0 %1959
    %1961 = vrot.lane.b32.xlu0 %v1893, 64
    %v1962 = vpop.permute.xlu0 %1961
    %1963 = vrot.lane.b32.xlu0 %v1894, 64
    %v1964 = vpop.permute.xlu0 %1963
    %1965 = vrot.lane.b32.xlu0 %v1895, 64
    %v1966 = vpop.permute.xlu0 %1965
    %1967 = vrot.lane.b32.xlu0 %v1896, 64
    %v1968 = vpop.permute.xlu0 %1967
    %1969 = vrot.lane.b32.xlu0 %v1897, 64
    %v1970 = vpop.permute.xlu0 %1969
    %1971 = vrot.lane.b32.xlu0 %v1898, 64
    %v1972 = vpop.permute.xlu0 %1971
    %1973 = vrot.lane.b32.xlu0 %v1899, 64
    %v1974 = vpop.permute.xlu0 %1973
    %1975 = vrot.lane.b32.xlu0 %v1900, 64
    %v1976 = vpop.permute.xlu0 %1975
    %1977 = vrot.lane.b32.xlu0 %v1901, 64
    %v1978 = vpop.permute.xlu0 %1977
    %1979 = vrot.lane.b32.xlu0 %v1902, 64
    %v1980 = vpop.permute.xlu0 %1979
    %1981 = vrot.lane.b32.xlu0 %v1903, 64
    %v1982 = vpop.permute.xlu0 %1981
    %1983 = vrot.lane.b32.xlu0 %v1904, 64
    %v1984 = vpop.permute.xlu0 %1983
    %1985 = vrot.lane.b32.xlu0 %v1905, 64
    %v1986 = vpop.permute.xlu0 %1985
    %1987 = vrot.lane.b32.xlu0 %v1906, 64
    %v1988 = vpop.permute.xlu0 %1987
    %1989 = vrot.lane.b32.xlu0 %v1907, 64
    %v1990 = vpop.permute.xlu0 %1989
    %1991 = vrot.lane.b32.xlu0 %v1908, 64
    %v1992 = vpop.permute.xlu0 %1991
    %1993 = vrot.lane.b32.xlu0 %v1909, 64
    %v1994 = vpop.permute.xlu0 %1993
    %1995 = vrot.lane.b32.xlu0 %v1910, 64
    %v1996 = vpop.permute.xlu0 %1995
    %1997 = vrot.lane.b32.xlu0 %v1911, 64
    %v1998 = vpop.permute.xlu0 %1997
    %1999 = vrot.lane.b32.xlu0 %v1912, 64
    %v2000 = vpop.permute.xlu0 %1999
    %2001 = vrot.lane.b32.xlu0 %v1913, 64
    %v2002 = vpop.permute.xlu0 %2001
    %2003 = vrot.lane.b32.xlu0 %v1914, 64
    %v2004 = vpop.permute.xlu0 %2003
    %2005 = vrot.lane.b32.xlu0 %v1915, 64
    %v2006 = vpop.permute.xlu0 %2005
    %2007 = vrot.lane.b32.xlu0 %v1916, 64
    %v2008 = vpop.permute.xlu0 %2007
    %2009 = vrot.lane.b32.xlu0 %v1917, 64
    %v2010 = vpop.permute.xlu0 %2009
    %2011 = vrot.lane.b32.xlu0 %v1918, 64
    %v2012 = vpop.permute.xlu0 %2011
    %2013 = vrot.lane.b32.xlu0 %v1919, 64
    %v2014 = vpop.permute.xlu0 %2013
    %2015 = vrot.lane.b32.xlu0 %v1920, 64
    %v2016 = vpop.permute.xlu0 %2015
    %vm2017 = vcmask 523264
    %v2018 = vsel %vm2017, %v1954, %v1956
    %v2019 = vsel %vm2017, %v1956, %v1958
    %v2020 = vsel %vm2017, %v1958, %v1960
    %v2021 = vsel %vm2017, %v1962, %v1964
    %v2022 = vsel %vm2017, %v1964, %v1966
    %v2023 = vsel %vm2017, %v1966, %v1968
    %v2024 = vsel %vm2017, %v1970, %v1972
    %v2025 = vsel %vm2017, %v1972, %v1974
    %v2026 = vsel %vm2017, %v1974, %v1976
    %v2027 = vsel %vm2017, %v1978, %v1980
    %v2028 = vsel %vm2017, %v1980, %v1982
    %v2029 = vsel %vm2017, %v1982, %v1984
    %v2030 = vsel %vm2017, %v1986, %v1988
    %v2031 = vsel %vm2017, %v1988, %v1990
    %v2032 = vsel %vm2017, %v1990, %v1992
    %v2033 = vsel %vm2017, %v1994, %v1996
    %v2034 = vsel %vm2017, %v1996, %v1998
    %v2035 = vsel %vm2017, %v1998, %v2000
    %v2036 = vsel %vm2017, %v2002, %v2004
    %v2037 = vsel %vm2017, %v2004, %v2006
    %v2038 = vsel %vm2017, %v2006, %v2008
    %v2039 = vsel %vm2017, %v2010, %v2012
    %v2040 = vsel %vm2017, %v2012, %v2014
    %v2041 = vsel %vm2017, %v2014, %v2016
    %v2068 = vsel %vm273, %v867, %v1954
    %v2072 = vsel %vm273, %v868, %v1962
    %v2076 = vsel %vm273, %v869, %v1970
    %v2080 = vsel %vm273, %v870, %v1978
    %v2084 = vsel %vm273, %v871, %v1986
    %v2088 = vsel %vm273, %v872, %v1994
    %v2092 = vsel %vm273, %v873, %v2002
    %v2096 = vsel %vm273, %v874, %v2010
    %v2098 = vld [vmem:[#allocation16] sm:$0xf]
    %v2099 = vld [vmem:[#allocation16 + $0x4] sm:$0xf]
    %v2100 = vld [vmem:[#allocation16 + $0x8] sm:$0xf]
    %v2101 = vld [vmem:[#allocation16 + $0xc] sm:$0xf]
    %v2102 = vld [vmem:[#allocation16 + $0x10] sm:$0xf]
    %v2103 = vld [vmem:[#allocation16 + $0x14] sm:$0xf]
    %v2104 = vld [vmem:[#allocation16 + $0x18] sm:$0xf]
    %v2105 = vld [vmem:[#allocation16 + $0x1c] sm:$0xf]
    %v2106 = vld [vmem:[#allocation16 + $0x20] sm:$0xf]
    %v2107 = vld [vmem:[#allocation16 + $0x24] sm:$0xf]
    %v2108 = vld [vmem:[#allocation16 + $0x28] sm:$0xf]
    %v2109 = vld [vmem:[#allocation16 + $0x2c] sm:$0xf]
    %v2110 = vld [vmem:[#allocation16 + $0x30] sm:$0xf]
    %v2111 = vld [vmem:[#allocation16 + $0x34] sm:$0xf]
    %v2112 = vld [vmem:[#allocation16 + $0x38] sm:$0xf]
    %v2113 = vld [vmem:[#allocation16 + $0x3c] sm:$0xf]
    %v2114 = vld [vmem:[#allocation16 + $0x40] sm:$0xf]
    %v2115 = vld [vmem:[#allocation16 + $0x44] sm:$0xf]
    %v2116 = vld [vmem:[#allocation16 + $0x48] sm:$0xf]
    %v2117 = vld [vmem:[#allocation16 + $0x4c] sm:$0xf]
    %v2118 = vld [vmem:[#allocation16 + $0x50] sm:$0xf]
    %v2119 = vld [vmem:[#allocation16 + $0x54] sm:$0xf]
    %v2120 = vld [vmem:[#allocation16 + $0x58] sm:$0xf]
    %v2121 = vld [vmem:[#allocation16 + $0x5c] sm:$0xf]
    %v2122 = vld [vmem:[#allocation16 + $0x60] sm:$0xf]
    %v2123 = vld [vmem:[#allocation16 + $0x64] sm:$0xf]
    %v2124 = vld [vmem:[#allocation16 + $0x68] sm:$0xf]
    %v2125 = vld [vmem:[#allocation16 + $0x6c] sm:$0xf]
    %v2126 = vld [vmem:[#allocation16 + $0x70] sm:$0xf]
    %v2127 = vld [vmem:[#allocation16 + $0x74] sm:$0xf]
    %v2128 = vld [vmem:[#allocation16 + $0x78] sm:$0xf]
    %v2129 = vld [vmem:[#allocation16 + $0x7c] sm:$0xf]
    %v2130 = vld [vmem:[#allocation16 + $0x80] sm:$0xf]
    %v2131 = vld [vmem:[#allocation16 + $0x84] sm:$0xf]
    %v2132 = vld [vmem:[#allocation16 + $0x88] sm:$0xf]
    %v2133 = vld [vmem:[#allocation16 + $0x8c] sm:$0xf]
    %v2134 = vld [vmem:[#allocation16 + $0x90] sm:$0xf]
    %v2135 = vld [vmem:[#allocation16 + $0x94] sm:$0xf]
    %v2136 = vld [vmem:[#allocation16 + $0x98] sm:$0xf]
    %v2137 = vld [vmem:[#allocation16 + $0x9c] sm:$0xf]
    %v2138 = vld [vmem:[#allocation16 + $0xa0] sm:$0xf]
    %v2139 = vld [vmem:[#allocation16 + $0xa4] sm:$0xf]
    %v2140 = vld [vmem:[#allocation16 + $0xa8] sm:$0xf]
    %v2141 = vld [vmem:[#allocation16 + $0xac] sm:$0xf]
    %v2142 = vld [vmem:[#allocation16 + $0xb0] sm:$0xf]
    %v2143 = vld [vmem:[#allocation16 + $0xb4] sm:$0xf]
    %v2144 = vld [vmem:[#allocation16 + $0xb8] sm:$0xf]
    %v2145 = vld [vmem:[#allocation16 + $0xbc] sm:$0xf]
    %v2146 = vld [vmem:[#allocation16 + $0xc0] sm:$0xf]
    %v2147 = vld [vmem:[#allocation16 + $0xc4] sm:$0xf]
    %v2148 = vld [vmem:[#allocation16 + $0xc8] sm:$0xf]
    %v2149 = vld [vmem:[#allocation16 + $0xcc] sm:$0xf]
    %v2150 = vld [vmem:[#allocation16 + $0xd0] sm:$0xf]
    %v2151 = vld [vmem:[#allocation16 + $0xd4] sm:$0xf]
    %v2152 = vld [vmem:[#allocation16 + $0xd8] sm:$0xf]
    %v2153 = vld [vmem:[#allocation16 + $0xdc] sm:$0xf]
    %v2154 = vld [vmem:[#allocation16 + $0xe0] sm:$0xf]
    %v2155 = vld [vmem:[#allocation16 + $0xe4] sm:$0xf]
    %v2156 = vld [vmem:[#allocation16 + $0xe8] sm:$0xf]
    %v2157 = vld [vmem:[#allocation16 + $0xec] sm:$0xf]
    %v2158 = vld [vmem:[#allocation16 + $0xf0] sm:$0xf]
    %v2159 = vld [vmem:[#allocation16 + $0xf4] sm:$0xf]
    %v2160 = vld [vmem:[#allocation16 + $0xf8] sm:$0xf]
    %v2161 = vld [vmem:[#allocation16 + $0xfc] sm:$0xf]
    %v2162 = vld [vmem:[#allocation16 + $0x100] sm:$0xf]
    %v2163 = vld [vmem:[#allocation16 + $0x104] sm:$0xf]
    %v2164 = vld [vmem:[#allocation16 + $0x108] sm:$0xf]
    %v2165 = vld [vmem:[#allocation16 + $0x10c] sm:$0xf]
    %v2166 = vld [vmem:[#allocation16 + $0x110] sm:$0xf]
    %v2167 = vld [vmem:[#allocation16 + $0x114] sm:$0xf]
    %v2168 = vld [vmem:[#allocation16 + $0x118] sm:$0xf]
    %v2169 = vld [vmem:[#allocation16 + $0x11c] sm:$0xf]
    %v2242 = vunpack.c.l.b16 %v2098
    %v2243 = vunpack.c.l.b16 %v2099
    %v2244 = vunpack.c.l.b16 %v2100
    %v2245 = vunpack.c.l.b16 %v2101
    %v2246 = vunpack.c.l.b16 %v2102
    %v2247 = vunpack.c.l.b16 %v2103
    %v2248 = vunpack.c.l.b16 %v2104
    %v2249 = vunpack.c.l.b16 %v2105
    %v2250 = vunpack.c.l.b16 %v2106
    %v2251 = vunpack.c.l.b16 %v2107
    %v2252 = vunpack.c.l.b16 %v2108
    %v2253 = vunpack.c.l.b16 %v2109
    %v2254 = vunpack.c.l.b16 %v2110
    %v2255 = vunpack.c.l.b16 %v2111
    %v2256 = vunpack.c.l.b16 %v2112
    %v2257 = vunpack.c.l.b16 %v2113
    %v2258 = vunpack.c.l.b16 %v2114
    %v2259 = vunpack.c.l.b16 %v2115
    %v2260 = vunpack.c.l.b16 %v2116
    %v2261 = vunpack.c.l.b16 %v2117
    %v2262 = vunpack.c.l.b16 %v2118
    %v2263 = vunpack.c.l.b16 %v2119
    %v2264 = vunpack.c.l.b16 %v2120
    %v2265 = vunpack.c.l.b16 %v2121
    %v2266 = vunpack.c.l.b16 %v2122
    %v2267 = vunpack.c.l.b16 %v2123
    %v2268 = vunpack.c.l.b16 %v2124
    %v2269 = vunpack.c.l.b16 %v2125
    %v2270 = vunpack.c.l.b16 %v2126
    %v2271 = vunpack.c.l.b16 %v2127
    %v2272 = vunpack.c.l.b16 %v2128
    %v2273 = vunpack.c.l.b16 %v2129
    %v2274 = vunpack.c.l.b16 %v2130
    %v2275 = vunpack.c.l.b16 %v2131
    %v2276 = vunpack.c.l.b16 %v2132
    %v2277 = vunpack.c.l.b16 %v2133
    %v2278 = vunpack.c.l.b16 %v2134
    %v2279 = vunpack.c.l.b16 %v2135
    %v2280 = vunpack.c.l.b16 %v2136
    %v2281 = vunpack.c.l.b16 %v2137
    %v2282 = vunpack.c.l.b16 %v2138
    %v2283 = vunpack.c.l.b16 %v2139
    %v2284 = vunpack.c.l.b16 %v2140
    %v2285 = vunpack.c.l.b16 %v2141
    %v2286 = vunpack.c.l.b16 %v2142
    %v2287 = vunpack.c.l.b16 %v2143
    %v2288 = vunpack.c.l.b16 %v2144
    %v2289 = vunpack.c.l.b16 %v2145
    %v2290 = vunpack.c.l.b16 %v2146
    %v2291 = vunpack.c.l.b16 %v2147
    %v2292 = vunpack.c.l.b16 %v2148
    %v2293 = vunpack.c.l.b16 %v2149
    %v2294 = vunpack.c.l.b16 %v2150
    %v2295 = vunpack.c.l.b16 %v2151
    %v2296 = vunpack.c.l.b16 %v2152
    %v2297 = vunpack.c.l.b16 %v2153
    %v2298 = vunpack.c.l.b16 %v2154
    %v2299 = vunpack.c.l.b16 %v2155
    %v2300 = vunpack.c.l.b16 %v2156
    %v2301 = vunpack.c.l.b16 %v2157
    %v2302 = vunpack.c.l.b16 %v2158
    %v2303 = vunpack.c.l.b16 %v2159
    %v2304 = vunpack.c.l.b16 %v2160
    %v2305 = vunpack.c.l.b16 %v2161
    %v2306 = vunpack.c.l.b16 %v2162
    %v2307 = vunpack.c.l.b16 %v2163
    %v2308 = vunpack.c.l.b16 %v2164
    %v2309 = vunpack.c.l.b16 %v2165
    %v2310 = vunpack.c.l.b16 %v2166
    %v2311 = vunpack.c.l.b16 %v2167
    %v2312 = vunpack.c.l.b16 %v2168
    %v2313 = vunpack.c.l.b16 %v2169
    %v2314 = vpack.c.b16 %v2243, %v2242
    %v2315 = vpack.c.b16 %v2245, %v2244
    %v2316 = vpack.c.b16 %v2247, %v2246
    %v2317 = vpack.c.b16 %v2249, %v2248
    %v2318 = vpack.c.b16 %v2251, %v2250
    %v2319 = vpack.c.b16 %v2253, %v2252
    %v2320 = vpack.c.b16 %v2255, %v2254
    %v2321 = vpack.c.b16 %v2257, %v2256
    %v2322 = vpack.c.b16 %v2259, %v2258
    %v2323 = vpack.c.b16 %v2261, %v2260
    %v2324 = vpack.c.b16 %v2263, %v2262
    %v2325 = vpack.c.b16 %v2265, %v2264
    %v2326 = vpack.c.b16 %v2267, %v2266
    %v2327 = vpack.c.b16 %v2269, %v2268
    %v2328 = vpack.c.b16 %v2271, %v2270
    %v2329 = vpack.c.b16 %v2273, %v2272
    %v2330 = vpack.c.b16 %v2275, %v2274
    %v2331 = vpack.c.b16 %v2277, %v2276
    %v2332 = vpack.c.b16 %v2279, %v2278
    %v2333 = vpack.c.b16 %v2281, %v2280
    %v2334 = vpack.c.b16 %v2283, %v2282
    %v2335 = vpack.c.b16 %v2285, %v2284
    %v2336 = vpack.c.b16 %v2287, %v2286
    %v2337 = vpack.c.b16 %v2289, %v2288
    %v2338 = vpack.c.b16 %v2291, %v2290
    %v2339 = vpack.c.b16 %v2293, %v2292
    %v2340 = vpack.c.b16 %v2295, %v2294
    %v2341 = vpack.c.b16 %v2297, %v2296
    %v2342 = vpack.c.b16 %v2299, %v2298
    %v2343 = vpack.c.b16 %v2301, %v2300
    %v2344 = vpack.c.b16 %v2303, %v2302
    %v2345 = vpack.c.b16 %v2305, %v2304
    %v2346 = vpack.c.b16 %v2307, %v2306
    %v2347 = vpack.c.b16 %v2309, %v2308
    %v2348 = vpack.c.b16 %v2311, %v2310
    %v2349 = vpack.c.b16 %v2313, %v2312
    %v2387 = vsel %vm273, %v1960, 0
    %v2390 = vsel %vm273, %v1968, 0
    %v2393 = vsel %vm273, %v1976, 0
    %v2396 = vsel %vm273, %v1984, 0
    %v2399 = vsel %vm273, %v1992, 0
    %v2402 = vsel %vm273, %v2000, 0
    %v2405 = vsel %vm273, %v2008, 0
    %v2408 = vsel %vm273, %v2016, 0
    %2410 = vmatprep.subr.bf16.mxu0 0
    %2411 = vmatpush1.bf16.msra.mxu0 %v2314
    %2412 = vmatprep.subr.bf16.mxu0 0
    %2413 = vmatpush1.bf16.msra.mxu0 %v2315
    %2414 = vmatprep.subr.bf16.mxu0 0
    %2415 = vmatpush1.bf16.msra.mxu0 %v2316
    %2416 = vmatprep.subr.bf16.mxu0 0
    %2417 = vmatpush1.bf16.msra.mxu0 %v2317
    %2418 = vmatprep.subr.bf16.mxu0 0
    %2419 = vmatpush1.bf16.msra.mxu0 %v2318
    %2420 = vmatprep.subr.bf16.mxu0 0
    %2421 = vmatpush1.bf16.msra.mxu0 %v2319
    %2422 = vmatprep.subr.bf16.mxu0 0
    %2423 = vmatpush1.bf16.msra.mxu0 %v2320
    %2424 = vmatprep.subr.bf16.mxu0 0
    %2425 = vmatpush1.bf16.msra.mxu0 %v2321
    %2426 = vmatprep.subr.bf16.mxu0 0
    %2427 = vmatpush1.bf16.msra.mxu0 %v2322
    %2428 = vmatprep.subr.bf16.mxu0 0
    %2429 = vmatpush1.bf16.msra.mxu0 %v2323
    %2430 = vmatprep.subr.bf16.mxu0 0
    %2431 = vmatpush1.bf16.msra.mxu0 %v2324
    %2432 = vmatprep.subr.bf16.mxu0 0
    %2433 = vmatpush1.bf16.msra.mxu0 %v2325
    %2434 = vmatprep.subr.bf16.mxu0 0
    %2435 = vmatpush1.bf16.msra.mxu0 %v2326
    %2436 = vmatprep.subr.bf16.mxu0 0
    %2437 = vmatpush1.bf16.msra.mxu0 %v2327
    %2438 = vmatprep.subr.bf16.mxu0 0
    %2439 = vmatpush1.bf16.msra.mxu0 %v2328
    %2440 = vmatprep.subr.bf16.mxu0 0
    %2441 = vmatpush1.bf16.msra.mxu0 %v2329
    %2442 = vmatprep.mubr.bf16.mxu0 %v2018
    %2443 = vmatmul.mubr.bf16.gmra.mrb[0].mxu0 %v2068
    %v2444 = vpop.f32.mrb[0].mxu0
    %v2445 = vadd.f32 0.0, %v2444
    %v2446 = vpop.f32.mrb[0].mxu0
    %v2447 = vpop.f32.mrb[0].mxu0
    %v2448 = vadd.f32 0.0, %v2447
    %v2449 = vpop.f32.mrb[0].mxu0
    %2450 = vmatprep.mubr.bf16.mxu0 %v2021
    %2451 = vmatmul.mubr.bf16.gmra.mrb[0].mxu0 %v2072
    %v2452 = vpop.f32.mrb[0].mxu0
    %v2453 = vadd.f32 0.0, %v2452
    %v2454 = vpop.f32.mrb[0].mxu0
    %v2455 = vpop.f32.mrb[0].mxu0
    %v2456 = vadd.f32 0.0, %v2455
    %v2457 = vpop.f32.mrb[0].mxu0
    %2458 = vmatprep.mubr.bf16.mxu0 %v2024
    %2459 = vmatmul.mubr.bf16.gmra.mrb[0].mxu0 %v2076
    %v2460 = vpop.f32.mrb[0].mxu0
    %v2461 = vadd.f32 0.0, %v2460
    %v2462 = vpop.f32.mrb[0].mxu0
    %v2463 = vpop.f32.mrb[0].mxu0
    %v2464 = vadd.f32 0.0, %v2463
    %v2465 = vpop.f32.mrb[0].mxu0
    %2466 = vmatprep.mubr.bf16.mxu0 %v2027
    %2467 = vmatmul.mubr.bf16.gmra.mrb[0].mxu0 %v2080
    %v2468 = vpop.f32.mrb[0].mxu0
    %v2469 = vadd.f32 0.0, %v2468
    %v2470 = vpop.f32.mrb[0].mxu0
    %v2471 = vpop.f32.mrb[0].mxu0
    %v2472 = vadd.f32 0.0, %v2471
    %v2473 = vpop.f32.mrb[0].mxu0
    %2474 = vmatprep.mubr.bf16.mxu0 %v2030
    %2475 = vmatmul.mubr.bf16.gmra.mrb[0].mxu0 %v2084
    %v2476 = vpop.f32.mrb[0].mxu0
    %v2477 = vadd.f32 0.0, %v2476
    %v2478 = vpop.f32.mrb[0].mxu0
    %v2479 = vpop.f32.mrb[0].mxu0
    %v2480 = vadd.f32 0.0, %v2479
    %v2481 = vpop.f32.mrb[0].mxu0
    %2482 = vmatprep.mubr.bf16.mxu0 %v2033
    %2483 = vmatmul.mubr.bf16.gmra.mrb[0].mxu0 %v2088
    %v2484 = vpop.f32.mrb[0].mxu0
    %v2485 = vadd.f32 0.0, %v2484
    %v2486 = vpop.f32.mrb[0].mxu0
    %v2487 = vpop.f32.mrb[0].mxu0
    %v2488 = vadd.f32 0.0, %v2487
    %v2489 = vpop.f32.mrb[0].mxu0
    %2490 = vmatprep.mubr.bf16.mxu0 %v2036
    %2491 = vmatmul.mubr.bf16.gmra.mrb[0].mxu0 %v2092
    %v2492 = vpop.f32.mrb[0].mxu0
    %v2493 = vadd.f32 0.0, %v2492
    %v2494 = vpop.f32.mrb[0].mxu0
    %v2495 = vpop.f32.mrb[0].mxu0
    %v2496 = vadd.f32 0.0, %v2495
    %v2497 = vpop.f32.mrb[0].mxu0
    %2498 = vmatprep.mubr.bf16.mxu0 %v2039
    %2499 = vmatmul.mubr.bf16.gmra.mrb[0].mxu0 %v2096
    %v2500 = vpop.f32.mrb[0].mxu0
    %v2501 = vadd.f32 0.0, %v2500
    %v2502 = vpop.f32.mrb[0].mxu0
    %v2503 = vpop.f32.mrb[0].mxu0
    %v2504 = vadd.f32 0.0, %v2503
    %v2505 = vpop.f32.mrb[0].mxu0
    %2506 = vdwg.mxu0
    %2507 = vmatprep.subr.bf16.mxu0 0
    %2508 = vmatpush1.bf16.msra.mxu0 %v2330
    %2509 = vmatprep.subr.bf16.mxu0 0
    %2510 = vmatpush1.bf16.msra.mxu0 %v2331
    %2511 = vmatprep.subr.bf16.mxu0 0
    %2512 = vmatpush1.bf16.msra.mxu0 %v2332
    %2513 = vmatprep.subr.bf16.mxu0 0
    %2514 = vmatpush1.bf16.msra.mxu0 %v2333
    %2515 = vmatprep.subr.bf16.mxu0 0
    %2516 = vmatpush1.bf16.msra.mxu0 %v2334
    %2517 = vmatprep.subr.bf16.mxu0 0
    %2518 = vmatpush1.bf16.msra.mxu0 %v2335
    %2519 = vmatprep.subr.bf16.mxu0 0
    %2520 = vmatpush1.bf16.msra.mxu0 %v2336
    %2521 = vmatprep.subr.bf16.mxu0 0
    %2522 = vmatpush1.bf16.msra.mxu0 %v2337
    %2523 = vmatprep.subr.bf16.mxu0 0
    %2524 = vmatpush1.bf16.msra.mxu0 %v2338
    %2525 = vmatprep.subr.bf16.mxu0 0
    %2526 = vmatpush1.bf16.msra.mxu0 %v2339
    %2527 = vmatprep.subr.bf16.mxu0 0
    %2528 = vmatpush1.bf16.msra.mxu0 %v2340
    %2529 = vmatprep.subr.bf16.mxu0 0
    %2530 = vmatpush1.bf16.msra.mxu0 %v2341
    %2531 = vmatprep.subr.bf16.mxu0 0
    %2532 = vmatpush1.bf16.msra.mxu0 %v2342
    %2533 = vmatprep.subr.bf16.mxu0 0
    %2534 = vmatpush1.bf16.msra.mxu0 %v2343
    %2535 = vmatprep.subr.bf16.mxu0 0
    %2536 = vmatpush1.bf16.msra.mxu0 %v2344
    %2537 = vmatprep.subr.bf16.mxu0 0
    %2538 = vmatpush1.bf16.msra.mxu0 %v2345
    %2539 = vmatprep.mubr.bf16.mxu0 %v2020
    %2540 = vmatmul.mubr.bf16.gmra.mrb[0].mxu0 %v2019
    %v2541 = vpop.f32.mrb[0].mxu0
    %v2542 = vadd.f32 %v2445, %v2541
    %v2543 = vpop.f32.mrb[0].mxu0
    %v2544 = vpop.f32.mrb[0].mxu0
    %v2545 = vadd.f32 %v2448, %v2544
    %v2546 = vpop.f32.mrb[0].mxu0
    %2547 = vmatprep.mubr.bf16.mxu0 %v2023
    %2548 = vmatmul.mubr.bf16.gmra.mrb[0].mxu0 %v2022
    %v2549 = vpop.f32.mrb[0].mxu0
    %v2550 = vadd.f32 %v2453, %v2549
    %v2551 = vpop.f32.mrb[0].mxu0
    %v2552 = vpop.f32.mrb[0].mxu0
    %v2553 = vadd.f32 %v2456, %v2552
    %v2554 = vpop.f32.mrb[0].mxu0
    %2555 = vmatprep.mubr.bf16.mxu0 %v2026
    %2556 = vmatmul.mubr.bf16.gmra.mrb[0].mxu0 %v2025
    %v2557 = vpop.f32.mrb[0].mxu0
    %v2558 = vadd.f32 %v2461, %v2557
    %v2559 = vpop.f32.mrb[0].mxu0
    %v2560 = vpop.f32.mrb[0].mxu0
    %v2561 = vadd.f32 %v2464, %v2560
    %v2562 = vpop.f32.mrb[0].mxu0
    %2563 = vmatprep.mubr.bf16.mxu0 %v2029
    %2564 = vmatmul.mubr.bf16.gmra.mrb[0].mxu0 %v2028
    %v2565 = vpop.f32.mrb[0].mxu0
    %v2566 = vadd.f32 %v2469, %v2565
    %v2567 = vpop.f32.mrb[0].mxu0
    %v2568 = vpop.f32.mrb[0].mxu0
    %v2569 = vadd.f32 %v2472, %v2568
    %v2570 = vpop.f32.mrb[0].mxu0
    %2571 = vmatprep.mubr.bf16.mxu0 %v2032
    %2572 = vmatmul.mubr.bf16.gmra.mrb[0].mxu0 %v2031
    %v2573 = vpop.f32.mrb[0].mxu0
    %v2574 = vadd.f32 %v2477, %v2573
    %v2575 = vpop.f32.mrb[0].mxu0
    %v2576 = vpop.f32.mrb[0].mxu0
    %v2577 = vadd.f32 %v2480, %v2576
    %v2578 = vpop.f32.mrb[0].mxu0
    %2579 = vmatprep.mubr.bf16.mxu0 %v2035
    %2580 = vmatmul.mubr.bf16.gmra.mrb[0].mxu0 %v2034
    %v2581 = vpop.f32.mrb[0].mxu0
    %v2582 = vadd.f32 %v2485, %v2581
    %v2583 = vpop.f32.mrb[0].mxu0
    %v2584 = vpop.f32.mrb[0].mxu0
    %v2585 = vadd.f32 %v2488, %v2584
    %v2586 = vpop.f32.mrb[0].mxu0
    %2587 = vmatprep.mubr.bf16.mxu0 %v2038
    %2588 = vmatmul.mubr.bf16.gmra.mrb[0].mxu0 %v2037
    %v2589 = vpop.f32.mrb[0].mxu0
    %v2590 = vadd.f32 %v2493, %v2589
    %v2591 = vpop.f32.mrb[0].mxu0
    %v2592 = vpop.f32.mrb[0].mxu0
    %v2593 = vadd.f32 %v2496, %v2592
    %v2594 = vpop.f32.mrb[0].mxu0
    %2595 = vmatprep.mubr.bf16.mxu0 %v2041
    %2596 = vmatmul.mubr.bf16.gmra.mrb[0].mxu0 %v2040
    %v2597 = vpop.f32.mrb[0].mxu0
    %v2598 = vadd.f32 %v2501, %v2597
    %v2599 = vpop.f32.mrb[0].mxu0
    %v2600 = vpop.f32.mrb[0].mxu0
    %v2601 = vadd.f32 %v2504, %v2600
    %v2602 = vpop.f32.mrb[0].mxu0
    %2603 = vdwg.mxu0
    %2604 = vmatprep.subr.bf16.mxu0 0
    %2605 = vmatpush1.bf16.msra.mxu0 %v2346
    %2606 = vmatprep.subr.bf16.mxu0 0
    %2607 = vmatpush1.bf16.msra.mxu0 %v2347
    %2608 = vmatprep.subr.bf16.mxu0 0
    %2609 = vmatpush1.bf16.msra.mxu0 %v2348
    %2610 = vmatprep.subr.bf16.mxu0 0
    %2611 = vmatpush1.bf16.msra.mxu0 %v2349
    %2612 = vmatprep.subr.bf16.mxu0 0
    %2613 = vmatpush1.bf16.msra.mxu0 0
    %2614 = vmatprep.subr.bf16.mxu0 0
    %2615 = vmatpush1.bf16.msra.mxu0 0
    %2616 = vmatprep.subr.bf16.mxu0 0
    %2617 = vmatpush1.bf16.msra.mxu0 0
    %2618 = vmatprep.subr.bf16.mxu0 0
    %2619 = vmatpush1.bf16.msra.mxu0 0
    %2620 = vmatprep.subr.bf16.mxu0 0
    %2621 = vmatpush1.bf16.msra.mxu0 0
    %2622 = vmatprep.subr.bf16.mxu0 0
    %2623 = vmatpush1.bf16.msra.mxu0 0
    %2624 = vmatprep.subr.bf16.mxu0 0
    %2625 = vmatpush1.bf16.msra.mxu0 0
    %2626 = vmatprep.subr.bf16.mxu0 0
    %2627 = vmatpush1.bf16.msra.mxu0 0
    %2628 = vmatprep.subr.bf16.mxu0 0
    %2629 = vmatpush1.bf16.msra.mxu0 0
    %2630 = vmatprep.subr.bf16.mxu0 0
    %2631 = vmatpush1.bf16.msra.mxu0 0
    %2632 = vmatprep.subr.bf16.mxu0 0
    %2633 = vmatpush1.bf16.msra.mxu0 0
    %2634 = vmatprep.subr.bf16.mxu0 0
    %2635 = vmatpush1.bf16.msra.mxu0 0
    %2636 = vmatprep.mubr.bf16.mxu0 0
    %2637 = vmatmul.mubr.bf16.gmra.mrb[0].mxu0 %v2387
    %v2638 = vpop.f32.mrb[0].mxu0
    %v2639 = vadd.f32 %v2542, %v2638
    %v2640 = vpop.f32.mrb[0].mxu0
    %v2641 = vpop.f32.mrb[0].mxu0
    %v2642 = vadd.f32 %v2545, %v2641
    %v2643 = vpop.f32.mrb[0].mxu0
    %2644 = vmatprep.mubr.bf16.mxu0 0
    %2645 = vmatmul.mubr.bf16.gmra.mrb[0].mxu0 %v2390
    %v2646 = vpop.f32.mrb[0].mxu0
    %v2647 = vadd.f32 %v2550, %v2646
    %v2648 = vpop.f32.mrb[0].mxu0
    %v2649 = vpop.f32.mrb[0].mxu0
    %v2650 = vadd.f32 %v2553, %v2649
    %v2651 = vpop.f32.mrb[0].mxu0
    %2652 = vmatprep.mubr.bf16.mxu0 0
    %2653 = vmatmul.mubr.bf16.gmra.mrb[0].mxu0 %v2393
    %v2654 = vpop.f32.mrb[0].mxu0
    %v2655 = vadd.f32 %v2558, %v2654
    %v2656 = vpop.f32.mrb[0].mxu0
    %v2657 = vpop.f32.mrb[0].mxu0
    %v2658 = vadd.f32 %v2561, %v2657
    %v2659 = vpop.f32.mrb[0].mxu0
    %2660 = vmatprep.mubr.bf16.mxu0 0
    %2661 = vmatmul.mubr.bf16.gmra.mrb[0].mxu0 %v2396
    %v2662 = vpop.f32.mrb[0].mxu0
    %v2663 = vadd.f32 %v2566, %v2662
    %v2664 = vpop.f32.mrb[0].mxu0
    %v2665 = vpop.f32.mrb[0].mxu0
    %v2666 = vadd.f32 %v2569, %v2665
    %v2667 = vpop.f32.mrb[0].mxu0
    %2668 = vmatprep.mubr.bf16.mxu0 0
    %2669 = vmatmul.mubr.bf16.gmra.mrb[0].mxu0 %v2399
    %v2670 = vpop.f32.mrb[0].mxu0
    %v2671 = vadd.f32 %v2574, %v2670
    %v2672 = vpop.f32.mrb[0].mxu0
    %v2673 = vpop.f32.mrb[0].mxu0
    %v2674 = vadd.f32 %v2577, %v2673
    %v2675 = vpop.f32.mrb[0].mxu0
    %2676 = vmatprep.mubr.bf16.mxu0 0
    %2677 = vmatmul.mubr.bf16.gmra.mrb[0].mxu0 %v2402
    %v2678 = vpop.f32.mrb[0].mxu0
    %v2679 = vadd.f32 %v2582, %v2678
    %v2680 = vpop.f32.mrb[0].mxu0
    %v2681 = vpop.f32.mrb[0].mxu0
    %v2682 = vadd.f32 %v2585, %v2681
    %v2683 = vpop.f32.mrb[0].mxu0
    %2684 = vmatprep.mubr.bf16.mxu0 0
    %2685 = vmatmul.mubr.bf16.gmra.mrb[0].mxu0 %v2405
    %v2686 = vpop.f32.mrb[0].mxu0
    %v2687 = vadd.f32 %v2590, %v2686
    %v2688 = vpop.f32.mrb[0].mxu0
    %v2689 = vpop.f32.mrb[0].mxu0
    %v2690 = vadd.f32 %v2593, %v2689
    %v2691 = vpop.f32.mrb[0].mxu0
    %2692 = vmatprep.mubr.bf16.mxu0 0
    %2693 = vmatmul.mubr.bf16.gmra.mrb[0].mxu0 %v2408
    %v2694 = vpop.f32.mrb[0].mxu0
    %v2695 = vadd.f32 %v2598, %v2694
    %v2696 = vpop.f32.mrb[0].mxu0
    %v2697 = vpop.f32.mrb[0].mxu0
    %v2698 = vadd.f32 %v2601, %v2697
    %v2699 = vpop.f32.mrb[0].mxu0
    %2700 = vdwg.mxu0
    %v2701 = vpack.c.bf16 %v2642, %v2639
    %v2702 = vpack.c.bf16 %v2650, %v2647
    %v2703 = vpack.c.bf16 %v2658, %v2655
    %v2704 = vpack.c.bf16 %v2666, %v2663
    %v2705 = vpack.c.bf16 %v2674, %v2671
    %v2706 = vpack.c.bf16 %v2682, %v2679
    %v2707 = vpack.c.bf16 %v2690, %v2687
    %v2708 = vpack.c.bf16 %v2698, %v2695
    %v2709 = vld [vmem:[#allocation17] sm:$0xf]
    %v2710 = vld [vmem:[#allocation17 + $0x4] sm:$0xf]
    %v2711 = vld [vmem:[#allocation17 + $0x8] sm:$0xf]
    %v2712 = vld [vmem:[#allocation17 + $0xc] sm:$0xf]
    %v2713 = vld [vmem:[#allocation17 + $0x10] sm:$0xf]
    %v2714 = vld [vmem:[#allocation17 + $0x14] sm:$0xf]
    %v2715 = vld [vmem:[#allocation17 + $0x18] sm:$0xf]
    %v2716 = vld [vmem:[#allocation17 + $0x1c] sm:$0xf]
    %v2717 = vld [vmem:[#allocation19] sm:$0x1]
    %v2719 = vlaneseq
    %v2720 = vshrl.u32 %v2719, 7
    %v2721 = vsub.s32 0, %v2720
    %v2722 = vrot.slane %v2717, %v2721
    %v2732 = vunpack.c.l.b16 %v2709
    %v2733 = vunpack.c.l.b16 %v2710
    %v2734 = vunpack.c.l.b16 %v2711
    %v2735 = vunpack.c.l.b16 %v2712
    %v2736 = vunpack.c.l.b16 %v2713
    %v2737 = vunpack.c.l.b16 %v2714
    %v2738 = vunpack.c.l.b16 %v2715
    %v2739 = vunpack.c.l.b16 %v2716
    %v2740 = vpack.c.b16 %v2733, %v2732
    %v2741 = vpack.c.b16 %v2735, %v2734
    %v2742 = vpack.c.b16 %v2737, %v2736
    %v2743 = vpack.c.b16 %v2739, %v2738
    %v2749 = vsel %vm273, %v2701, 0
    %v2752 = vsel %vm273, %v2702, 0
    %v2755 = vsel %vm273, %v2703, 0
    %v2758 = vsel %vm273, %v2704, 0
    %v2761 = vsel %vm273, %v2705, 0
    %v2764 = vsel %vm273, %v2706, 0
    %v2767 = vsel %vm273, %v2707, 0
    %v2770 = vsel %vm273, %v2708, 0
    %2772 = vmatprep.subr.bf16.mxu0 0
    %2773 = vmatpush1.bf16.msra.mxu0 %v2740
    %2774 = vmatprep.subr.bf16.mxu0 0
    %2775 = vmatpush1.bf16.msra.mxu0 %v2741
    %2776 = vmatprep.subr.bf16.mxu0 0
    %2777 = vmatpush1.bf16.msra.mxu0 %v2742
    %2778 = vmatprep.subr.bf16.mxu0 0
    %2779 = vmatpush1.bf16.msra.mxu0 %v2743
    %2780 = vmatprep.subr.bf16.mxu0 0
    %2781 = vmatpush1.bf16.msra.mxu0 0
    %2782 = vmatprep.subr.bf16.mxu0 0
    %2783 = vmatpush1.bf16.msra.mxu0 0
    %2784 = vmatprep.subr.bf16.mxu0 0
    %2785 = vmatpush1.bf16.msra.mxu0 0
    %2786 = vmatprep.subr.bf16.mxu0 0
    %2787 = vmatpush1.bf16.msra.mxu0 0
    %2788 = vmatprep.subr.bf16.mxu0 0
    %2789 = vmatpush1.bf16.msra.mxu0 0
    %2790 = vmatprep.subr.bf16.mxu0 0
    %2791 = vmatpush1.bf16.msra.mxu0 0
    %2792 = vmatprep.subr.bf16.mxu0 0
    %2793 = vmatpush1.bf16.msra.mxu0 0
    %2794 = vmatprep.subr.bf16.mxu0 0
    %2795 = vmatpush1.bf16.msra.mxu0 0
    %2796 = vmatprep.subr.bf16.mxu0 0
    %2797 = vmatpush1.bf16.msra.mxu0 0
    %2798 = vmatprep.subr.bf16.mxu0 0
    %2799 = vmatpush1.bf16.msra.mxu0 0
    %2800 = vmatprep.subr.bf16.mxu0 0
    %2801 = vmatpush1.bf16.msra.mxu0 0
    %2802 = vmatprep.subr.bf16.mxu0 0
    %2803 = vmatpush1.bf16.msra.mxu0 0
    %2804 = vmatprep.mubr.bf16.mxu0 0
    %2805 = vmatmul.mubr.bf16.gmra.mrb[0].mxu0 %v2749
    %v2806 = vpop.f32.mrb[0].mxu0
    %v2807 = vadd.f32 %v2722, %v2806
    %v2808 = vpop.f32.mrb[0].mxu0
    %v2809 = vpop.f32.mrb[0].mxu0
    %v2810 = vadd.f32 %v2722, %v2809
    %v2811 = vpop.f32.mrb[0].mxu0
    %2812 = vmatprep.mubr.bf16.mxu0 0
    %2813 = vmatmul.mubr.bf16.gmra.mrb[0].mxu0 %v2752
    %v2814 = vpop.f32.mrb[0].mxu0
    %v2815 = vadd.f32 %v2722, %v2814
    %v2816 = vpop.f32.mrb[0].mxu0
    %v2817 = vpop.f32.mrb[0].mxu0
    %v2818 = vadd.f32 %v2722, %v2817
    %v2819 = vpop.f32.mrb[0].mxu0
    %2820 = vmatprep.mubr.bf16.mxu0 0
    %2821 = vmatmul.mubr.bf16.gmra.mrb[0].mxu0 %v2755
    %v2822 = vpop.f32.mrb[0].mxu0
    %v2823 = vadd.f32 %v2722, %v2822
    %v2824 = vpop.f32.mrb[0].mxu0
    %v2825 = vpop.f32.mrb[0].mxu0
    %v2826 = vadd.f32 %v2722, %v2825
    %v2827 = vpop.f32.mrb[0].mxu0
    %2828 = vmatprep.mubr.bf16.mxu0 0
    %2829 = vmatmul.mubr.bf16.gmra.mrb[0].mxu0 %v2758
    %v2830 = vpop.f32.mrb[0].mxu0
    %v2831 = vadd.f32 %v2722, %v2830
    %v2832 = vpop.f32.mrb[0].mxu0
    %v2833 = vpop.f32.mrb[0].mxu0
    %v2834 = vadd.f32 %v2722, %v2833
    %v2835 = vpop.f32.mrb[0].mxu0
    %2836 = vmatprep.mubr.bf16.mxu0 0
    %2837 = vmatmul.mubr.bf16.gmra.mrb[0].mxu0 %v2761
    %v2838 = vpop.f32.mrb[0].mxu0
    %v2839 = vadd.f32 %v2722, %v2838
    %v2840 = vpop.f32.mrb[0].mxu0
    %v2841 = vpop.f32.mrb[0].mxu0
    %v2842 = vadd.f32 %v2722, %v2841
    %v2843 = vpop.f32.mrb[0].mxu0
    %2844 = vmatprep.mubr.bf16.mxu0 0
    %2845 = vmatmul.mubr.bf16.gmra.mrb[0].mxu0 %v2764
    %v2846 = vpop.f32.mrb[0].mxu0
    %v2847 = vadd.f32 %v2722, %v2846
    %v2848 = vpop.f32.mrb[0].mxu0
    %v2849 = vpop.f32.mrb[0].mxu0
    %v2850 = vadd.f32 %v2722, %v2849
    %v2851 = vpop.f32.mrb[0].mxu0
    %2852 = vmatprep.mubr.bf16.mxu0 0
    %2853 = vmatmul.mubr.bf16.gmra.mrb[0].mxu0 %v2767
    %v2854 = vpop.f32.mrb[0].mxu0
    %v2855 = vadd.f32 %v2722, %v2854
    %v2856 = vpop.f32.mrb[0].mxu0
    %v2857 = vpop.f32.mrb[0].mxu0
    %v2858 = vadd.f32 %v2722, %v2857
    %v2859 = vpop.f32.mrb[0].mxu0
    %2860 = vmatprep.mubr.bf16.mxu0 0
    %2861 = vmatmul.mubr.bf16.gmra.mrb[0].mxu0 %v2770
    %v2862 = vpop.f32.mrb[0].mxu0
    %v2863 = vadd.f32 %v2722, %v2862
    %v2864 = vpop.f32.mrb[0].mxu0
    %v2865 = vpop.f32.mrb[0].mxu0
    %v2866 = vadd.f32 %v2722, %v2865
    %v2867 = vpop.f32.mrb[0].mxu0
    %2868 = vdwg.mxu0
    %v2869 = vmax.f32 %v2807, 0.0
    %v2870 = vmax.f32 %v2810, 0.0
    %v2871 = vmax.f32 %v2815, 0.0
    %v2872 = vmax.f32 %v2818, 0.0
    %v2873 = vmax.f32 %v2823, 0.0
    %v2874 = vmax.f32 %v2826, 0.0
    %v2875 = vmax.f32 %v2831, 0.0
    %v2876 = vmax.f32 %v2834, 0.0
    %v2877 = vmax.f32 %v2839, 0.0
    %v2878 = vmax.f32 %v2842, 0.0
    %v2879 = vmax.f32 %v2847, 0.0
    %v2880 = vmax.f32 %v2850, 0.0
    %v2881 = vmax.f32 %v2855, 0.0
    %v2882 = vmax.f32 %v2858, 0.0
    %v2883 = vmax.f32 %v2863, 0.0
    %v2884 = vmax.f32 %v2866, 0.0
    %v2885 = vpack.c.bf16 %v2870, %v2869
    %v2886 = vpack.c.bf16 %v2872, %v2871
    %v2887 = vpack.c.bf16 %v2874, %v2873
    %v2888 = vpack.c.bf16 %v2876, %v2875
    %v2889 = vpack.c.bf16 %v2878, %v2877
    %v2890 = vpack.c.bf16 %v2880, %v2879
    %v2891 = vpack.c.bf16 %v2882, %v2881
    %v2892 = vpack.c.bf16 %v2884, %v2883
    %v2893 = vld [vmem:[#allocation20] sm:$0xf]
    %v2894 = vld [vmem:[#allocation20 + $0x4] sm:$0xf]
    %v2895 = vld [vmem:[#allocation20 + $0x8] sm:$0xf]
    %v2896 = vld [vmem:[#allocation20 + $0xc] sm:$0xf]
    %v2897 = vld [vmem:[#allocation20 + $0x10] sm:$0xf]
    %v2898 = vld [vmem:[#allocation20 + $0x14] sm:$0xf]
    %v2899 = vld [vmem:[#allocation20 + $0x18] sm:$0xf]
    %v2900 = vld [vmem:[#allocation20 + $0x1c] sm:$0xf]
    %v2901 = vld [vmem:[#allocation20 + $0x20] sm:$0xf]
    %v2902 = vld [vmem:[#allocation20 + $0x24] sm:$0xf]
    %v2903 = vld [vmem:[#allocation20 + $0x28] sm:$0xf]
    %v2904 = vld [vmem:[#allocation20 + $0x2c] sm:$0xf]
    %v2905 = vld [vmem:[#allocation20 + $0x30] sm:$0xf]
    %v2906 = vld [vmem:[#allocation20 + $0x34] sm:$0xf]
    %v2907 = vld [vmem:[#allocation20 + $0x38] sm:$0xf]
    %v2908 = vld [vmem:[#allocation20 + $0x3c] sm:$0xf]
    %v2909 = vld [vmem:[#allocation22] sm:$0x1]
    %v2911 = vlaneseq
    %v2912 = vshrl.u32 %v2911, 7
    %v2913 = vsub.s32 0, %v2912
    %v2914 = vrot.slane %v2909, %v2913
    %v2932 = vunpack.c.l.b16 %v2893
    %v2933 = vunpack.c.l.b16 %v2894
    %v2934 = vunpack.c.l.b16 %v2895
    %v2935 = vunpack.c.l.b16 %v2896
    %v2936 = vunpack.c.l.b16 %v2897
    %v2937 = vunpack.c.l.b16 %v2898
    %v2938 = vunpack.c.l.b16 %v2899
    %v2939 = vunpack.c.l.b16 %v2900
    %v2940 = vunpack.c.l.b16 %v2901
    %v2941 = vunpack.c.l.b16 %v2902
    %v2942 = vunpack.c.l.b16 %v2903
    %v2943 = vunpack.c.l.b16 %v2904
    %v2944 = vunpack.c.l.b16 %v2905
    %v2945 = vunpack.c.l.b16 %v2906
    %v2946 = vunpack.c.l.b16 %v2907
    %v2947 = vunpack.c.l.b16 %v2908
    %v2948 = vpack.c.b16 %v2933, %v2932
    %v2949 = vpack.c.b16 %v2935, %v2934
    %v2950 = vpack.c.b16 %v2937, %v2936
    %v2951 = vpack.c.b16 %v2939, %v2938
    %v2952 = vpack.c.b16 %v2941, %v2940
    %v2953 = vpack.c.b16 %v2943, %v2942
    %v2954 = vpack.c.b16 %v2945, %v2944
    %v2955 = vpack.c.b16 %v2947, %v2946
    %2964 = vmatprep.subr.bf16.mxu0 0
    %2965 = vmatpush1.bf16.msra.mxu0 %v2948
    %2966 = vmatprep.subr.bf16.mxu0 0
    %2967 = vmatpush1.bf16.msra.mxu0 %v2949
    %2968 = vmatprep.subr.bf16.mxu0 0
    %2969 = vmatpush1.bf16.msra.mxu0 %v2950
    %2970 = vmatprep.subr.bf16.mxu0 0
    %2971 = vmatpush1.bf16.msra.mxu0 %v2951
    %2972 = vmatprep.subr.bf16.mxu0 0
    %2973 = vmatpush1.bf16.msra.mxu0 %v2952
    %2974 = vmatprep.subr.bf16.mxu0 0
    %2975 = vmatpush1.bf16.msra.mxu0 %v2953
    %2976 = vmatprep.subr.bf16.mxu0 0
    %2977 = vmatpush1.bf16.msra.mxu0 %v2954
    %2978 = vmatprep.subr.bf16.mxu0 0
    %2979 = vmatpush1.bf16.msra.mxu0 %v2955
    %2980 = vmatprep.subr.bf16.mxu0 0
    %2981 = vmatpush1.bf16.msra.mxu0 0
    %2982 = vmatprep.subr.bf16.mxu0 0
    %2983 = vmatpush1.bf16.msra.mxu0 0
    %2984 = vmatprep.subr.bf16.mxu0 0
    %2985 = vmatpush1.bf16.msra.mxu0 0
    %2986 = vmatprep.subr.bf16.mxu0 0
    %2987 = vmatpush1.bf16.msra.mxu0 0
    %2988 = vmatprep.subr.bf16.mxu0 0
    %2989 = vmatpush1.bf16.msra.mxu0 0
    %2990 = vmatprep.subr.bf16.mxu0 0
    %2991 = vmatpush1.bf16.msra.mxu0 0
    %2992 = vmatprep.subr.bf16.mxu0 0
    %2993 = vmatpush1.bf16.msra.mxu0 0
    %2994 = vmatprep.subr.bf16.mxu0 0
    %2995 = vmatpush1.bf16.msra.mxu0 0
    %2996 = vmatprep.mubr.bf16.mxu0 0
    %2997 = vmatmul.mubr.bf16.gmra.mrb[0].mxu0 %v2885
    %v2998 = vpop.f32.mrb[0].mxu0
    %v2999 = vadd.f32 %v2914, %v2998
    %v3000 = vpop.f32.mrb[0].mxu0
    %v3001 = vpop.f32.mrb[0].mxu0
    %v3002 = vadd.f32 %v2914, %v3001
    %v3003 = vpop.f32.mrb[0].mxu0
    %3004 = vmatprep.mubr.bf16.mxu0 0
    %3005 = vmatmul.mubr.bf16.gmra.mrb[0].mxu0 %v2886
    %v3006 = vpop.f32.mrb[0].mxu0
    %v3007 = vadd.f32 %v2914, %v3006
    %v3008 = vpop.f32.mrb[0].mxu0
    %v3009 = vpop.f32.mrb[0].mxu0
    %v3010 = vadd.f32 %v2914, %v3009
    %v3011 = vpop.f32.mrb[0].mxu0
    %3012 = vmatprep.mubr.bf16.mxu0 0
    %3013 = vmatmul.mubr.bf16.gmra.mrb[0].mxu0 %v2887
    %v3014 = vpop.f32.mrb[0].mxu0
    %v3015 = vadd.f32 %v2914, %v3014
    %v3016 = vpop.f32.mrb[0].mxu0
    %v3017 = vpop.f32.mrb[0].mxu0
    %v3018 = vadd.f32 %v2914, %v3017
    %v3019 = vpop.f32.mrb[0].mxu0
    %3020 = vmatprep.mubr.bf16.mxu0 0
    %3021 = vmatmul.mubr.bf16.gmra.mrb[0].mxu0 %v2888
    %v3022 = vpop.f32.mrb[0].mxu0
    %v3023 = vadd.f32 %v2914, %v3022
    %v3024 = vpop.f32.mrb[0].mxu0
    %v3025 = vpop.f32.mrb[0].mxu0
    %v3026 = vadd.f32 %v2914, %v3025
    %v3027 = vpop.f32.mrb[0].mxu0
    %3028 = vmatprep.mubr.bf16.mxu0 0
    %3029 = vmatmul.mubr.bf16.gmra.mrb[0].mxu0 %v2889
    %v3030 = vpop.f32.mrb[0].mxu0
    %v3031 = vadd.f32 %v2914, %v3030
    %v3032 = vpop.f32.mrb[0].mxu0
    %v3033 = vpop.f32.mrb[0].mxu0
    %v3034 = vadd.f32 %v2914, %v3033
    %v3035 = vpop.f32.mrb[0].mxu0
    %3036 = vmatprep.mubr.bf16.mxu0 0
    %3037 = vmatmul.mubr.bf16.gmra.mrb[0].mxu0 %v2890
    %v3038 = vpop.f32.mrb[0].mxu0
    %v3039 = vadd.f32 %v2914, %v3038
    %v3040 = vpop.f32.mrb[0].mxu0
    %v3041 = vpop.f32.mrb[0].mxu0
    %v3042 = vadd.f32 %v2914, %v3041
    %v3043 = vpop.f32.mrb[0].mxu0
    %3044 = vmatprep.mubr.bf16.mxu0 0
    %3045 = vmatmul.mubr.bf16.gmra.mrb[0].mxu0 %v2891
    %v3046 = vpop.f32.mrb[0].mxu0
    %v3047 = vadd.f32 %v2914, %v3046
    %v3048 = vpop.f32.mrb[0].mxu0
    %v3049 = vpop.f32.mrb[0].mxu0
    %v3050 = vadd.f32 %v2914, %v3049
    %v3051 = vpop.f32.mrb[0].mxu0
    %3052 = vmatprep.mubr.bf16.mxu0 0
    %3053 = vmatmul.mubr.bf16.gmra.mrb[0].mxu0 %v2892
    %v3054 = vpop.f32.mrb[0].mxu0
    %v3055 = vadd.f32 %v2914, %v3054
    %v3056 = vpop.f32.mrb[0].mxu0
    %v3057 = vpop.f32.mrb[0].mxu0
    %v3058 = vadd.f32 %v2914, %v3057
    %v3059 = vpop.f32.mrb[0].mxu0
    %3060 = vdwg.mxu0
    %v3061 = vpack.c.bf16 %v3002, %v2999
    %v3062 = vpack.c.bf16 %v3010, %v3007
    %v3063 = vpack.c.bf16 %v3018, %v3015
    %v3064 = vpack.c.bf16 %v3026, %v3023
    %v3065 = vpack.c.bf16 %v3034, %v3031
    %v3066 = vpack.c.bf16 %v3042, %v3039
    %v3067 = vpack.c.bf16 %v3050, %v3047
    %v3068 = vpack.c.bf16 %v3058, %v3055
    %v3077 = vunpack.c.l.b16 %v3061
    %v3078 = vunpack.c.h.b16 %v3061
    %v3079 = vunpack.c.l.b16 %v3062
    %v3080 = vunpack.c.h.b16 %v3062
    %v3081 = vunpack.c.l.b16 %v3063
    %v3082 = vunpack.c.h.b16 %v3063
    %v3083 = vunpack.c.l.b16 %v3064
    %v3084 = vunpack.c.h.b16 %v3064
    %v3085 = vunpack.c.l.b16 %v3065
    %v3086 = vunpack.c.h.b16 %v3065
    %v3087 = vunpack.c.l.b16 %v3066
    %v3088 = vunpack.c.h.b16 %v3066
    %v3089 = vunpack.c.l.b16 %v3067
    %v3090 = vunpack.c.h.b16 %v3067
    %v3091 = vunpack.c.l.b16 %v3068
    %v3092 = vunpack.c.h.b16 %v3068
    %v3093 = vpack.c.b16 %v3077, %v3077
    %v3094 = vpack.c.b16 %v3078, %v3078
    %v3095 = vpack.c.b16 %v3079, %v3079
    %v3096 = vpack.c.b16 %v3080, %v3080
    %v3097 = vpack.c.b16 %v3081, %v3081
    %v3098 = vpack.c.b16 %v3082, %v3082
    %v3099 = vpack.c.b16 %v3083, %v3083
    %v3100 = vpack.c.b16 %v3084, %v3084
    %v3101 = vpack.c.b16 %v3085, %v3085
    %v3102 = vpack.c.b16 %v3086, %v3086
    %v3103 = vpack.c.b16 %v3087, %v3087
    %v3104 = vpack.c.b16 %v3088, %v3088
    %v3105 = vpack.c.b16 %v3089, %v3089
    %v3106 = vpack.c.b16 %v3090, %v3090
    %v3107 = vpack.c.b16 %v3091, %v3091
    %v3108 = vpack.c.b16 %v3092, %v3092
    %3125 = vst [vmem:[#allocation23] sm:$0xf] %v3093
    %3126 = vst [vmem:[#allocation23 + $0x4] sm:$0xf] %v3094
    %3127 = vst [vmem:[#allocation23 + $0x8] sm:$0xf] %v3095
    %3128 = vst [vmem:[#allocation23 + $0xc] sm:$0xf] %v3096
    %3129 = vst [vmem:[#allocation23 + $0x10] sm:$0xf] %v3097
    %3130 = vst [vmem:[#allocation23 + $0x14] sm:$0xf] %v3098
    %3131 = vst [vmem:[#allocation23 + $0x18] sm:$0xf] %v3099
    %3132 = vst [vmem:[#allocation23 + $0x1c] sm:$0xf] %v3100
    %3133 = vst [vmem:[#allocation23 + $0x20] sm:$0xf] %v3101
    %3134 = vst [vmem:[#allocation23 + $0x24] sm:$0xf] %v3102
    %3135 = vst [vmem:[#allocation23 + $0x28] sm:$0xf] %v3103
    %3136 = vst [vmem:[#allocation23 + $0x2c] sm:$0xf] %v3104
    %3137 = vst [vmem:[#allocation23 + $0x30] sm:$0xf] %v3105
    %3138 = vst [vmem:[#allocation23 + $0x34] sm:$0xf] %v3106
    %3139 = vst [vmem:[#allocation23 + $0x38] sm:$0xf] %v3107
    %3140 = vst [vmem:[#allocation23 + $0x3c] sm:$0xf] %v3108
    // Predicated region
    $region106: #{tpu_custom_call.1} parent=1 // pred_check
      _
    $region107: #{tpu_custom_call.1} parent=1 // pred_check_branch
      %3142 = sbr.rel (0) target = $region109
    $region108: #{tpu_custom_call.1} parent=1 // pred_region
      %s3144 = ssub.s32 1024, 1024
      %3145 = vsyncadd [#allocation4], %s3144
      %s3146 = sshll.u32 [#allocation23], 4
      %s3147 = int_to_ptr.vmem [resolvable:$true] %s3146
      %3152 = dma.vmem_to_hbm [thread:$0]  %s3147, 1024, %s13, [#allocation4], 64, 64, 4
    $region109: #{tpu_custom_call.1} parent=1 // pred_fallthru
      _
    // Predicated region
    $region110: #{tpu_custom_call.1} parent=1 // pred_check
      _
    $region111: #{tpu_custom_call.1} parent=1 // pred_check_branch
      %3154 = sbr.rel (0) target = $region113
    $region112: #{tpu_custom_call.1} parent=1 // pred_region
      %3155 = dma.done [#allocation4], 1024
    $region113: #{tpu_custom_call.1} parent=1 // pred_fallthru
      _
    %3156 = vsyncpa [#allocation3], 1
    %3157 = vsyncpa [#allocation6], 1
    %3158 = vsyncpa [#allocation9], 1
    %3159 = vsyncpa [#allocation12], 1
    %3160 = vsyncpa [#allocation15], 1
    %3161 = vsyncpa [#allocation18], 1
    %3162 = vsyncpa [#allocation21], 1
    %3163 = vsyncpa [#allocation4], 1

</llo_original>
